<compile_context>
chip_gen: v7x
topology: tpu7x:2x2x1
jax: 0.10.0
libtpu: 0.0.40
codegen_flags: <defaults>
</compile_context>

<pallas_src>
import functools

import jax
import jax.numpy as jnp
from jax import lax
from jax.experimental import pallas as pl
from jax.experimental.pallas import tpu as pltpu

H = 1024          # LSTM hidden / fc output size (fixed by the module __init__)
F_IN = 300        # fc input features (fixed by the module __init__)


def _pick_vmem_limit():
    """48 MiB fits v7x's 64 MiB physical VMEM; on v5e/v6e (128 MiB) go bigger."""
    default = 48 * 1024 * 1024
    try:
        info = pltpu.get_tpu_info()
        cap = None
        for name in ("vmem_capacity_bytes", "vmem_size_bytes", "vmem_bytes"):
            cap = getattr(info, name, None)
            if cap:
                break
        if cap:
            return max(default, min(int(cap) - 16 * 1024 * 1024, 112 * 1024 * 1024))
    except Exception:
        pass
    return default


VMEM_LIMIT = _pick_vmem_limit()


def _round_up(x, m):
    return (x + m - 1) // m * m


# ----------------------------------------------------------------------------
# Kernel 1: linear  y = x @ w + b, M-tiled, full weight resident in VMEM.
#   Weight/bias index maps are constant -> fetched from HBM once, never
#   re-streamed per M tile. bf16 operands, f32 MXU accumulation.
# ----------------------------------------------------------------------------
def _linear_kernel(x_ref, w_ref, b_ref, o_ref, *, relu):
    y = jnp.dot(x_ref[...], w_ref[...],
                preferred_element_type=jnp.float32) + b_ref[...]
    if relu:
        y = jnp.maximum(y, 0.0)
    o_ref[...] = y.astype(o_ref.dtype)


def tiled_linear(x, w, b, *, out_dtype=jnp.float32, relu=False, tm=512):
    M, K = x.shape
    Kw, N = w.shape
    assert K == Kw
    tm_eff = min(tm, _round_up(M, 8))
    m_pad = _round_up(M, tm_eff)
    if m_pad != M:
        x = jnp.pad(x, ((0, m_pad - M), (0, 0)))
    grid = (m_pad // tm_eff,)

    out = pl.pallas_call(
        functools.partial(_linear_kernel, relu=relu),
        out_shape=jax.ShapeDtypeStruct((m_pad, N), out_dtype),
        grid_spec=pltpu.PrefetchScalarGridSpec(
            num_scalar_prefetch=0,
            grid=grid,
            in_specs=[
                pl.BlockSpec((tm_eff, K), lambda i: (i, 0)),
                pl.BlockSpec((K, N), lambda i: (0, 0)),      # full weight, resident
                pl.BlockSpec((1, N), lambda i: (0, 0)),
            ],
            out_specs=pl.BlockSpec((tm_eff, N), lambda i: (i, 0)),
        ),
        compiler_params=pltpu.CompilerParams(
            dimension_semantics=("parallel",),
            vmem_limit_bytes=VMEM_LIMIT,
        ),
    )(x.astype(jnp.bfloat16), w.astype(jnp.bfloat16),
      b.reshape(1, N).astype(jnp.float32))
    return out[:M] if m_pad != M else out


# ----------------------------------------------------------------------------
# Shared LSTM chunk body helpers.
#   Gate order matches PyTorch: i, f, g, o.
#   sigmoid(x) = 0.5*tanh(0.5x)+0.5 -> one tanh over (B,4H) per step via a
#   per-column scale vector (0.5 for i/f/o, 1.0 for g).
# ----------------------------------------------------------------------------
def _gate_scale(hdim):
    col = lax.broadcasted_iota(jnp.int32, (1, 4 * hdim), 1)
    return jnp.where((col >= 2 * hdim) & (col < 3 * hdim), 1.0, 0.5).astype(jnp.float32)


def _lstm_step(gx_u_f32, h, c, whh_vmem, gate_scale, hdim):
    gates = gx_u_f32 + jnp.dot(h.astype(jnp.bfloat16), whh_vmem[...],
                               preferred_element_type=jnp.float32)
    t = jnp.tanh(gates * gate_scale)
    i_g = 0.5 * t[:, 0:hdim] + 0.5
    f_g = 0.5 * t[:, hdim:2 * hdim] + 0.5
    g_g = t[:, 2 * hdim:3 * hdim]
    o_g = 0.5 * t[:, 3 * hdim:4 * hdim] + 0.5
    c = f_g * c + i_g * g_g
    h = o_g * jnp.tanh(c)
    return h, c


# ----------------------------------------------------------------------------
# Kernel 2: LSTM layer that emits the full hidden sequence (used for layer 1).
#   Sequential grid over time chunks of U steps; h/c persist in f32 VMEM
#   scratch; W_hh (bf16) DMA'd once from HBM into a single-buffered VMEM
#   scratch (8 MiB) instead of being pipelined every chunk.
# ----------------------------------------------------------------------------
def _lstm_seq_kernel(gx_ref, whh_hbm, h_out_ref, whh_vmem, h_sc, c_sc, dma_sem):
    t = pl.program_id(0)
    u_steps = gx_ref.shape[0]
    hdim = h_sc.shape[-1]

    @pl.when(t == 0)
    def _():
        cp = pltpu.make_async_copy(whh_hbm, whh_vmem, dma_sem.at[0])
        cp.start()
        cp.wait()
        h_sc[...] = jnp.zeros_like(h_sc)
        c_sc[...] = jnp.zeros_like(c_sc)

    gate_scale = _gate_scale(hdim)

    def step(u, carry):
        h, c = carry
        h, c = _lstm_step(gx_ref[u].astype(jnp.float32), h, c,
                          whh_vmem, gate_scale, hdim)
        h_out_ref[u] = h.astype(jnp.bfloat16)
        return (h, c)

    h, c = lax.fori_loop(0, u_steps, step, (h_sc[...], c_sc[...]), unroll=True)
    h_sc[...] = h
    c_sc[...] = c


def lstm_layer_seq(gx_tm, whh_bf16):
    # gx_tm: (T, B, 4H) bf16 time-major pre-projected gates; whh_bf16: (H, 4H) bf16.
    T, B, G = gx_tm.shape
    hdim = G // 4
    U = next(u for u in (4, 2, 1) if T % u == 0)      # cap chunk at 4 steps
    return pl.pallas_call(
        _lstm_seq_kernel,
        out_shape=jax.ShapeDtypeStruct((T, B, hdim), jnp.bfloat16),
        grid_spec=pltpu.PrefetchScalarGridSpec(
            num_scalar_prefetch=0,
            grid=(T // U,),
            in_specs=[
                pl.BlockSpec((U, B, G), lambda t: (t, 0, 0)),
                pl.BlockSpec(memory_space=pl.ANY),    # W_hh stays in HBM; copied once
            ],
            out_specs=pl.BlockSpec((U, B, hdim), lambda t: (t, 0, 0)),
            scratch_shapes=[
                pltpu.VMEM((hdim, G), jnp.bfloat16),  # resident W_hh (single-buffered)
                pltpu.VMEM((B, hdim), jnp.float32),   # h state
                pltpu.VMEM((B, hdim), jnp.float32),   # c state
                pltpu.SemaphoreType.DMA((1,)),
            ],
        ),
        compiler_params=pltpu.CompilerParams(
            dimension_semantics=("arbitrary",),
            vmem_limit_bytes=VMEM_LIMIT,
        ),
    )(gx_tm, whh_bf16.astype(jnp.bfloat16))


# ----------------------------------------------------------------------------
# Kernel 3: final LSTM layer fused with mean-over-time + fc3 + ReLU + fc4.
#   No (T,B,H) hidden writeback; running sum of h lives in VMEM scratch and the
#   head runs once in the last grid step.
# ----------------------------------------------------------------------------
def _lstm_head_kernel(gx_ref, whh_hbm, w3_ref, b3_ref, w4t_ref, b4_ref, out_ref,
                      whh_vmem, h_sc, c_sc, hsum_sc, dma_sem, *, seq_len):
    t = pl.program_id(0)
    n_chunks = pl.num_programs(0)
    u_steps = gx_ref.shape[0]
    hdim = h_sc.shape[-1]

    @pl.when(t == 0)
    def _():
        cp = pltpu.make_async_copy(whh_hbm, whh_vmem, dma_sem.at[0])
        cp.start()
        cp.wait()
        h_sc[...] = jnp.zeros_like(h_sc)
        c_sc[...] = jnp.zeros_like(c_sc)
        hsum_sc[...] = jnp.zeros_like(hsum_sc)

    gate_scale = _gate_scale(hdim)

    def step(u, carry):
        h, c, hsum = carry
        h, c = _lstm_step(gx_ref[u].astype(jnp.float32), h, c,
                          whh_vmem, gate_scale, hdim)
        return (h, c, hsum + h)

    h, c, hsum = lax.fori_loop(0, u_steps, step,
                               (h_sc[...], c_sc[...], hsum_sc[...]), unroll=True)
    h_sc[...] = h
    c_sc[...] = c
    hsum_sc[...] = hsum

    @pl.when(t == n_chunks - 1)
    def _():
        hmean = hsum_sc[...] * (1.0 / seq_len)                       # (B, H) f32
        y = jnp.dot(hmean.astype(jnp.bfloat16), w3_ref[...],
                    preferred_element_type=jnp.float32) + b3_ref[...]  # (B, 512)
        y = jnp.maximum(y, 0.0)
        # TODO(synk): nn.Dropout(p=0.3) is identity at inference; no dropout mask applied.
        out_ref[...] = (jnp.sum(y * w4t_ref[...], axis=-1, keepdims=True)
                        + b4_ref[...])                               # (B, 1)


def lstm_last_layer_head(gx_tm, whh_bf16, w3, b3, w4, b4):
    T, B, G = gx_tm.shape
    hdim = G // 4
    n_mid = w3.shape[1]
    U = next(u for u in (4, 2, 1) if T % u == 0)
    return pl.pallas_call(
        functools.partial(_lstm_head_kernel, seq_len=T),
        out_shape=jax.ShapeDtypeStruct((B, 1), jnp.float32),
        grid_spec=pltpu.PrefetchScalarGridSpec(
            num_scalar_prefetch=0,
            grid=(T // U,),
            in_specs=[
                pl.BlockSpec((U, B, G), lambda t: (t, 0, 0)),
                pl.BlockSpec(memory_space=pl.ANY),                 # W_hh in HBM
                pl.BlockSpec((hdim, n_mid), lambda t: (0, 0)),     # fc3 W (resident)
                pl.BlockSpec((1, n_mid), lambda t: (0, 0)),        # fc3 b
                pl.BlockSpec((1, n_mid), lambda t: (0, 0)),        # fc4 W (as a row)
                pl.BlockSpec((1, 1), lambda t: (0, 0)),            # fc4 b
            ],
            out_specs=pl.BlockSpec((B, 1), lambda t: (0, 0)),
            scratch_shapes=[
                pltpu.VMEM((hdim, G), jnp.bfloat16),   # resident W_hh
                pltpu.VMEM((B, hdim), jnp.float32),    # h state
                pltpu.VMEM((B, hdim), jnp.float32),    # c state
                pltpu.VMEM((B, hdim), jnp.float32),    # running sum of h over time
                pltpu.SemaphoreType.DMA((1,)),
            ],
        ),
        compiler_params=pltpu.CompilerParams(
            dimension_semantics=("arbitrary",),
            vmem_limit_bytes=VMEM_LIMIT,
        ),
    )(gx_tm, whh_bf16.astype(jnp.bfloat16),
      w3.astype(jnp.bfloat16),
      b3.reshape(1, -1).astype(jnp.float32),
      w4.reshape(1, -1).astype(jnp.float32),
      b4.reshape(1, 1).astype(jnp.float32))


# ----------------------------------------------------------------------------
# Full forward pass (mirrors LSTM.forward of the PyTorch module).
# ----------------------------------------------------------------------------
def forward(x, params):
    B, C, T, F = x.shape

    # Channel mix folded into the fc weight:
    #   sum_c m[c]*x[:,c] @ W  ==  [x0|x1|x2] @ [m0*W ; m1*W ; m2*W]   (K = 3*300 = 900)
    mat = params["matrix"]
    w_mix = jnp.concatenate([mat[c] * params["fc_w"] for c in range(C)], axis=0)  # (900, 1024)
    x2d = jnp.transpose(x, (0, 2, 1, 3)).reshape(B * T, C * F)
    h = tiled_linear(x2d, w_mix, params["fc_b"], out_dtype=jnp.bfloat16)          # (B*T, 1024)

    # 2-layer LSTM (batch_first semantics); run time-major internally.
    h_tm = jnp.transpose(h.reshape(B, T, H), (1, 0, 2))                           # (T, B, 1024)

    # Layer 1: big batched input projection (MXU-efficient), sequential recurrence.
    wih1, whh1, bias1 = params["lstm"][0]
    gx1 = tiled_linear(h_tm.reshape(T * B, H), wih1, bias1,
                       out_dtype=jnp.bfloat16).reshape(T, B, 4 * H)
    h_tm = lstm_layer_seq(gx1, whh1)                                              # (T, B, H)

    # Layer 2: same projection, then recurrence fused with mean + fc3/ReLU/fc4.
    wih2, whh2, bias2 = params["lstm"][1]
    gx2 = tiled_linear(h_tm.reshape(T * B, H), wih2, bias2,
                       out_dtype=jnp.bfloat16).reshape(T, B, 4 * H)
    return lstm_last_layer_head(gx2, whh2, params["fc3_w"], params["fc3_b"],
                                params["fc4_w"], params["fc4_b"])                 # (B, 1)


# ----------------------------------------------------------------------------
# Deterministic parameter initialization (shapes from the module __init__).
# ----------------------------------------------------------------------------
def init_params(key):
    ks = jax.random.split(key, 12)

    def w(k, shape, scale=0.02):
        return jax.random.normal(k, shape, jnp.float32) * scale

    params = {
        "matrix": jnp.array([0.33, 0.33, 0.33], jnp.float32),
        "fc_w": w(ks[0], (F_IN, H)),                       # f32; scaled by matrix then bf16
        "fc_b": w(ks[1], (H,)),
        "fc3_w": w(ks[8], (H, 512)),
        "fc3_b": w(ks[9], (512,)),
        "fc4_w": w(ks[10], (512, 1)),
        "fc4_b": w(ks[11], (1,)),
    }
    lstm = []
    for layer in range(2):
        wih_t = w(ks[2 + 3 * layer], (H, 4 * H)).astype(jnp.bfloat16)  # W_ih^T
        whh_t = w(ks[3 + 3 * layer], (H, 4 * H)).astype(jnp.bfloat16)  # W_hh^T
        bias = w(ks[4 + 3 * layer], (4 * H,))                          # b_ih + b_hh combined
        lstm.append((wih_t, whh_t, bias))
    params["lstm"] = lstm
    return params


if __name__ == "__main__":
    key = jax.random.PRNGKey(0)
    pkey, xkey = jax.random.split(key)
    params = init_params(pkey)

    B, T = 8, 8
    x = jax.random.normal(xkey, (B, 3, T, F_IN), jnp.float32)

    out = forward(x, params)
    out = jax.block_until_ready(out)
    assert out.shape == (B, 1), out.shape
    assert jnp.all(jnp.isfinite(out))
    print("KERNEL_OK")
</pallas_src>

<mosaic_0001>
module attributes {stable_mosaic.version = 11 : i64} {
  func.func @_linear_kernel(%arg0: i32, %arg1: memref<64x900xbf16, #tpu.memory_space<vmem>>, %arg2: memref<900x1024xbf16, #tpu.memory_space<vmem>>, %arg3: memref<1x1024xf32, #tpu.memory_space<vmem>>, %arg4: memref<64x1024xbf16, #tpu.memory_space<vmem>>) attributes {dimension_semantics = [#tpu.dimension_semantics<parallel>], iteration_bounds = array<i64: 1>, scalar_prefetch = 0 : i64, scratch_operands = 0 : i64, tpu.core_type = #tpu.core_type<tc>, window_params = [{transform_indices = @transform_0, window_bounds = array<i64: 64, 900>}, {pipeline_mode = #tpu.pipeline_mode<synchronous>, transform_indices = @transform_1, window_bounds = array<i64: 900, 1024>}, {pipeline_mode = #tpu.pipeline_mode<synchronous>, transform_indices = @transform_2, window_bounds = array<i64: 1, 1024>}, {transform_indices = @transform_3, window_bounds = array<i64: 64, 1024>}]} {
    %c0 = arith.constant 0 : index
    %c0_0 = arith.constant 0 : index
    %0 = vector.load %arg1[%c0, %c0_0] : memref<64x900xbf16, #tpu.memory_space<vmem>>, vector<64x900xbf16>
    %c0_1 = arith.constant 0 : index
    %c0_2 = arith.constant 0 : index
    %1 = vector.load %arg2[%c0_1, %c0_2] : memref<900x1024xbf16, #tpu.memory_space<vmem>>, vector<900x1024xbf16>
    %cst = arith.constant dense<0.000000e+00> : vector<64x1024xf32>
    %2 = tpu.matmul %0, %1, %cst {dimension_numbers = #tpu.dot_dimension_numbers<[1], [0], [0], [1], [0, 0, 1, 1], [], []>} : vector<64x900xbf16>, vector<900x1024xbf16>, vector<64x1024xf32> -> vector<64x1024xf32>
    %c0_3 = arith.constant 0 : index
    %c0_4 = arith.constant 0 : index
    %3 = vector.load %arg3[%c0_3, %c0_4] : memref<1x1024xf32, #tpu.memory_space<vmem>>, vector<1x1024xf32>
    %4 = vector.broadcast %3 : vector<1x1024xf32> to vector<64x1024xf32>
    %5 = arith.addf %2, %4 : vector<64x1024xf32>
    %6 = arith.truncf %5 : vector<64x1024xf32> to vector<64x1024xbf16>
    %c0_5 = arith.constant 0 : index
    %c0_6 = arith.constant 0 : index
    %7 = vector.load %arg4[%c0_5, %c0_6] : memref<64x1024xbf16, #tpu.memory_space<vmem>>, vector<64x1024xbf16>
    tpu.vector_store %arg4[%c0_5, %c0_6], %6 {strides = array<i32>} : memref<64x1024xbf16, #tpu.memory_space<vmem>>, vector<64x1024xbf16>,
    return
  }
  func.func @transform_0(%arg0: i32) -> (i32, i32) {
    %c0_i32 = arith.constant 0 : i32
    %c0_i32_0 = arith.constant 0 : i32
    return %arg0, %c0_i32 : i32, i32
  }
  func.func @transform_1(%arg0: i32) -> (i32, i32) {
    %c0_i32 = arith.constant 0 : i32
    %c0_i32_0 = arith.constant 0 : i32
    %c0_i32_1 = arith.constant 0 : i32
    return %c0_i32, %c0_i32_0 : i32, i32
  }
  func.func @transform_2(%arg0: i32) -> (i32, i32) {
    %c0_i32 = arith.constant 0 : i32
    %c0_i32_0 = arith.constant 0 : i32
    %c0_i32_1 = arith.constant 0 : i32
    return %c0_i32, %c0_i32_0 : i32, i32
  }
  func.func @transform_3(%arg0: i32) -> (i32, i32) {
    %c0_i32 = arith.constant 0 : i32
    %c0_i32_0 = arith.constant 0 : i32
    return %arg0, %c0_i32 : i32, i32
  }
}

</mosaic_0001>

<llo_original>
// kernel: tpu_custom_call.1
$region0: #{tpu_custom_call.1}
  #allocation0 [shape = 'u32[]', space=smem, size = 0x4, offset = 0x4, fixed_abs, tag = 'smem constant byte address 0x4 - core index']
  #allocation1 [shape = 'u32[144,128]{1,0:T(1,128)}', space=vmem, size = 0x12000, scoped, tag = 'internal scratch']
  %s0 = inlined_call_operand.hbm [shape: bf16[64,900], index: 0, kind: input, shape index: {}]
  %s1 = inlined_call_operand.hbm [shape: bf16[900,1024], index: 1, kind: input, shape index: {}]
  %s2 = inlined_call_operand.hbm [shape: f32[1,1024], index: 2, kind: input, shape index: {}]
  %s3 = inlined_call_operand.hbm [shape: bf16[64,1024], index: 3, kind: output, shape index: {}]
  %s4 = sld [smem:[#allocation0]]
  $region34: #{tpu_custom_call.1} parent=0
    _
  %s6 = ssub.s32 1, %s4
  %s7 = scalar_select 0, %s6, %s4
  $region1: #{tpu_custom_call.1} parent=0
    #allocation2 [shape = 'u8[131072]{0}', space=vmem, size = 0x20000, scoped, tag = 'input window, operand 0, single buffered']
    #allocation3 [shape = 's32[1]{0}', space=sflag, size = 0x4, scoped, tag = 'scoped memory for tpu_custom_call.1']
    #allocation4 [shape = 's32[1]{0}', space=sflag, size = 0x4, scoped, tag = 'scoped memory for tpu_custom_call.1']
    #allocation5 [shape = 'u8[1851392]{0}', space=vmem, size = 0x1c4000, scoped, tag = 'input window, operand 1, single buffered']
    #allocation6 [shape = 's32[1]{0}', space=sflag, size = 0x4, scoped, tag = 'scoped memory for tpu_custom_call.1']
    #allocation7 [shape = 'u8[4096]{0}', space=vmem, size = 0x1000, scoped, tag = 'input window, operand 2, single buffered']
    #allocation8 [shape = 'u8[131072]{0}', space=vmem, size = 0x20000, scoped, tag = 'output window, operand 0, single buffered']
    %8 = vsyncpa [#allocation3], 0
    %9 = vsyncpa [#allocation6], 0
    %10 = vsyncpa [#allocation4], 0
    // Predicated region
    $region2: #{tpu_custom_call.1} parent=1 // pred_check
      _
    $region3: #{tpu_custom_call.1} parent=1 // pred_check_branch
      %12 = sbr.rel (0) target = $region5
    $region4: #{tpu_custom_call.1} parent=1 // pred_region
      %s14 = ssub.s32 4096, 4096
      %15 = vsyncadd [#allocation3], %s14
      %s16 = sshll.u32 [#allocation2], 4
      %s17 = int_to_ptr.vmem [resolvable:$true] %s16
      %22 = dma.hbm_to_vmem [thread:$0]  %s0, 4096, %s17, [#allocation3], 512, 512, 32
    $region5: #{tpu_custom_call.1} parent=1 // pred_fallthru
      _
    // Predicated region
    $region6: #{tpu_custom_call.1} parent=1 // pred_check
      _
    $region7: #{tpu_custom_call.1} parent=1 // pred_check_branch
      %24 = sbr.rel (0) target = $region9
    $region8: #{tpu_custom_call.1} parent=1 // pred_region
      %s26 = ssub.s32 57856, 57856
      %27 = vsyncadd [#allocation6], %s26
      %s28 = sshll.u32 [#allocation5], 4
      %s29 = int_to_ptr.vmem [resolvable:$true] %s28
      %34 = dma.hbm_to_vmem [thread:$0]  %s1, 57856, %s29, [#allocation6], 512, 512, 32
    $region9: #{tpu_custom_call.1} parent=1 // pred_fallthru
      _
    // Predicated region
    $region10: #{tpu_custom_call.1} parent=1 // pred_check
      _
    $region11: #{tpu_custom_call.1} parent=1 // pred_check_branch
      %36 = sbr.rel (0) target = $region13
    $region12: #{tpu_custom_call.1} parent=1 // pred_region
      %s38 = ssub.s32 128, 128
      %39 = vsyncadd [#allocation6], %s38
      %s41 = sshll.u32 [#allocation7], 4
      %s42 = int_to_ptr.vmem [resolvable:$true] %s41
      %44 = dma.hbm_to_vmem [thread:$0]  %s2, 128, %s42, [#allocation6]
    $region13: #{tpu_custom_call.1} parent=1 // pred_fallthru
      _
    // Predicated region
    $region14: #{tpu_custom_call.1} parent=1 // pred_check
      _
    $region15: #{tpu_custom_call.1} parent=1 // pred_check_branch
      %46 = sbr.rel (0) target = $region17
    $region16: #{tpu_custom_call.1} parent=1 // pred_region
      %47 = dma.done [#allocation3], 4096
    $region17: #{tpu_custom_call.1} parent=1 // pred_fallthru
      _
    // Predicated region
    $region18: #{tpu_custom_call.1} parent=1 // pred_check
      _
    $region19: #{tpu_custom_call.1} parent=1 // pred_check_branch
      %49 = sbr.rel (0) target = $region21
    $region20: #{tpu_custom_call.1} parent=1 // pred_region
      %50 = dma.done [#allocation6], 57856
    $region21: #{tpu_custom_call.1} parent=1 // pred_fallthru
      _
    // Predicated region
    $region22: #{tpu_custom_call.1} parent=1 // pred_check
      _
    $region23: #{tpu_custom_call.1} parent=1 // pred_check_branch
      %52 = sbr.rel (0) target = $region25
    $region24: #{tpu_custom_call.1} parent=1 // pred_region
      %53 = dma.done [#allocation6], 128
    $region25: #{tpu_custom_call.1} parent=1 // pred_fallthru
      _
    %v55 = vld [vmem:[#allocation2] sm:$0xff]
    %v56 = vld [vmem:[#allocation2 + $0x8] sm:$0xff]
    %v57 = vld [vmem:[#allocation2 + $0x10] sm:$0xff]
    %v58 = vld [vmem:[#allocation2 + $0x18] sm:$0xff]
    %v59 = vld [vmem:[#allocation2 + $0x20] sm:$0xff]
    %v60 = vld [vmem:[#allocation2 + $0x28] sm:$0xff]
    %v61 = vld [vmem:[#allocation2 + $0x30] sm:$0xff]
    %v62 = vld [vmem:[#allocation2 + $0x38] sm:$0xff]
    %v63 = vld [vmem:[#allocation2 + $0x40] sm:$0xff]
    %v64 = vld [vmem:[#allocation2 + $0x48] sm:$0xff]
    %v65 = vld [vmem:[#allocation2 + $0x50] sm:$0xff]
    %v66 = vld [vmem:[#allocation2 + $0x58] sm:$0xff]
    %v67 = vld [vmem:[#allocation2 + $0x60] sm:$0xff]
    %v68 = vld [vmem:[#allocation2 + $0x68] sm:$0xff]
    %v69 = vld [vmem:[#allocation2 + $0x70] sm:$0xff]
    %v70 = vld [vmem:[#allocation2 + $0x78] sm:$0xff]
    %v71 = vld [vmem:[#allocation2 + $0x80] sm:$0xff]
    %v72 = vld [vmem:[#allocation2 + $0x88] sm:$0xff]
    %v73 = vld [vmem:[#allocation2 + $0x90] sm:$0xff]
    %v74 = vld [vmem:[#allocation2 + $0x98] sm:$0xff]
    %v75 = vld [vmem:[#allocation2 + $0xa0] sm:$0xff]
    %v76 = vld [vmem:[#allocation2 + $0xa8] sm:$0xff]
    %v77 = vld [vmem:[#allocation2 + $0xb0] sm:$0xff]
    %v78 = vld [vmem:[#allocation2 + $0xb8] sm:$0xff]
    %v79 = vld [vmem:[#allocation2 + $0xc0] sm:$0xff]
    %v80 = vld [vmem:[#allocation2 + $0xc8] sm:$0xff]
    %v81 = vld [vmem:[#allocation2 + $0xd0] sm:$0xff]
    %v82 = vld [vmem:[#allocation2 + $0xd8] sm:$0xff]
    %v83 = vld [vmem:[#allocation2 + $0xe0] sm:$0xff]
    %v84 = vld [vmem:[#allocation2 + $0xe8] sm:$0xff]
    %v85 = vld [vmem:[#allocation2 + $0xf0] sm:$0xff]
    %v86 = vld [vmem:[#allocation2 + $0xf8] sm:$0xff]
    %v87 = vld [vmem:[#allocation5] sm:$0xff]
    %v88 = vld [vmem:[#allocation5 + $0x8] sm:$0xff]
    %v89 = vld [vmem:[#allocation5 + $0x10] sm:$0xff]
    %v90 = vld [vmem:[#allocation5 + $0x18] sm:$0xff]
    %v91 = vld [vmem:[#allocation5 + $0x20] sm:$0xff]
    %v92 = vld [vmem:[#allocation5 + $0x28] sm:$0xff]
    %v93 = vld [vmem:[#allocation5 + $0x30] sm:$0xff]
    %v94 = vld [vmem:[#allocation5 + $0x38] sm:$0xff]
    %v95 = vld [vmem:[#allocation5 + $0x40] sm:$0xff]
    %v96 = vld [vmem:[#allocation5 + $0x48] sm:$0xff]
    %v97 = vld [vmem:[#allocation5 + $0x50] sm:$0xff]
    %v98 = vld [vmem:[#allocation5 + $0x58] sm:$0xff]
    %v99 = vld [vmem:[#allocation5 + $0x60] sm:$0xff]
    %v100 = vld [vmem:[#allocation5 + $0x68] sm:$0xff]
    %v101 = vld [vmem:[#allocation5 + $0x70] sm:$0xff]
    %v102 = vld [vmem:[#allocation5 + $0x78] sm:$0xff]
    %v103 = vld [vmem:[#allocation5 + $0x80] sm:$0xff]
    %v104 = vld [vmem:[#allocation5 + $0x88] sm:$0xff]
    %v105 = vld [vmem:[#allocation5 + $0x90] sm:$0xff]
    %v106 = vld [vmem:[#allocation5 + $0x98] sm:$0xff]
    %v107 = vld [vmem:[#allocation5 + $0xa0] sm:$0xff]
    %v108 = vld [vmem:[#allocation5 + $0xa8] sm:$0xff]
    %v109 = vld [vmem:[#allocation5 + $0xb0] sm:$0xff]
    %v110 = vld [vmem:[#allocation5 + $0xb8] sm:$0xff]
    %v111 = vld [vmem:[#allocation5 + $0xc0] sm:$0xff]
    %v112 = vld [vmem:[#allocation5 + $0xc8] sm:$0xff]
    %v113 = vld [vmem:[#allocation5 + $0xd0] sm:$0xff]
    %v114 = vld [vmem:[#allocation5 + $0xd8] sm:$0xff]
    %v115 = vld [vmem:[#allocation5 + $0xe0] sm:$0xff]
    %v116 = vld [vmem:[#allocation5 + $0xe8] sm:$0xff]
    %v117 = vld [vmem:[#allocation5 + $0xf0] sm:$0xff]
    %v118 = vld [vmem:[#allocation5 + $0xf8] sm:$0xff]
    %v119 = vld [vmem:[#allocation5 + $0x100] sm:$0xff]
    %v120 = vld [vmem:[#allocation5 + $0x108] sm:$0xff]
    %v121 = vld [vmem:[#allocation5 + $0x110] sm:$0xff]
    %v122 = vld [vmem:[#allocation5 + $0x118] sm:$0xff]
    %v123 = vld [vmem:[#allocation5 + $0x120] sm:$0xff]
    %v124 = vld [vmem:[#allocation5 + $0x128] sm:$0xff]
    %v125 = vld [vmem:[#allocation5 + $0x130] sm:$0xff]
    %v126 = vld [vmem:[#allocation5 + $0x138] sm:$0xff]
    %v127 = vld [vmem:[#allocation5 + $0x140] sm:$0xff]
    %v128 = vld [vmem:[#allocation5 + $0x148] sm:$0xff]
    %v129 = vld [vmem:[#allocation5 + $0x150] sm:$0xff]
    %v130 = vld [vmem:[#allocation5 + $0x158] sm:$0xff]
    %v131 = vld [vmem:[#allocation5 + $0x160] sm:$0xff]
    %v132 = vld [vmem:[#allocation5 + $0x168] sm:$0xff]
    %v133 = vld [vmem:[#allocation5 + $0x170] sm:$0xff]
    %v134 = vld [vmem:[#allocation5 + $0x178] sm:$0xff]
    %v135 = vld [vmem:[#allocation5 + $0x180] sm:$0xff]
    %v136 = vld [vmem:[#allocation5 + $0x188] sm:$0xff]
    %v137 = vld [vmem:[#allocation5 + $0x190] sm:$0xff]
    %v138 = vld [vmem:[#allocation5 + $0x198] sm:$0xff]
    %v139 = vld [vmem:[#allocation5 + $0x1a0] sm:$0xff]
    %v140 = vld [vmem:[#allocation5 + $0x1a8] sm:$0xff]
    %v141 = vld [vmem:[#allocation5 + $0x1b0] sm:$0xff]
    %v142 = vld [vmem:[#allocation5 + $0x1b8] sm:$0xff]
    %v143 = vld [vmem:[#allocation5 + $0x1c0] sm:$0xff]
    %v144 = vld [vmem:[#allocation5 + $0x1c8] sm:$0xff]
    %v145 = vld [vmem:[#allocation5 + $0x1d0] sm:$0xff]
    %v146 = vld [vmem:[#allocation5 + $0x1d8] sm:$0xff]
    %v147 = vld [vmem:[#allocation5 + $0x1e0] sm:$0xff]
    %v148 = vld [vmem:[#allocation5 + $0x1e8] sm:$0xff]
    %v149 = vld [vmem:[#allocation5 + $0x1f0] sm:$0xff]
    %v150 = vld [vmem:[#allocation5 + $0x1f8] sm:$0xff]
    %v151 = vld [vmem:[#allocation5 + $0x200] sm:$0xff]
    %v152 = vld [vmem:[#allocation5 + $0x208] sm:$0xff]
    %v153 = vld [vmem:[#allocation5 + $0x210] sm:$0xff]
    %v154 = vld [vmem:[#allocation5 + $0x218] sm:$0xff]
    %v155 = vld [vmem:[#allocation5 + $0x220] sm:$0xff]
    %v156 = vld [vmem:[#allocation5 + $0x228] sm:$0xff]
    %v157 = vld [vmem:[#allocation5 + $0x230] sm:$0xff]
    %v158 = vld [vmem:[#allocation5 + $0x238] sm:$0xff]
    %v159 = vld [vmem:[#allocation5 + $0x240] sm:$0xff]
    %v160 = vld [vmem:[#allocation5 + $0x248] sm:$0xff]
    %v161 = vld [vmem:[#allocation5 + $0x250] sm:$0xff]
    %v162 = vld [vmem:[#allocation5 + $0x258] sm:$0xff]
    %v163 = vld [vmem:[#allocation5 + $0x260] sm:$0xff]
    %v164 = vld [vmem:[#allocation5 + $0x268] sm:$0xff]
    %v165 = vld [vmem:[#allocation5 + $0x270] sm:$0xff]
    %v166 = vld [vmem:[#allocation5 + $0x278] sm:$0xff]
    %v167 = vld [vmem:[#allocation5 + $0x280] sm:$0xff]
    %v168 = vld [vmem:[#allocation5 + $0x288] sm:$0xff]
    %v169 = vld [vmem:[#allocation5 + $0x290] sm:$0xff]
    %v170 = vld [vmem:[#allocation5 + $0x298] sm:$0xff]
    %v171 = vld [vmem:[#allocation5 + $0x2a0] sm:$0xff]
    %v172 = vld [vmem:[#allocation5 + $0x2a8] sm:$0xff]
    %v173 = vld [vmem:[#allocation5 + $0x2b0] sm:$0xff]
    %v174 = vld [vmem:[#allocation5 + $0x2b8] sm:$0xff]
    %v175 = vld [vmem:[#allocation5 + $0x2c0] sm:$0xff]
    %v176 = vld [vmem:[#allocation5 + $0x2c8] sm:$0xff]
    %v177 = vld [vmem:[#allocation5 + $0x2d0] sm:$0xff]
    %v178 = vld [vmem:[#allocation5 + $0x2d8] sm:$0xff]
    %v179 = vld [vmem:[#allocation5 + $0x2e0] sm:$0xff]
    %v180 = vld [vmem:[#allocation5 + $0x2e8] sm:$0xff]
    %v181 = vld [vmem:[#allocation5 + $0x2f0] sm:$0xff]
    %v182 = vld [vmem:[#allocation5 + $0x2f8] sm:$0xff]
    %v183 = vld [vmem:[#allocation5 + $0x300] sm:$0xff]
    %v184 = vld [vmem:[#allocation5 + $0x308] sm:$0xff]
    %v185 = vld [vmem:[#allocation5 + $0x310] sm:$0xff]
    %v186 = vld [vmem:[#allocation5 + $0x318] sm:$0xff]
    %v187 = vld [vmem:[#allocation5 + $0x320] sm:$0xff]
    %v188 = vld [vmem:[#allocation5 + $0x328] sm:$0xff]
    %v189 = vld [vmem:[#allocation5 + $0x330] sm:$0xff]
    %v190 = vld [vmem:[#allocation5 + $0x338] sm:$0xff]
    %v191 = vld [vmem:[#allocation5 + $0x340] sm:$0xff]
    %v192 = vld [vmem:[#allocation5 + $0x348] sm:$0xff]
    %v193 = vld [vmem:[#allocation5 + $0x350] sm:$0xff]
    %v194 = vld [vmem:[#allocation5 + $0x358] sm:$0xff]
    %v195 = vld [vmem:[#allocation5 + $0x360] sm:$0xff]
    %v196 = vld [vmem:[#allocation5 + $0x368] sm:$0xff]
    %v197 = vld [vmem:[#allocation5 + $0x370] sm:$0xff]
    %v198 = vld [vmem:[#allocation5 + $0x378] sm:$0xff]
    %v199 = vld [vmem:[#allocation5 + $0x380] sm:$0xff]
    %v200 = vld [vmem:[#allocation5 + $0x388] sm:$0xff]
    %v201 = vld [vmem:[#allocation5 + $0x390] sm:$0xff]
    %v202 = vld [vmem:[#allocation5 + $0x398] sm:$0xff]
    %v203 = vld [vmem:[#allocation5 + $0x3a0] sm:$0xff]
    %v204 = vld [vmem:[#allocation5 + $0x3a8] sm:$0xff]
    %v205 = vld [vmem:[#allocation5 + $0x3b0] sm:$0xff]
    %v206 = vld [vmem:[#allocation5 + $0x3b8] sm:$0xff]
    %v207 = vld [vmem:[#allocation5 + $0x3c0] sm:$0xff]
    %v208 = vld [vmem:[#allocation5 + $0x3c8] sm:$0xff]
    %v209 = vld [vmem:[#allocation5 + $0x3d0] sm:$0xff]
    %v210 = vld [vmem:[#allocation5 + $0x3d8] sm:$0xff]
    %v211 = vld [vmem:[#allocation5 + $0x3e0] sm:$0xff]
    %v212 = vld [vmem:[#allocation5 + $0x3e8] sm:$0xff]
    %v213 = vld [vmem:[#allocation5 + $0x3f0] sm:$0xff]
    %v214 = vld [vmem:[#allocation5 + $0x3f8] sm:$0xff]
    %v215 = vld [vmem:[#allocation5 + $0x400] sm:$0xff]
    %v216 = vld [vmem:[#allocation5 + $0x408] sm:$0xff]
    %v217 = vld [vmem:[#allocation5 + $0x410] sm:$0xff]
    %v218 = vld [vmem:[#allocation5 + $0x418] sm:$0xff]
    %v219 = vld [vmem:[#allocation5 + $0x420] sm:$0xff]
    %v220 = vld [vmem:[#allocation5 + $0x428] sm:$0xff]
    %v221 = vld [vmem:[#allocation5 + $0x430] sm:$0xff]
    %v222 = vld [vmem:[#allocation5 + $0x438] sm:$0xff]
    %v223 = vld [vmem:[#allocation5 + $0x440] sm:$0xff]
    %v224 = vld [vmem:[#allocation5 + $0x448] sm:$0xff]
    %v225 = vld [vmem:[#allocation5 + $0x450] sm:$0xff]
    %v226 = vld [vmem:[#allocation5 + $0x458] sm:$0xff]
    %v227 = vld [vmem:[#allocation5 + $0x460] sm:$0xff]
    %v228 = vld [vmem:[#allocation5 + $0x468] sm:$0xff]
    %v229 = vld [vmem:[#allocation5 + $0x470] sm:$0xff]
    %v230 = vld [vmem:[#allocation5 + $0x478] sm:$0xff]
    %v231 = vld [vmem:[#allocation5 + $0x480] sm:$0xff]
    %v232 = vld [vmem:[#allocation5 + $0x488] sm:$0xff]
    %v233 = vld [vmem:[#allocation5 + $0x490] sm:$0xff]
    %v234 = vld [vmem:[#allocation5 + $0x498] sm:$0xff]
    %v235 = vld [vmem:[#allocation5 + $0x4a0] sm:$0xff]
    %v236 = vld [vmem:[#allocation5 + $0x4a8] sm:$0xff]
    %v237 = vld [vmem:[#allocation5 + $0x4b0] sm:$0xff]
    %v238 = vld [vmem:[#allocation5 + $0x4b8] sm:$0xff]
    %v239 = vld [vmem:[#allocation5 + $0x4c0] sm:$0xff]
    %v240 = vld [vmem:[#allocation5 + $0x4c8] sm:$0xff]
    %v241 = vld [vmem:[#allocation5 + $0x4d0] sm:$0xff]
    %v242 = vld [vmem:[#allocation5 + $0x4d8] sm:$0xff]
    %v243 = vld [vmem:[#allocation5 + $0x4e0] sm:$0xff]
    %v244 = vld [vmem:[#allocation5 + $0x4e8] sm:$0xff]
    %v245 = vld [vmem:[#allocation5 + $0x4f0] sm:$0xff]
    %v246 = vld [vmem:[#allocation5 + $0x4f8] sm:$0xff]
    %v247 = vld [vmem:[#allocation5 + $0x500] sm:$0xff]
    %v248 = vld [vmem:[#allocation5 + $0x508] sm:$0xff]
    %v249 = vld [vmem:[#allocation5 + $0x510] sm:$0xff]
    %v250 = vld [vmem:[#allocation5 + $0x518] sm:$0xff]
    %v251 = vld [vmem:[#allocation5 + $0x520] sm:$0xff]
    %v252 = vld [vmem:[#allocation5 + $0x528] sm:$0xff]
    %v253 = vld [vmem:[#allocation5 + $0x530] sm:$0xff]
    %v254 = vld [vmem:[#allocation5 + $0x538] sm:$0xff]
    %v255 = vld [vmem:[#allocation5 + $0x540] sm:$0xff]
    %v256 = vld [vmem:[#allocation5 + $0x548] sm:$0xff]
    %v257 = vld [vmem:[#allocation5 + $0x550] sm:$0xff]
    %v258 = vld [vmem:[#allocation5 + $0x558] sm:$0xff]
    %v259 = vld [vmem:[#allocation5 + $0x560] sm:$0xff]
    %v260 = vld [vmem:[#allocation5 + $0x568] sm:$0xff]
    %v261 = vld [vmem:[#allocation5 + $0x570] sm:$0xff]
    %v262 = vld [vmem:[#allocation5 + $0x578] sm:$0xff]
    %v263 = vld [vmem:[#allocation5 + $0x580] sm:$0xff]
    %v264 = vld [vmem:[#allocation5 + $0x588] sm:$0xff]
    %v265 = vld [vmem:[#allocation5 + $0x590] sm:$0xff]
    %v266 = vld [vmem:[#allocation5 + $0x598] sm:$0xff]
    %v267 = vld [vmem:[#allocation5 + $0x5a0] sm:$0xff]
    %v268 = vld [vmem:[#allocation5 + $0x5a8] sm:$0xff]
    %v269 = vld [vmem:[#allocation5 + $0x5b0] sm:$0xff]
    %v270 = vld [vmem:[#allocation5 + $0x5b8] sm:$0xff]
    %v271 = vld [vmem:[#allocation5 + $0x5c0] sm:$0xff]
    %v272 = vld [vmem:[#allocation5 + $0x5c8] sm:$0xff]
    %v273 = vld [vmem:[#allocation5 + $0x5d0] sm:$0xff]
    %v274 = vld [vmem:[#allocation5 + $0x5d8] sm:$0xff]
    %v275 = vld [vmem:[#allocation5 + $0x5e0] sm:$0xff]
    %v276 = vld [vmem:[#allocation5 + $0x5e8] sm:$0xff]
    %v277 = vld [vmem:[#allocation5 + $0x5f0] sm:$0xff]
    %v278 = vld [vmem:[#allocation5 + $0x5f8] sm:$0xff]
    %v279 = vld [vmem:[#allocation5 + $0x600] sm:$0xff]
    %v280 = vld [vmem:[#allocation5 + $0x608] sm:$0xff]
    %v281 = vld [vmem:[#allocation5 + $0x610] sm:$0xff]
    %v282 = vld [vmem:[#allocation5 + $0x618] sm:$0xff]
    %v283 = vld [vmem:[#allocation5 + $0x620] sm:$0xff]
    %v284 = vld [vmem:[#allocation5 + $0x628] sm:$0xff]
    %v285 = vld [vmem:[#allocation5 + $0x630] sm:$0xff]
    %v286 = vld [vmem:[#allocation5 + $0x638] sm:$0xff]
    %v287 = vld [vmem:[#allocation5 + $0x640] sm:$0xff]
    %v288 = vld [vmem:[#allocation5 + $0x648] sm:$0xff]
    %v289 = vld [vmem:[#allocation5 + $0x650] sm:$0xff]
    %v290 = vld [vmem:[#allocation5 + $0x658] sm:$0xff]
    %v291 = vld [vmem:[#allocation5 + $0x660] sm:$0xff]
    %v292 = vld [vmem:[#allocation5 + $0x668] sm:$0xff]
    %v293 = vld [vmem:[#allocation5 + $0x670] sm:$0xff]
    %v294 = vld [vmem:[#allocation5 + $0x678] sm:$0xff]
    %v295 = vld [vmem:[#allocation5 + $0x680] sm:$0xff]
    %v296 = vld [vmem:[#allocation5 + $0x688] sm:$0xff]
    %v297 = vld [vmem:[#allocation5 + $0x690] sm:$0xff]
    %v298 = vld [vmem:[#allocation5 + $0x698] sm:$0xff]
    %v299 = vld [vmem:[#allocation5 + $0x6a0] sm:$0xff]
    %v300 = vld [vmem:[#allocation5 + $0x6a8] sm:$0xff]
    %v301 = vld [vmem:[#allocation5 + $0x6b0] sm:$0xff]
    %v302 = vld [vmem:[#allocation5 + $0x6b8] sm:$0xff]
    %v303 = vld [vmem:[#allocation5 + $0x6c0] sm:$0xff]
    %v304 = vld [vmem:[#allocation5 + $0x6c8] sm:$0xff]
    %v305 = vld [vmem:[#allocation5 + $0x6d0] sm:$0xff]
    %v306 = vld [vmem:[#allocation5 + $0x6d8] sm:$0xff]
    %v307 = vld [vmem:[#allocation5 + $0x6e0] sm:$0xff]
    %v308 = vld [vmem:[#allocation5 + $0x6e8] sm:$0xff]
    %v309 = vld [vmem:[#allocation5 + $0x6f0] sm:$0xff]
    %v310 = vld [vmem:[#allocation5 + $0x6f8] sm:$0xff]
    %v311 = vld [vmem:[#allocation5 + $0x700] sm:$0xff]
    %v312 = vld [vmem:[#allocation5 + $0x708] sm:$0xff]
    %v313 = vld [vmem:[#allocation5 + $0x710] sm:$0xff]
    %v314 = vld [vmem:[#allocation5 + $0x718] sm:$0xff]
    %v315 = vld [vmem:[#allocation5 + $0x720] sm:$0xff]
    %v316 = vld [vmem:[#allocation5 + $0x728] sm:$0xff]
    %v317 = vld [vmem:[#allocation5 + $0x730] sm:$0xff]
    %v318 = vld [vmem:[#allocation5 + $0x738] sm:$0xff]
    %v319 = vld [vmem:[#allocation5 + $0x740] sm:$0xff]
    %v320 = vld [vmem:[#allocation5 + $0x748] sm:$0xff]
    %v321 = vld [vmem:[#allocation5 + $0x750] sm:$0xff]
    %v322 = vld [vmem:[#allocation5 + $0x758] sm:$0xff]
    %v323 = vld [vmem:[#allocation5 + $0x760] sm:$0xff]
    %v324 = vld [vmem:[#allocation5 + $0x768] sm:$0xff]
    %v325 = vld [vmem:[#allocation5 + $0x770] sm:$0xff]
    %v326 = vld [vmem:[#allocation5 + $0x778] sm:$0xff]
    %v327 = vld [vmem:[#allocation5 + $0x780] sm:$0xff]
    %v328 = vld [vmem:[#allocation5 + $0x788] sm:$0xff]
    %v329 = vld [vmem:[#allocation5 + $0x790] sm:$0xff]
    %v330 = vld [vmem:[#allocation5 + $0x798] sm:$0xff]
    %v331 = vld [vmem:[#allocation5 + $0x7a0] sm:$0xff]
    %v332 = vld [vmem:[#allocation5 + $0x7a8] sm:$0xff]
    %v333 = vld [vmem:[#allocation5 + $0x7b0] sm:$0xff]
    %v334 = vld [vmem:[#allocation5 + $0x7b8] sm:$0xff]
    %v335 = vld [vmem:[#allocation5 + $0x7c0] sm:$0xff]
    %v336 = vld [vmem:[#allocation5 + $0x7c8] sm:$0xff]
    %v337 = vld [vmem:[#allocation5 + $0x7d0] sm:$0xff]
    %v338 = vld [vmem:[#allocation5 + $0x7d8] sm:$0xff]
    %v339 = vld [vmem:[#allocation5 + $0x7e0] sm:$0xff]
    %v340 = vld [vmem:[#allocation5 + $0x7e8] sm:$0xff]
    %v341 = vld [vmem:[#allocation5 + $0x7f0] sm:$0xff]
    %v342 = vld [vmem:[#allocation5 + $0x7f8] sm:$0xff]
    %v343 = vld [vmem:[#allocation5 + $0x800] sm:$0xff]
    %v344 = vld [vmem:[#allocation5 + $0x808] sm:$0xff]
    %v345 = vld [vmem:[#allocation5 + $0x810] sm:$0xff]
    %v346 = vld [vmem:[#allocation5 + $0x818] sm:$0xff]
    %v347 = vld [vmem:[#allocation5 + $0x820] sm:$0xff]
    %v348 = vld [vmem:[#allocation5 + $0x828] sm:$0xff]
    %v349 = vld [vmem:[#allocation5 + $0x830] sm:$0xff]
    %v350 = vld [vmem:[#allocation5 + $0x838] sm:$0xff]
    %v351 = vld [vmem:[#allocation5 + $0x840] sm:$0xff]
    %v352 = vld [vmem:[#allocation5 + $0x848] sm:$0xff]
    %v353 = vld [vmem:[#allocation5 + $0x850] sm:$0xff]
    %v354 = vld [vmem:[#allocation5 + $0x858] sm:$0xff]
    %v355 = vld [vmem:[#allocation5 + $0x860] sm:$0xff]
    %v356 = vld [vmem:[#allocation5 + $0x868] sm:$0xff]
    %v357 = vld [vmem:[#allocation5 + $0x870] sm:$0xff]
    %v358 = vld [vmem:[#allocation5 + $0x878] sm:$0xff]
    %v359 = vld [vmem:[#allocation5 + $0x880] sm:$0xff]
    %v360 = vld [vmem:[#allocation5 + $0x888] sm:$0xff]
    %v361 = vld [vmem:[#allocation5 + $0x890] sm:$0xff]
    %v362 = vld [vmem:[#allocation5 + $0x898] sm:$0xff]
    %v363 = vld [vmem:[#allocation5 + $0x8a0] sm:$0xff]
    %v364 = vld [vmem:[#allocation5 + $0x8a8] sm:$0xff]
    %v365 = vld [vmem:[#allocation5 + $0x8b0] sm:$0xff]
    %v366 = vld [vmem:[#allocation5 + $0x8b8] sm:$0xff]
    %v367 = vld [vmem:[#allocation5 + $0x8c0] sm:$0xff]
    %v368 = vld [vmem:[#allocation5 + $0x8c8] sm:$0xff]
    %v369 = vld [vmem:[#allocation5 + $0x8d0] sm:$0xff]
    %v370 = vld [vmem:[#allocation5 + $0x8d8] sm:$0xff]
    %v371 = vld [vmem:[#allocation5 + $0x8e0] sm:$0xff]
    %v372 = vld [vmem:[#allocation5 + $0x8e8] sm:$0xff]
    %v373 = vld [vmem:[#allocation5 + $0x8f0] sm:$0xff]
    %v374 = vld [vmem:[#allocation5 + $0x8f8] sm:$0xff]
    %v375 = vld [vmem:[#allocation5 + $0x900] sm:$0xff]
    %v376 = vld [vmem:[#allocation5 + $0x908] sm:$0xff]
    %v377 = vld [vmem:[#allocation5 + $0x910] sm:$0xff]
    %v378 = vld [vmem:[#allocation5 + $0x918] sm:$0xff]
    %v379 = vld [vmem:[#allocation5 + $0x920] sm:$0xff]
    %v380 = vld [vmem:[#allocation5 + $0x928] sm:$0xff]
    %v381 = vld [vmem:[#allocation5 + $0x930] sm:$0xff]
    %v382 = vld [vmem:[#allocation5 + $0x938] sm:$0xff]
    %v383 = vld [vmem:[#allocation5 + $0x940] sm:$0xff]
    %v384 = vld [vmem:[#allocation5 + $0x948] sm:$0xff]
    %v385 = vld [vmem:[#allocation5 + $0x950] sm:$0xff]
    %v386 = vld [vmem:[#allocation5 + $0x958] sm:$0xff]
    %v387 = vld [vmem:[#allocation5 + $0x960] sm:$0xff]
    %v388 = vld [vmem:[#allocation5 + $0x968] sm:$0xff]
    %v389 = vld [vmem:[#allocation5 + $0x970] sm:$0xff]
    %v390 = vld [vmem:[#allocation5 + $0x978] sm:$0xff]
    %v391 = vld [vmem:[#allocation5 + $0x980] sm:$0xff]
    %v392 = vld [vmem:[#allocation5 + $0x988] sm:$0xff]
    %v393 = vld [vmem:[#allocation5 + $0x990] sm:$0xff]
    %v394 = vld [vmem:[#allocation5 + $0x998] sm:$0xff]
    %v395 = vld [vmem:[#allocation5 + $0x9a0] sm:$0xff]
    %v396 = vld [vmem:[#allocation5 + $0x9a8] sm:$0xff]
    %v397 = vld [vmem:[#allocation5 + $0x9b0] sm:$0xff]
    %v398 = vld [vmem:[#allocation5 + $0x9b8] sm:$0xff]
    %v399 = vld [vmem:[#allocation5 + $0x9c0] sm:$0xff]
    %v400 = vld [vmem:[#allocation5 + $0x9c8] sm:$0xff]
    %v401 = vld [vmem:[#allocation5 + $0x9d0] sm:$0xff]
    %v402 = vld [vmem:[#allocation5 + $0x9d8] sm:$0xff]
    %v403 = vld [vmem:[#allocation5 + $0x9e0] sm:$0xff]
    %v404 = vld [vmem:[#allocation5 + $0x9e8] sm:$0xff]
    %v405 = vld [vmem:[#allocation5 + $0x9f0] sm:$0xff]
    %v406 = vld [vmem:[#allocation5 + $0x9f8] sm:$0xff]
    %v407 = vld [vmem:[#allocation5 + $0xa00] sm:$0xff]
    %v408 = vld [vmem:[#allocation5 + $0xa08] sm:$0xff]
    %v409 = vld [vmem:[#allocation5 + $0xa10] sm:$0xff]
    %v410 = vld [vmem:[#allocation5 + $0xa18] sm:$0xff]
    %v411 = vld [vmem:[#allocation5 + $0xa20] sm:$0xff]
    %v412 = vld [vmem:[#allocation5 + $0xa28] sm:$0xff]
    %v413 = vld [vmem:[#allocation5 + $0xa30] sm:$0xff]
    %v414 = vld [vmem:[#allocation5 + $0xa38] sm:$0xff]
    %v415 = vld [vmem:[#allocation5 + $0xa40] sm:$0xff]
    %v416 = vld [vmem:[#allocation5 + $0xa48] sm:$0xff]
    %v417 = vld [vmem:[#allocation5 + $0xa50] sm:$0xff]
    %v418 = vld [vmem:[#allocation5 + $0xa58] sm:$0xff]
    %v419 = vld [vmem:[#allocation5 + $0xa60] sm:$0xff]
    %v420 = vld [vmem:[#allocation5 + $0xa68] sm:$0xff]
    %v421 = vld [vmem:[#allocation5 + $0xa70] sm:$0xff]
    %v422 = vld [vmem:[#allocation5 + $0xa78] sm:$0xff]
    %v423 = vld [vmem:[#allocation5 + $0xa80] sm:$0xff]
    %v424 = vld [vmem:[#allocation5 + $0xa88] sm:$0xff]
    %v425 = vld [vmem:[#allocation5 + $0xa90] sm:$0xff]
    %v426 = vld [vmem:[#allocation5 + $0xa98] sm:$0xff]
    %v427 = vld [vmem:[#allocation5 + $0xaa0] sm:$0xff]
    %v428 = vld [vmem:[#allocation5 + $0xaa8] sm:$0xff]
    %v429 = vld [vmem:[#allocation5 + $0xab0] sm:$0xff]
    %v430 = vld [vmem:[#allocation5 + $0xab8] sm:$0xff]
    %v431 = vld [vmem:[#allocation5 + $0xac0] sm:$0xff]
    %v432 = vld [vmem:[#allocation5 + $0xac8] sm:$0xff]
    %v433 = vld [vmem:[#allocation5 + $0xad0] sm:$0xff]
    %v434 = vld [vmem:[#allocation5 + $0xad8] sm:$0xff]
    %v435 = vld [vmem:[#allocation5 + $0xae0] sm:$0xff]
    %v436 = vld [vmem:[#allocation5 + $0xae8] sm:$0xff]
    %v437 = vld [vmem:[#allocation5 + $0xaf0] sm:$0xff]
    %v438 = vld [vmem:[#allocation5 + $0xaf8] sm:$0xff]
    %v439 = vld [vmem:[#allocation5 + $0xb00] sm:$0xff]
    %v440 = vld [vmem:[#allocation5 + $0xb08] sm:$0xff]
    %v441 = vld [vmem:[#allocation5 + $0xb10] sm:$0xff]
    %v442 = vld [vmem:[#allocation5 + $0xb18] sm:$0xff]
    %v443 = vld [vmem:[#allocation5 + $0xb20] sm:$0xff]
    %v444 = vld [vmem:[#allocation5 + $0xb28] sm:$0xff]
    %v445 = vld [vmem:[#allocation5 + $0xb30] sm:$0xff]
    %v446 = vld [vmem:[#allocation5 + $0xb38] sm:$0xff]
    %v447 = vld [vmem:[#allocation5 + $0xb40] sm:$0xff]
    %v448 = vld [vmem:[#allocation5 + $0xb48] sm:$0xff]
    %v449 = vld [vmem:[#allocation5 + $0xb50] sm:$0xff]
    %v450 = vld [vmem:[#allocation5 + $0xb58] sm:$0xff]
    %v451 = vld [vmem:[#allocation5 + $0xb60] sm:$0xff]
    %v452 = vld [vmem:[#allocation5 + $0xb68] sm:$0xff]
    %v453 = vld [vmem:[#allocation5 + $0xb70] sm:$0xff]
    %v454 = vld [vmem:[#allocation5 + $0xb78] sm:$0xff]
    %v455 = vld [vmem:[#allocation5 + $0xb80] sm:$0xff]
    %v456 = vld [vmem:[#allocation5 + $0xb88] sm:$0xff]
    %v457 = vld [vmem:[#allocation5 + $0xb90] sm:$0xff]
    %v458 = vld [vmem:[#allocation5 + $0xb98] sm:$0xff]
    %v459 = vld [vmem:[#allocation5 + $0xba0] sm:$0xff]
    %v460 = vld [vmem:[#allocation5 + $0xba8] sm:$0xff]
    %v461 = vld [vmem:[#allocation5 + $0xbb0] sm:$0xff]
    %v462 = vld [vmem:[#allocation5 + $0xbb8] sm:$0xff]
    %v463 = vld [vmem:[#allocation5 + $0xbc0] sm:$0xff]
    %v464 = vld [vmem:[#allocation5 + $0xbc8] sm:$0xff]
    %v465 = vld [vmem:[#allocation5 + $0xbd0] sm:$0xff]
    %v466 = vld [vmem:[#allocation5 + $0xbd8] sm:$0xff]
    %v467 = vld [vmem:[#allocation5 + $0xbe0] sm:$0xff]
    %v468 = vld [vmem:[#allocation5 + $0xbe8] sm:$0xff]
    %v469 = vld [vmem:[#allocation5 + $0xbf0] sm:$0xff]
    %v470 = vld [vmem:[#allocation5 + $0xbf8] sm:$0xff]
    %v471 = vld [vmem:[#allocation5 + $0xc00] sm:$0xff]
    %v472 = vld [vmem:[#allocation5 + $0xc08] sm:$0xff]
    %v473 = vld [vmem:[#allocation5 + $0xc10] sm:$0xff]
    %v474 = vld [vmem:[#allocation5 + $0xc18] sm:$0xff]
    %v475 = vld [vmem:[#allocation5 + $0xc20] sm:$0xff]
    %v476 = vld [vmem:[#allocation5 + $0xc28] sm:$0xff]
    %v477 = vld [vmem:[#allocation5 + $0xc30] sm:$0xff]
    %v478 = vld [vmem:[#allocation5 + $0xc38] sm:$0xff]
    %v479 = vld [vmem:[#allocation5 + $0xc40] sm:$0xff]
    %v480 = vld [vmem:[#allocation5 + $0xc48] sm:$0xff]
    %v481 = vld [vmem:[#allocation5 + $0xc50] sm:$0xff]
    %v482 = vld [vmem:[#allocation5 + $0xc58] sm:$0xff]
    %v483 = vld [vmem:[#allocation5 + $0xc60] sm:$0xff]
    %v484 = vld [vmem:[#allocation5 + $0xc68] sm:$0xff]
    %v485 = vld [vmem:[#allocation5 + $0xc70] sm:$0xff]
    %v486 = vld [vmem:[#allocation5 + $0xc78] sm:$0xff]
    %v487 = vld [vmem:[#allocation5 + $0xc80] sm:$0xff]
    %v488 = vld [vmem:[#allocation5 + $0xc88] sm:$0xff]
    %v489 = vld [vmem:[#allocation5 + $0xc90] sm:$0xff]
    %v490 = vld [vmem:[#allocation5 + $0xc98] sm:$0xff]
    %v491 = vld [vmem:[#allocation5 + $0xca0] sm:$0xff]
    %v492 = vld [vmem:[#allocation5 + $0xca8] sm:$0xff]
    %v493 = vld [vmem:[#allocation5 + $0xcb0] sm:$0xff]
    %v494 = vld [vmem:[#allocation5 + $0xcb8] sm:$0xff]
    %v495 = vld [vmem:[#allocation5 + $0xcc0] sm:$0xff]
    %v496 = vld [vmem:[#allocation5 + $0xcc8] sm:$0xff]
    %v497 = vld [vmem:[#allocation5 + $0xcd0] sm:$0xff]
    %v498 = vld [vmem:[#allocation5 + $0xcd8] sm:$0xff]
    %v499 = vld [vmem:[#allocation5 + $0xce0] sm:$0xff]
    %v500 = vld [vmem:[#allocation5 + $0xce8] sm:$0xff]
    %v501 = vld [vmem:[#allocation5 + $0xcf0] sm:$0xff]
    %v502 = vld [vmem:[#allocation5 + $0xcf8] sm:$0xff]
    %v503 = vld [vmem:[#allocation5 + $0xd00] sm:$0xff]
    %v504 = vld [vmem:[#allocation5 + $0xd08] sm:$0xff]
    %v505 = vld [vmem:[#allocation5 + $0xd10] sm:$0xff]
    %v506 = vld [vmem:[#allocation5 + $0xd18] sm:$0xff]
    %v507 = vld [vmem:[#allocation5 + $0xd20] sm:$0xff]
    %v508 = vld [vmem:[#allocation5 + $0xd28] sm:$0xff]
    %v509 = vld [vmem:[#allocation5 + $0xd30] sm:$0xff]
    %v510 = vld [vmem:[#allocation5 + $0xd38] sm:$0xff]
    %v511 = vld [vmem:[#allocation5 + $0xd40] sm:$0xff]
    %v512 = vld [vmem:[#allocation5 + $0xd48] sm:$0xff]
    %v513 = vld [vmem:[#allocation5 + $0xd50] sm:$0xff]
    %v514 = vld [vmem:[#allocation5 + $0xd58] sm:$0xff]
    %v515 = vld [vmem:[#allocation5 + $0xd60] sm:$0xff]
    %v516 = vld [vmem:[#allocation5 + $0xd68] sm:$0xff]
    %v517 = vld [vmem:[#allocation5 + $0xd70] sm:$0xff]
    %v518 = vld [vmem:[#allocation5 + $0xd78] sm:$0xff]
    %v519 = vld [vmem:[#allocation5 + $0xd80] sm:$0xff]
    %v520 = vld [vmem:[#allocation5 + $0xd88] sm:$0xff]
    %v521 = vld [vmem:[#allocation5 + $0xd90] sm:$0xff]
    %v522 = vld [vmem:[#allocation5 + $0xd98] sm:$0xff]
    %v523 = vld [vmem:[#allocation5 + $0xda0] sm:$0xff]
    %v524 = vld [vmem:[#allocation5 + $0xda8] sm:$0xff]
    %v525 = vld [vmem:[#allocation5 + $0xdb0] sm:$0xff]
    %v526 = vld [vmem:[#allocation5 + $0xdb8] sm:$0xff]
    %v527 = vld [vmem:[#allocation5 + $0xdc0] sm:$0xff]
    %v528 = vld [vmem:[#allocation5 + $0xdc8] sm:$0xff]
    %v529 = vld [vmem:[#allocation5 + $0xdd0] sm:$0xff]
    %v530 = vld [vmem:[#allocation5 + $0xdd8] sm:$0xff]
    %v531 = vld [vmem:[#allocation5 + $0xde0] sm:$0xff]
    %v532 = vld [vmem:[#allocation5 + $0xde8] sm:$0xff]
    %v533 = vld [vmem:[#allocation5 + $0xdf0] sm:$0xff]
    %v534 = vld [vmem:[#allocation5 + $0xdf8] sm:$0xff]
    %v535 = vld [vmem:[#allocation5 + $0xe00] sm:$0x33]
    %v536 = vld [vmem:[#allocation5 + $0xe08] sm:$0x33]
    %v537 = vld [vmem:[#allocation5 + $0xe10] sm:$0x33]
    %v538 = vld [vmem:[#allocation5 + $0xe18] sm:$0x33]
    %v539 = vld [vmem:[#allocation7] sm:$0xff]
    %v541 = vlaneseq
    %v542 = vshrl.u32 %v541, 7
    %v543 = vsub.s32 0, %v542
    %v544 = vrot.slane %v539, %v543
    %v545 = vlaneseq
    %v546 = vshrl.u32 %v545, 7
    %v547 = vsub.s32 1, %v546
    %v548 = vrot.slane %v539, %v547
    %v549 = vlaneseq
    %v550 = vshrl.u32 %v549, 7
    %v551 = vsub.s32 2, %v550
    %v552 = vrot.slane %v539, %v551
    %v553 = vlaneseq
    %v554 = vshrl.u32 %v553, 7
    %v555 = vsub.s32 3, %v554
    %v556 = vrot.slane %v539, %v555
    %v557 = vlaneseq
    %v558 = vshrl.u32 %v557, 7
    %v559 = vsub.s32 4, %v558
    %v560 = vrot.slane %v539, %v559
    %v561 = vlaneseq
    %v562 = vshrl.u32 %v561, 7
    %v563 = vsub.s32 5, %v562
    %v564 = vrot.slane %v539, %v563
    %v565 = vlaneseq
    %v566 = vshrl.u32 %v565, 7
    %v567 = vsub.s32 6, %v566
    %v568 = vrot.slane %v539, %v567
    %v569 = vlaneseq
    %v570 = vshrl.u32 %v569, 7
    %v571 = vsub.s32 7, %v570
    %v572 = vrot.slane %v539, %v571
    %v613 = vunpack.c.l.b16 %v55
    %v614 = vunpack.c.h.b16 %v55
    %v615 = vunpack.c.l.b16 %v56
    %v616 = vunpack.c.h.b16 %v56
    %v617 = vunpack.c.l.b16 %v57
    %v618 = vunpack.c.h.b16 %v57
    %v619 = vunpack.c.l.b16 %v58
    %v620 = vunpack.c.h.b16 %v58
    %v621 = vunpack.c.l.b16 %v59
    %v622 = vunpack.c.h.b16 %v59
    %v623 = vunpack.c.l.b16 %v60
    %v624 = vunpack.c.h.b16 %v60
    %v625 = vunpack.c.l.b16 %v61
    %v626 = vunpack.c.h.b16 %v61
    %v627 = vunpack.c.l.b16 %v62
    %v628 = vunpack.c.h.b16 %v62
    %v629 = vunpack.c.l.b16 %v63
    %v630 = vunpack.c.h.b16 %v63
    %v631 = vunpack.c.l.b16 %v64
    %v632 = vunpack.c.h.b16 %v64
    %v633 = vunpack.c.l.b16 %v65
    %v634 = vunpack.c.h.b16 %v65
    %v635 = vunpack.c.l.b16 %v66
    %v636 = vunpack.c.h.b16 %v66
    %v637 = vunpack.c.l.b16 %v67
    %v638 = vunpack.c.h.b16 %v67
    %v639 = vunpack.c.l.b16 %v68
    %v640 = vunpack.c.h.b16 %v68
    %v641 = vunpack.c.l.b16 %v69
    %v642 = vunpack.c.h.b16 %v69
    %v643 = vunpack.c.l.b16 %v70
    %v644 = vunpack.c.h.b16 %v70
    %v645 = vunpack.c.l.b16 %v71
    %v646 = vunpack.c.h.b16 %v71
    %v647 = vunpack.c.l.b16 %v72
    %v648 = vunpack.c.h.b16 %v72
    %v649 = vunpack.c.l.b16 %v73
    %v650 = vunpack.c.h.b16 %v73
    %v651 = vunpack.c.l.b16 %v74
    %v652 = vunpack.c.h.b16 %v74
    %v653 = vunpack.c.l.b16 %v75
    %v654 = vunpack.c.h.b16 %v75
    %v655 = vunpack.c.l.b16 %v76
    %v656 = vunpack.c.h.b16 %v76
    %v657 = vunpack.c.l.b16 %v77
    %v658 = vunpack.c.h.b16 %v77
    %v659 = vunpack.c.l.b16 %v78
    %v660 = vunpack.c.h.b16 %v78
    %v661 = vunpack.c.l.b16 %v79
    %v662 = vunpack.c.h.b16 %v79
    %v663 = vunpack.c.l.b16 %v80
    %v664 = vunpack.c.h.b16 %v80
    %v665 = vunpack.c.l.b16 %v81
    %v666 = vunpack.c.h.b16 %v81
    %v667 = vunpack.c.l.b16 %v82
    %v668 = vunpack.c.h.b16 %v82
    %v669 = vunpack.c.l.b16 %v83
    %v670 = vunpack.c.h.b16 %v83
    %v671 = vunpack.c.l.b16 %v84
    %v672 = vunpack.c.h.b16 %v84
    %v673 = vunpack.c.l.b16 %v85
    %v674 = vunpack.c.h.b16 %v85
    %v675 = vunpack.c.l.b16 %v86
    %v676 = vunpack.c.h.b16 %v86
    %v677 = vpack.c.b16 %v621, %v613
    %v678 = vpack.c.b16 %v622, %v614
    %v679 = vpack.c.b16 %v623, %v615
    %v680 = vpack.c.b16 %v624, %v616
    %v681 = vpack.c.b16 %v625, %v617
    %v682 = vpack.c.b16 %v626, %v618
    %v683 = vpack.c.b16 %v627, %v619
    %v684 = vpack.c.b16 %v628, %v620
    %v685 = vpack.c.b16 %v637, %v629
    %v686 = vpack.c.b16 %v638, %v630
    %v687 = vpack.c.b16 %v639, %v631
    %v688 = vpack.c.b16 %v640, %v632
    %v689 = vpack.c.b16 %v641, %v633
    %v690 = vpack.c.b16 %v642, %v634
    %v691 = vpack.c.b16 %v643, %v635
    %v692 = vpack.c.b16 %v644, %v636
    %v693 = vpack.c.b16 %v653, %v645
    %v694 = vpack.c.b16 %v654, %v646
    %v695 = vpack.c.b16 %v655, %v647
    %v696 = vpack.c.b16 %v656, %v648
    %v697 = vpack.c.b16 %v657, %v649
    %v698 = vpack.c.b16 %v658, %v650
    %v699 = vpack.c.b16 %v659, %v651
    %v700 = vpack.c.b16 %v660, %v652
    %v701 = vpack.c.b16 %v669, %v661
    %v702 = vpack.c.b16 %v670, %v662
    %v703 = vpack.c.b16 %v671, %v663
    %v704 = vpack.c.b16 %v672, %v664
    %v705 = vpack.c.b16 %v673, %v665
    %v706 = vpack.c.b16 %v674, %v666
    %v707 = vpack.c.b16 %v675, %v667
    %v708 = vpack.c.b16 %v676, %v668
    %v1189 = vunpack.c.l.b16 %v87
    %v1190 = vunpack.c.h.b16 %v87
    %v1191 = vunpack.c.l.b16 %v88
    %v1192 = vunpack.c.h.b16 %v88
    %v1193 = vunpack.c.l.b16 %v89
    %v1194 = vunpack.c.h.b16 %v89
    %v1195 = vunpack.c.l.b16 %v90
    %v1196 = vunpack.c.h.b16 %v90
    %v1197 = vunpack.c.l.b16 %v91
    %v1198 = vunpack.c.h.b16 %v91
    %v1199 = vunpack.c.l.b16 %v92
    %v1200 = vunpack.c.h.b16 %v92
    %v1201 = vunpack.c.l.b16 %v93
    %v1202 = vunpack.c.h.b16 %v93
    %v1203 = vunpack.c.l.b16 %v94
    %v1204 = vunpack.c.h.b16 %v94
    %v1205 = vunpack.c.l.b16 %v95
    %v1206 = vunpack.c.h.b16 %v95
    %v1207 = vunpack.c.l.b16 %v96
    %v1208 = vunpack.c.h.b16 %v96
    %v1209 = vunpack.c.l.b16 %v97
    %v1210 = vunpack.c.h.b16 %v97
    %v1211 = vunpack.c.l.b16 %v98
    %v1212 = vunpack.c.h.b16 %v98
    %v1213 = vunpack.c.l.b16 %v99
    %v1214 = vunpack.c.h.b16 %v99
    %v1215 = vunpack.c.l.b16 %v100
    %v1216 = vunpack.c.h.b16 %v100
    %v1217 = vunpack.c.l.b16 %v101
    %v1218 = vunpack.c.h.b16 %v101
    %v1219 = vunpack.c.l.b16 %v102
    %v1220 = vunpack.c.h.b16 %v102
    %v1221 = vunpack.c.l.b16 %v103
    %v1222 = vunpack.c.h.b16 %v103
    %v1223 = vunpack.c.l.b16 %v104
    %v1224 = vunpack.c.h.b16 %v104
    %v1225 = vunpack.c.l.b16 %v105
    %v1226 = vunpack.c.h.b16 %v105
    %v1227 = vunpack.c.l.b16 %v106
    %v1228 = vunpack.c.h.b16 %v106
    %v1229 = vunpack.c.l.b16 %v107
    %v1230 = vunpack.c.h.b16 %v107
    %v1231 = vunpack.c.l.b16 %v108
    %v1232 = vunpack.c.h.b16 %v108
    %v1233 = vunpack.c.l.b16 %v109
    %v1234 = vunpack.c.h.b16 %v109
    %v1235 = vunpack.c.l.b16 %v110
    %v1236 = vunpack.c.h.b16 %v110
    %v1237 = vunpack.c.l.b16 %v111
    %v1238 = vunpack.c.h.b16 %v111
    %v1239 = vunpack.c.l.b16 %v112
    %v1240 = vunpack.c.h.b16 %v112
    %v1241 = vunpack.c.l.b16 %v113
    %v1242 = vunpack.c.h.b16 %v113
    %v1243 = vunpack.c.l.b16 %v114
    %v1244 = vunpack.c.h.b16 %v114
    %v1245 = vunpack.c.l.b16 %v115
    %v1246 = vunpack.c.h.b16 %v115
    %v1247 = vunpack.c.l.b16 %v116
    %v1248 = vunpack.c.h.b16 %v116
    %v1249 = vunpack.c.l.b16 %v117
    %v1250 = vunpack.c.h.b16 %v117
    %v1251 = vunpack.c.l.b16 %v118
    %v1252 = vunpack.c.h.b16 %v118
    %v1253 = vunpack.c.l.b16 %v119
    %v1254 = vunpack.c.h.b16 %v119
    %v1255 = vunpack.c.l.b16 %v120
    %v1256 = vunpack.c.h.b16 %v120
    %v1257 = vunpack.c.l.b16 %v121
    %v1258 = vunpack.c.h.b16 %v121
    %v1259 = vunpack.c.l.b16 %v122
    %v1260 = vunpack.c.h.b16 %v122
    %v1261 = vunpack.c.l.b16 %v123
    %v1262 = vunpack.c.h.b16 %v123
    %v1263 = vunpack.c.l.b16 %v124
    %v1264 = vunpack.c.h.b16 %v124
    %v1265 = vunpack.c.l.b16 %v125
    %v1266 = vunpack.c.h.b16 %v125
    %v1267 = vunpack.c.l.b16 %v126
    %v1268 = vunpack.c.h.b16 %v126
    %v1269 = vunpack.c.l.b16 %v127
    %v1270 = vunpack.c.h.b16 %v127
    %v1271 = vunpack.c.l.b16 %v128
    %v1272 = vunpack.c.h.b16 %v128
    %v1273 = vunpack.c.l.b16 %v129
    %v1274 = vunpack.c.h.b16 %v129
    %v1275 = vunpack.c.l.b16 %v130
    %v1276 = vunpack.c.h.b16 %v130
    %v1277 = vunpack.c.l.b16 %v131
    %v1278 = vunpack.c.h.b16 %v131
    %v1279 = vunpack.c.l.b16 %v132
    %v1280 = vunpack.c.h.b16 %v132
    %v1281 = vunpack.c.l.b16 %v133
    %v1282 = vunpack.c.h.b16 %v133
    %v1283 = vunpack.c.l.b16 %v134
    %v1284 = vunpack.c.h.b16 %v134
    %v1285 = vunpack.c.l.b16 %v135
    %v1286 = vunpack.c.h.b16 %v135
    %v1287 = vunpack.c.l.b16 %v136
    %v1288 = vunpack.c.h.b16 %v136
    %v1289 = vunpack.c.l.b16 %v137
    %v1290 = vunpack.c.h.b16 %v137
    %v1291 = vunpack.c.l.b16 %v138
    %v1292 = vunpack.c.h.b16 %v138
    %v1293 = vunpack.c.l.b16 %v139
    %v1294 = vunpack.c.h.b16 %v139
    %v1295 = vunpack.c.l.b16 %v140
    %v1296 = vunpack.c.h.b16 %v140
    %v1297 = vunpack.c.l.b16 %v141
    %v1298 = vunpack.c.h.b16 %v141
    %v1299 = vunpack.c.l.b16 %v142
    %v1300 = vunpack.c.h.b16 %v142
    %v1301 = vunpack.c.l.b16 %v143
    %v1302 = vunpack.c.h.b16 %v143
    %v1303 = vunpack.c.l.b16 %v144
    %v1304 = vunpack.c.h.b16 %v144
    %v1305 = vunpack.c.l.b16 %v145
    %v1306 = vunpack.c.h.b16 %v145
    %v1307 = vunpack.c.l.b16 %v146
    %v1308 = vunpack.c.h.b16 %v146
    %v1309 = vunpack.c.l.b16 %v147
    %v1310 = vunpack.c.h.b16 %v147
    %v1311 = vunpack.c.l.b16 %v148
    %v1312 = vunpack.c.h.b16 %v148
    %v1313 = vunpack.c.l.b16 %v149
    %v1314 = vunpack.c.h.b16 %v149
    %v1315 = vunpack.c.l.b16 %v150
    %v1316 = vunpack.c.h.b16 %v150
    %v1317 = vunpack.c.l.b16 %v151
    %v1318 = vunpack.c.h.b16 %v151
    %v1319 = vunpack.c.l.b16 %v152
    %v1320 = vunpack.c.h.b16 %v152
    %v1321 = vunpack.c.l.b16 %v153
    %v1322 = vunpack.c.h.b16 %v153
    %v1323 = vunpack.c.l.b16 %v154
    %v1324 = vunpack.c.h.b16 %v154
    %v1325 = vunpack.c.l.b16 %v155
    %v1326 = vunpack.c.h.b16 %v155
    %v1327 = vunpack.c.l.b16 %v156
    %v1328 = vunpack.c.h.b16 %v156
    %v1329 = vunpack.c.l.b16 %v157
    %v1330 = vunpack.c.h.b16 %v157
    %v1331 = vunpack.c.l.b16 %v158
    %v1332 = vunpack.c.h.b16 %v158
    %v1333 = vunpack.c.l.b16 %v159
    %v1334 = vunpack.c.h.b16 %v159
    %v1335 = vunpack.c.l.b16 %v160
    %v1336 = vunpack.c.h.b16 %v160
    %v1337 = vunpack.c.l.b16 %v161
    %v1338 = vunpack.c.h.b16 %v161
    %v1339 = vunpack.c.l.b16 %v162
    %v1340 = vunpack.c.h.b16 %v162
    %v1341 = vunpack.c.l.b16 %v163
    %v1342 = vunpack.c.h.b16 %v163
    %v1343 = vunpack.c.l.b16 %v164
    %v1344 = vunpack.c.h.b16 %v164
    %v1345 = vunpack.c.l.b16 %v165
    %v1346 = vunpack.c.h.b16 %v165
    %v1347 = vunpack.c.l.b16 %v166
    %v1348 = vunpack.c.h.b16 %v166
    %v1349 = vunpack.c.l.b16 %v167
    %v1350 = vunpack.c.h.b16 %v167
    %v1351 = vunpack.c.l.b16 %v168
    %v1352 = vunpack.c.h.b16 %v168
    %v1353 = vunpack.c.l.b16 %v169
    %v1354 = vunpack.c.h.b16 %v169
    %v1355 = vunpack.c.l.b16 %v170
    %v1356 = vunpack.c.h.b16 %v170
    %v1357 = vunpack.c.l.b16 %v171
    %v1358 = vunpack.c.h.b16 %v171
    %v1359 = vunpack.c.l.b16 %v172
    %v1360 = vunpack.c.h.b16 %v172
    %v1361 = vunpack.c.l.b16 %v173
    %v1362 = vunpack.c.h.b16 %v173
    %v1363 = vunpack.c.l.b16 %v174
    %v1364 = vunpack.c.h.b16 %v174
    %v1365 = vunpack.c.l.b16 %v175
    %v1366 = vunpack.c.h.b16 %v175
    %v1367 = vunpack.c.l.b16 %v176
    %v1368 = vunpack.c.h.b16 %v176
    %v1369 = vunpack.c.l.b16 %v177
    %v1370 = vunpack.c.h.b16 %v177
    %v1371 = vunpack.c.l.b16 %v178
    %v1372 = vunpack.c.h.b16 %v178
    %v1373 = vunpack.c.l.b16 %v179
    %v1374 = vunpack.c.h.b16 %v179
    %v1375 = vunpack.c.l.b16 %v180
    %v1376 = vunpack.c.h.b16 %v180
    %v1377 = vunpack.c.l.b16 %v181
    %v1378 = vunpack.c.h.b16 %v181
    %v1379 = vunpack.c.l.b16 %v182
    %v1380 = vunpack.c.h.b16 %v182
    %v1381 = vunpack.c.l.b16 %v183
    %v1382 = vunpack.c.h.b16 %v183
    %v1383 = vunpack.c.l.b16 %v184
    %v1384 = vunpack.c.h.b16 %v184
    %v1385 = vunpack.c.l.b16 %v185
    %v1386 = vunpack.c.h.b16 %v185
    %v1387 = vunpack.c.l.b16 %v186
    %v1388 = vunpack.c.h.b16 %v186
    %v1389 = vunpack.c.l.b16 %v187
    %v1390 = vunpack.c.h.b16 %v187
    %v1391 = vunpack.c.l.b16 %v188
    %v1392 = vunpack.c.h.b16 %v188
    %v1393 = vunpack.c.l.b16 %v189
    %v1394 = vunpack.c.h.b16 %v189
    %v1395 = vunpack.c.l.b16 %v190
    %v1396 = vunpack.c.h.b16 %v190
    %v1397 = vunpack.c.l.b16 %v191
    %v1398 = vunpack.c.h.b16 %v191
    %v1399 = vunpack.c.l.b16 %v192
    %v1400 = vunpack.c.h.b16 %v192
    %v1401 = vunpack.c.l.b16 %v193
    %v1402 = vunpack.c.h.b16 %v193
    %v1403 = vunpack.c.l.b16 %v194
    %v1404 = vunpack.c.h.b16 %v194
    %v1405 = vunpack.c.l.b16 %v195
    %v1406 = vunpack.c.h.b16 %v195
    %v1407 = vunpack.c.l.b16 %v196
    %v1408 = vunpack.c.h.b16 %v196
    %v1409 = vunpack.c.l.b16 %v197
    %v1410 = vunpack.c.h.b16 %v197
    %v1411 = vunpack.c.l.b16 %v198
    %v1412 = vunpack.c.h.b16 %v198
    %v1413 = vunpack.c.l.b16 %v199
    %v1414 = vunpack.c.h.b16 %v199
    %v1415 = vunpack.c.l.b16 %v200
    %v1416 = vunpack.c.h.b16 %v200
    %v1417 = vunpack.c.l.b16 %v201
    %v1418 = vunpack.c.h.b16 %v201
    %v1419 = vunpack.c.l.b16 %v202
    %v1420 = vunpack.c.h.b16 %v202
    %v1421 = vunpack.c.l.b16 %v203
    %v1422 = vunpack.c.h.b16 %v203
    %v1423 = vunpack.c.l.b16 %v204
    %v1424 = vunpack.c.h.b16 %v204
    %v1425 = vunpack.c.l.b16 %v205
    %v1426 = vunpack.c.h.b16 %v205
    %v1427 = vunpack.c.l.b16 %v206
    %v1428 = vunpack.c.h.b16 %v206
    %v1429 = vunpack.c.l.b16 %v207
    %v1430 = vunpack.c.h.b16 %v207
    %v1431 = vunpack.c.l.b16 %v208
    %v1432 = vunpack.c.h.b16 %v208
    %v1433 = vunpack.c.l.b16 %v209
    %v1434 = vunpack.c.h.b16 %v209
    %v1435 = vunpack.c.l.b16 %v210
    %v1436 = vunpack.c.h.b16 %v210
    %v1437 = vunpack.c.l.b16 %v211
    %v1438 = vunpack.c.h.b16 %v211
    %v1439 = vunpack.c.l.b16 %v212
    %v1440 = vunpack.c.h.b16 %v212
    %v1441 = vunpack.c.l.b16 %v213
    %v1442 = vunpack.c.h.b16 %v213
    %v1443 = vunpack.c.l.b16 %v214
    %v1444 = vunpack.c.h.b16 %v214
    %v1445 = vunpack.c.l.b16 %v215
    %v1446 = vunpack.c.h.b16 %v215
    %v1447 = vunpack.c.l.b16 %v216
    %v1448 = vunpack.c.h.b16 %v216
    %v1449 = vunpack.c.l.b16 %v217
    %v1450 = vunpack.c.h.b16 %v217
    %v1451 = vunpack.c.l.b16 %v218
    %v1452 = vunpack.c.h.b16 %v218
    %v1453 = vunpack.c.l.b16 %v219
    %v1454 = vunpack.c.h.b16 %v219
    %v1455 = vunpack.c.l.b16 %v220
    %v1456 = vunpack.c.h.b16 %v220
    %v1457 = vunpack.c.l.b16 %v221
    %v1458 = vunpack.c.h.b16 %v221
    %v1459 = vunpack.c.l.b16 %v222
    %v1460 = vunpack.c.h.b16 %v222
    %v1461 = vunpack.c.l.b16 %v223
    %v1462 = vunpack.c.h.b16 %v223
    %v1463 = vunpack.c.l.b16 %v224
    %v1464 = vunpack.c.h.b16 %v224
    %v1465 = vunpack.c.l.b16 %v225
    %v1466 = vunpack.c.h.b16 %v225
    %v1467 = vunpack.c.l.b16 %v226
    %v1468 = vunpack.c.h.b16 %v226
    %v1469 = vunpack.c.l.b16 %v227
    %v1470 = vunpack.c.h.b16 %v227
    %v1471 = vunpack.c.l.b16 %v228
    %v1472 = vunpack.c.h.b16 %v228
    %v1473 = vunpack.c.l.b16 %v229
    %v1474 = vunpack.c.h.b16 %v229
    %v1475 = vunpack.c.l.b16 %v230
    %v1476 = vunpack.c.h.b16 %v230
    %v1477 = vunpack.c.l.b16 %v231
    %v1478 = vunpack.c.h.b16 %v231
    %v1479 = vunpack.c.l.b16 %v232
    %v1480 = vunpack.c.h.b16 %v232
    %v1481 = vunpack.c.l.b16 %v233
    %v1482 = vunpack.c.h.b16 %v233
    %v1483 = vunpack.c.l.b16 %v234
    %v1484 = vunpack.c.h.b16 %v234
    %v1485 = vunpack.c.l.b16 %v235
    %v1486 = vunpack.c.h.b16 %v235
    %v1487 = vunpack.c.l.b16 %v236
    %v1488 = vunpack.c.h.b16 %v236
    %v1489 = vunpack.c.l.b16 %v237
    %v1490 = vunpack.c.h.b16 %v237
    %v1491 = vunpack.c.l.b16 %v238
    %v1492 = vunpack.c.h.b16 %v238
    %v1493 = vunpack.c.l.b16 %v239
    %v1494 = vunpack.c.h.b16 %v239
    %v1495 = vunpack.c.l.b16 %v240
    %v1496 = vunpack.c.h.b16 %v240
    %v1497 = vunpack.c.l.b16 %v241
    %v1498 = vunpack.c.h.b16 %v241
    %v1499 = vunpack.c.l.b16 %v242
    %v1500 = vunpack.c.h.b16 %v242
    %v1501 = vunpack.c.l.b16 %v243
    %v1502 = vunpack.c.h.b16 %v243
    %v1503 = vunpack.c.l.b16 %v244
    %v1504 = vunpack.c.h.b16 %v244
    %v1505 = vunpack.c.l.b16 %v245
    %v1506 = vunpack.c.h.b16 %v245
    %v1507 = vunpack.c.l.b16 %v246
    %v1508 = vunpack.c.h.b16 %v246
    %v1509 = vunpack.c.l.b16 %v247
    %v1510 = vunpack.c.h.b16 %v247
    %v1511 = vunpack.c.l.b16 %v248
    %v1512 = vunpack.c.h.b16 %v248
    %v1513 = vunpack.c.l.b16 %v249
    %v1514 = vunpack.c.h.b16 %v249
    %v1515 = vunpack.c.l.b16 %v250
    %v1516 = vunpack.c.h.b16 %v250
    %v1517 = vunpack.c.l.b16 %v251
    %v1518 = vunpack.c.h.b16 %v251
    %v1519 = vunpack.c.l.b16 %v252
    %v1520 = vunpack.c.h.b16 %v252
    %v1521 = vunpack.c.l.b16 %v253
    %v1522 = vunpack.c.h.b16 %v253
    %v1523 = vunpack.c.l.b16 %v254
    %v1524 = vunpack.c.h.b16 %v254
    %v1525 = vunpack.c.l.b16 %v255
    %v1526 = vunpack.c.h.b16 %v255
    %v1527 = vunpack.c.l.b16 %v256
    %v1528 = vunpack.c.h.b16 %v256
    %v1529 = vunpack.c.l.b16 %v257
    %v1530 = vunpack.c.h.b16 %v257
    %v1531 = vunpack.c.l.b16 %v258
    %v1532 = vunpack.c.h.b16 %v258
    %v1533 = vunpack.c.l.b16 %v259
    %v1534 = vunpack.c.h.b16 %v259
    %v1535 = vunpack.c.l.b16 %v260
    %v1536 = vunpack.c.h.b16 %v260
    %v1537 = vunpack.c.l.b16 %v261
    %v1538 = vunpack.c.h.b16 %v261
    %v1539 = vunpack.c.l.b16 %v262
    %v1540 = vunpack.c.h.b16 %v262
    %v1541 = vunpack.c.l.b16 %v263
    %v1542 = vunpack.c.h.b16 %v263
    %v1543 = vunpack.c.l.b16 %v264
    %v1544 = vunpack.c.h.b16 %v264
    %v1545 = vunpack.c.l.b16 %v265
    %v1546 = vunpack.c.h.b16 %v265
    %v1547 = vunpack.c.l.b16 %v266
    %v1548 = vunpack.c.h.b16 %v266
    %v1549 = vunpack.c.l.b16 %v267
    %v1550 = vunpack.c.h.b16 %v267
    %v1551 = vunpack.c.l.b16 %v268
    %v1552 = vunpack.c.h.b16 %v268
    %v1553 = vunpack.c.l.b16 %v269
    %v1554 = vunpack.c.h.b16 %v269
    %v1555 = vunpack.c.l.b16 %v270
    %v1556 = vunpack.c.h.b16 %v270
    %v1557 = vunpack.c.l.b16 %v271
    %v1558 = vunpack.c.h.b16 %v271
    %v1559 = vunpack.c.l.b16 %v272
    %v1560 = vunpack.c.h.b16 %v272
    %v1561 = vunpack.c.l.b16 %v273
    %v1562 = vunpack.c.h.b16 %v273
    %v1563 = vunpack.c.l.b16 %v274
    %v1564 = vunpack.c.h.b16 %v274
    %v1565 = vunpack.c.l.b16 %v275
    %v1566 = vunpack.c.h.b16 %v275
    %v1567 = vunpack.c.l.b16 %v276
    %v1568 = vunpack.c.h.b16 %v276
    %v1569 = vunpack.c.l.b16 %v277
    %v1570 = vunpack.c.h.b16 %v277
    %v1571 = vunpack.c.l.b16 %v278
    %v1572 = vunpack.c.h.b16 %v278
    %v1573 = vunpack.c.l.b16 %v279
    %v1574 = vunpack.c.h.b16 %v279
    %v1575 = vunpack.c.l.b16 %v280
    %v1576 = vunpack.c.h.b16 %v280
    %v1577 = vunpack.c.l.b16 %v281
    %v1578 = vunpack.c.h.b16 %v281
    %v1579 = vunpack.c.l.b16 %v282
    %v1580 = vunpack.c.h.b16 %v282
    %v1581 = vunpack.c.l.b16 %v283
    %v1582 = vunpack.c.h.b16 %v283
    %v1583 = vunpack.c.l.b16 %v284
    %v1584 = vunpack.c.h.b16 %v284
    %v1585 = vunpack.c.l.b16 %v285
    %v1586 = vunpack.c.h.b16 %v285
    %v1587 = vunpack.c.l.b16 %v286
    %v1588 = vunpack.c.h.b16 %v286
    %v1589 = vunpack.c.l.b16 %v287
    %v1590 = vunpack.c.h.b16 %v287
    %v1591 = vunpack.c.l.b16 %v288
    %v1592 = vunpack.c.h.b16 %v288
    %v1593 = vunpack.c.l.b16 %v289
    %v1594 = vunpack.c.h.b16 %v289
    %v1595 = vunpack.c.l.b16 %v290
    %v1596 = vunpack.c.h.b16 %v290
    %v1597 = vunpack.c.l.b16 %v291
    %v1598 = vunpack.c.h.b16 %v291
    %v1599 = vunpack.c.l.b16 %v292
    %v1600 = vunpack.c.h.b16 %v292
    %v1601 = vunpack.c.l.b16 %v293
    %v1602 = vunpack.c.h.b16 %v293
    %v1603 = vunpack.c.l.b16 %v294
    %v1604 = vunpack.c.h.b16 %v294
    %v1605 = vunpack.c.l.b16 %v295
    %v1606 = vunpack.c.h.b16 %v295
    %v1607 = vunpack.c.l.b16 %v296
    %v1608 = vunpack.c.h.b16 %v296
    %v1609 = vunpack.c.l.b16 %v297
    %v1610 = vunpack.c.h.b16 %v297
    %v1611 = vunpack.c.l.b16 %v298
    %v1612 = vunpack.c.h.b16 %v298
    %v1613 = vunpack.c.l.b16 %v299
    %v1614 = vunpack.c.h.b16 %v299
    %v1615 = vunpack.c.l.b16 %v300
    %v1616 = vunpack.c.h.b16 %v300
    %v1617 = vunpack.c.l.b16 %v301
    %v1618 = vunpack.c.h.b16 %v301
    %v1619 = vunpack.c.l.b16 %v302
    %v1620 = vunpack.c.h.b16 %v302
    %v1621 = vunpack.c.l.b16 %v303
    %v1622 = vunpack.c.h.b16 %v303
    %v1623 = vunpack.c.l.b16 %v304
    %v1624 = vunpack.c.h.b16 %v304
    %v1625 = vunpack.c.l.b16 %v305
    %v1626 = vunpack.c.h.b16 %v305
    %v1627 = vunpack.c.l.b16 %v306
    %v1628 = vunpack.c.h.b16 %v306
    %v1629 = vunpack.c.l.b16 %v307
    %v1630 = vunpack.c.h.b16 %v307
    %v1631 = vunpack.c.l.b16 %v308
    %v1632 = vunpack.c.h.b16 %v308
    %v1633 = vunpack.c.l.b16 %v309
    %v1634 = vunpack.c.h.b16 %v309
    %v1635 = vunpack.c.l.b16 %v310
    %v1636 = vunpack.c.h.b16 %v310
    %v1637 = vunpack.c.l.b16 %v311
    %v1638 = vunpack.c.h.b16 %v311
    %v1639 = vunpack.c.l.b16 %v312
    %v1640 = vunpack.c.h.b16 %v312
    %v1641 = vunpack.c.l.b16 %v313
    %v1642 = vunpack.c.h.b16 %v313
    %v1643 = vunpack.c.l.b16 %v314
    %v1644 = vunpack.c.h.b16 %v314
    %v1645 = vunpack.c.l.b16 %v315
    %v1646 = vunpack.c.h.b16 %v315
    %v1647 = vunpack.c.l.b16 %v316
    %v1648 = vunpack.c.h.b16 %v316
    %v1649 = vunpack.c.l.b16 %v317
    %v1650 = vunpack.c.h.b16 %v317
    %v1651 = vunpack.c.l.b16 %v318
    %v1652 = vunpack.c.h.b16 %v318
    %v1653 = vunpack.c.l.b16 %v319
    %v1654 = vunpack.c.h.b16 %v319
    %v1655 = vunpack.c.l.b16 %v320
    %v1656 = vunpack.c.h.b16 %v320
    %v1657 = vunpack.c.l.b16 %v321
    %v1658 = vunpack.c.h.b16 %v321
    %v1659 = vunpack.c.l.b16 %v322
    %v1660 = vunpack.c.h.b16 %v322
    %v1661 = vunpack.c.l.b16 %v323
    %v1662 = vunpack.c.h.b16 %v323
    %v1663 = vunpack.c.l.b16 %v324
    %v1664 = vunpack.c.h.b16 %v324
    %v1665 = vunpack.c.l.b16 %v325
    %v1666 = vunpack.c.h.b16 %v325
    %v1667 = vunpack.c.l.b16 %v326
    %v1668 = vunpack.c.h.b16 %v326
    %v1669 = vunpack.c.l.b16 %v327
    %v1670 = vunpack.c.h.b16 %v327
    %v1671 = vunpack.c.l.b16 %v328
    %v1672 = vunpack.c.h.b16 %v328
    %v1673 = vunpack.c.l.b16 %v329
    %v1674 = vunpack.c.h.b16 %v329
    %v1675 = vunpack.c.l.b16 %v330
    %v1676 = vunpack.c.h.b16 %v330
    %v1677 = vunpack.c.l.b16 %v331
    %v1678 = vunpack.c.h.b16 %v331
    %v1679 = vunpack.c.l.b16 %v332
    %v1680 = vunpack.c.h.b16 %v332
    %v1681 = vunpack.c.l.b16 %v333
    %v1682 = vunpack.c.h.b16 %v333
    %v1683 = vunpack.c.l.b16 %v334
    %v1684 = vunpack.c.h.b16 %v334
    %v1685 = vunpack.c.l.b16 %v335
    %v1686 = vunpack.c.h.b16 %v335
    %v1687 = vunpack.c.l.b16 %v336
    %v1688 = vunpack.c.h.b16 %v336
    %v1689 = vunpack.c.l.b16 %v337
    %v1690 = vunpack.c.h.b16 %v337
    %v1691 = vunpack.c.l.b16 %v338
    %v1692 = vunpack.c.h.b16 %v338
    %v1693 = vunpack.c.l.b16 %v339
    %v1694 = vunpack.c.h.b16 %v339
    %v1695 = vunpack.c.l.b16 %v340
    %v1696 = vunpack.c.h.b16 %v340
    %v1697 = vunpack.c.l.b16 %v341
    %v1698 = vunpack.c.h.b16 %v341
    %v1699 = vunpack.c.l.b16 %v342
    %v1700 = vunpack.c.h.b16 %v342
    %v1701 = vunpack.c.l.b16 %v343
    %v1702 = vunpack.c.h.b16 %v343
    %v1703 = vunpack.c.l.b16 %v344
    %v1704 = vunpack.c.h.b16 %v344
    %v1705 = vunpack.c.l.b16 %v345
    %v1706 = vunpack.c.h.b16 %v345
    %v1707 = vunpack.c.l.b16 %v346
    %v1708 = vunpack.c.h.b16 %v346
    %v1709 = vunpack.c.l.b16 %v347
    %v1710 = vunpack.c.h.b16 %v347
    %v1711 = vunpack.c.l.b16 %v348
    %v1712 = vunpack.c.h.b16 %v348
    %v1713 = vunpack.c.l.b16 %v349
    %v1714 = vunpack.c.h.b16 %v349
    %v1715 = vunpack.c.l.b16 %v350
    %v1716 = vunpack.c.h.b16 %v350
    %v1717 = vunpack.c.l.b16 %v351
    %v1718 = vunpack.c.h.b16 %v351
    %v1719 = vunpack.c.l.b16 %v352
    %v1720 = vunpack.c.h.b16 %v352
    %v1721 = vunpack.c.l.b16 %v353
    %v1722 = vunpack.c.h.b16 %v353
    %v1723 = vunpack.c.l.b16 %v354
    %v1724 = vunpack.c.h.b16 %v354
    %v1725 = vunpack.c.l.b16 %v355
    %v1726 = vunpack.c.h.b16 %v355
    %v1727 = vunpack.c.l.b16 %v356
    %v1728 = vunpack.c.h.b16 %v356
    %v1729 = vunpack.c.l.b16 %v357
    %v1730 = vunpack.c.h.b16 %v357
    %v1731 = vunpack.c.l.b16 %v358
    %v1732 = vunpack.c.h.b16 %v358
    %v1733 = vunpack.c.l.b16 %v359
    %v1734 = vunpack.c.h.b16 %v359
    %v1735 = vunpack.c.l.b16 %v360
    %v1736 = vunpack.c.h.b16 %v360
    %v1737 = vunpack.c.l.b16 %v361
    %v1738 = vunpack.c.h.b16 %v361
    %v1739 = vunpack.c.l.b16 %v362
    %v1740 = vunpack.c.h.b16 %v362
    %v1741 = vunpack.c.l.b16 %v363
    %v1742 = vunpack.c.h.b16 %v363
    %v1743 = vunpack.c.l.b16 %v364
    %v1744 = vunpack.c.h.b16 %v364
    %v1745 = vunpack.c.l.b16 %v365
    %v1746 = vunpack.c.h.b16 %v365
    %v1747 = vunpack.c.l.b16 %v366
    %v1748 = vunpack.c.h.b16 %v366
    %v1749 = vunpack.c.l.b16 %v367
    %v1750 = vunpack.c.h.b16 %v367
    %v1751 = vunpack.c.l.b16 %v368
    %v1752 = vunpack.c.h.b16 %v368
    %v1753 = vunpack.c.l.b16 %v369
    %v1754 = vunpack.c.h.b16 %v369
    %v1755 = vunpack.c.l.b16 %v370
    %v1756 = vunpack.c.h.b16 %v370
    %v1757 = vunpack.c.l.b16 %v371
    %v1758 = vunpack.c.h.b16 %v371
    %v1759 = vunpack.c.l.b16 %v372
    %v1760 = vunpack.c.h.b16 %v372
    %v1761 = vunpack.c.l.b16 %v373
    %v1762 = vunpack.c.h.b16 %v373
    %v1763 = vunpack.c.l.b16 %v374
    %v1764 = vunpack.c.h.b16 %v374
    %v1765 = vunpack.c.l.b16 %v375
    %v1766 = vunpack.c.h.b16 %v375
    %v1767 = vunpack.c.l.b16 %v376
    %v1768 = vunpack.c.h.b16 %v376
    %v1769 = vunpack.c.l.b16 %v377
    %v1770 = vunpack.c.h.b16 %v377
    %v1771 = vunpack.c.l.b16 %v378
    %v1772 = vunpack.c.h.b16 %v378
    %v1773 = vunpack.c.l.b16 %v379
    %v1774 = vunpack.c.h.b16 %v379
    %v1775 = vunpack.c.l.b16 %v380
    %v1776 = vunpack.c.h.b16 %v380
    %v1777 = vunpack.c.l.b16 %v381
    %v1778 = vunpack.c.h.b16 %v381
    %v1779 = vunpack.c.l.b16 %v382
    %v1780 = vunpack.c.h.b16 %v382
    %v1781 = vunpack.c.l.b16 %v383
    %v1782 = vunpack.c.h.b16 %v383
    %v1783 = vunpack.c.l.b16 %v384
    %v1784 = vunpack.c.h.b16 %v384
    %v1785 = vunpack.c.l.b16 %v385
    %v1786 = vunpack.c.h.b16 %v385
    %v1787 = vunpack.c.l.b16 %v386
    %v1788 = vunpack.c.h.b16 %v386
    %v1789 = vunpack.c.l.b16 %v387
    %v1790 = vunpack.c.h.b16 %v387
    %v1791 = vunpack.c.l.b16 %v388
    %v1792 = vunpack.c.h.b16 %v388
    %v1793 = vunpack.c.l.b16 %v389
    %v1794 = vunpack.c.h.b16 %v389
    %v1795 = vunpack.c.l.b16 %v390
    %v1796 = vunpack.c.h.b16 %v390
    %v1797 = vunpack.c.l.b16 %v391
    %v1798 = vunpack.c.h.b16 %v391
    %v1799 = vunpack.c.l.b16 %v392
    %v1800 = vunpack.c.h.b16 %v392
    %v1801 = vunpack.c.l.b16 %v393
    %v1802 = vunpack.c.h.b16 %v393
    %v1803 = vunpack.c.l.b16 %v394
    %v1804 = vunpack.c.h.b16 %v394
    %v1805 = vunpack.c.l.b16 %v395
    %v1806 = vunpack.c.h.b16 %v395
    %v1807 = vunpack.c.l.b16 %v396
    %v1808 = vunpack.c.h.b16 %v396
    %v1809 = vunpack.c.l.b16 %v397
    %v1810 = vunpack.c.h.b16 %v397
    %v1811 = vunpack.c.l.b16 %v398
    %v1812 = vunpack.c.h.b16 %v398
    %v1813 = vunpack.c.l.b16 %v399
    %v1814 = vunpack.c.h.b16 %v399
    %v1815 = vunpack.c.l.b16 %v400
    %v1816 = vunpack.c.h.b16 %v400
    %v1817 = vunpack.c.l.b16 %v401
    %v1818 = vunpack.c.h.b16 %v401
    %v1819 = vunpack.c.l.b16 %v402
    %v1820 = vunpack.c.h.b16 %v402
    %v1821 = vunpack.c.l.b16 %v403
    %v1822 = vunpack.c.h.b16 %v403
    %v1823 = vunpack.c.l.b16 %v404
    %v1824 = vunpack.c.h.b16 %v404
    %v1825 = vunpack.c.l.b16 %v405
    %v1826 = vunpack.c.h.b16 %v405
    %v1827 = vunpack.c.l.b16 %v406
    %v1828 = vunpack.c.h.b16 %v406
    %v1829 = vunpack.c.l.b16 %v407
    %v1830 = vunpack.c.h.b16 %v407
    %v1831 = vunpack.c.l.b16 %v408
    %v1832 = vunpack.c.h.b16 %v408
    %v1833 = vunpack.c.l.b16 %v409
    %v1834 = vunpack.c.h.b16 %v409
    %v1835 = vunpack.c.l.b16 %v410
    %v1836 = vunpack.c.h.b16 %v410
    %v1837 = vunpack.c.l.b16 %v411
    %v1838 = vunpack.c.h.b16 %v411
    %v1839 = vunpack.c.l.b16 %v412
    %v1840 = vunpack.c.h.b16 %v412
    %v1841 = vunpack.c.l.b16 %v413
    %v1842 = vunpack.c.h.b16 %v413
    %v1843 = vunpack.c.l.b16 %v414
    %v1844 = vunpack.c.h.b16 %v414
    %v1845 = vunpack.c.l.b16 %v415
    %v1846 = vunpack.c.h.b16 %v415
    %v1847 = vunpack.c.l.b16 %v416
    %v1848 = vunpack.c.h.b16 %v416
    %v1849 = vunpack.c.l.b16 %v417
    %v1850 = vunpack.c.h.b16 %v417
    %v1851 = vunpack.c.l.b16 %v418
    %v1852 = vunpack.c.h.b16 %v418
    %v1853 = vunpack.c.l.b16 %v419
    %v1854 = vunpack.c.h.b16 %v419
    %v1855 = vunpack.c.l.b16 %v420
    %v1856 = vunpack.c.h.b16 %v420
    %v1857 = vunpack.c.l.b16 %v421
    %v1858 = vunpack.c.h.b16 %v421
    %v1859 = vunpack.c.l.b16 %v422
    %v1860 = vunpack.c.h.b16 %v422
    %v1861 = vunpack.c.l.b16 %v423
    %v1862 = vunpack.c.h.b16 %v423
    %v1863 = vunpack.c.l.b16 %v424
    %v1864 = vunpack.c.h.b16 %v424
    %v1865 = vunpack.c.l.b16 %v425
    %v1866 = vunpack.c.h.b16 %v425
    %v1867 = vunpack.c.l.b16 %v426
    %v1868 = vunpack.c.h.b16 %v426
    %v1869 = vunpack.c.l.b16 %v427
    %v1870 = vunpack.c.h.b16 %v427
    %v1871 = vunpack.c.l.b16 %v428
    %v1872 = vunpack.c.h.b16 %v428
    %v1873 = vunpack.c.l.b16 %v429
    %v1874 = vunpack.c.h.b16 %v429
    %v1875 = vunpack.c.l.b16 %v430
    %v1876 = vunpack.c.h.b16 %v430
    %v1877 = vunpack.c.l.b16 %v431
    %v1878 = vunpack.c.h.b16 %v431
    %v1879 = vunpack.c.l.b16 %v432
    %v1880 = vunpack.c.h.b16 %v432
    %v1881 = vunpack.c.l.b16 %v433
    %v1882 = vunpack.c.h.b16 %v433
    %v1883 = vunpack.c.l.b16 %v434
    %v1884 = vunpack.c.h.b16 %v434
    %v1885 = vunpack.c.l.b16 %v435
    %v1886 = vunpack.c.h.b16 %v435
    %v1887 = vunpack.c.l.b16 %v436
    %v1888 = vunpack.c.h.b16 %v436
    %v1889 = vunpack.c.l.b16 %v437
    %v1890 = vunpack.c.h.b16 %v437
    %v1891 = vunpack.c.l.b16 %v438
    %v1892 = vunpack.c.h.b16 %v438
    %v1893 = vunpack.c.l.b16 %v439
    %v1894 = vunpack.c.h.b16 %v439
    %v1895 = vunpack.c.l.b16 %v440
    %v1896 = vunpack.c.h.b16 %v440
    %v1897 = vunpack.c.l.b16 %v441
    %v1898 = vunpack.c.h.b16 %v441
    %v1899 = vunpack.c.l.b16 %v442
    %v1900 = vunpack.c.h.b16 %v442
    %v1901 = vunpack.c.l.b16 %v443
    %v1902 = vunpack.c.h.b16 %v443
    %v1903 = vunpack.c.l.b16 %v444
    %v1904 = vunpack.c.h.b16 %v444
    %v1905 = vunpack.c.l.b16 %v445
    %v1906 = vunpack.c.h.b16 %v445
    %v1907 = vunpack.c.l.b16 %v446
    %v1908 = vunpack.c.h.b16 %v446
    %v1909 = vunpack.c.l.b16 %v447
    %v1910 = vunpack.c.h.b16 %v447
    %v1911 = vunpack.c.l.b16 %v448
    %v1912 = vunpack.c.h.b16 %v448
    %v1913 = vunpack.c.l.b16 %v449
    %v1914 = vunpack.c.h.b16 %v449
    %v1915 = vunpack.c.l.b16 %v450
    %v1916 = vunpack.c.h.b16 %v450
    %v1917 = vunpack.c.l.b16 %v451
    %v1918 = vunpack.c.h.b16 %v451
    %v1919 = vunpack.c.l.b16 %v452
    %v1920 = vunpack.c.h.b16 %v452
    %v1921 = vunpack.c.l.b16 %v453
    %v1922 = vunpack.c.h.b16 %v453
    %v1923 = vunpack.c.l.b16 %v454
    %v1924 = vunpack.c.h.b16 %v454
    %v1925 = vunpack.c.l.b16 %v455
    %v1926 = vunpack.c.h.b16 %v455
    %v1927 = vunpack.c.l.b16 %v456
    %v1928 = vunpack.c.h.b16 %v456
    %v1929 = vunpack.c.l.b16 %v457
    %v1930 = vunpack.c.h.b16 %v457
    %v1931 = vunpack.c.l.b16 %v458
    %v1932 = vunpack.c.h.b16 %v458
    %v1933 = vunpack.c.l.b16 %v459
    %v1934 = vunpack.c.h.b16 %v459
    %v1935 = vunpack.c.l.b16 %v460
    %v1936 = vunpack.c.h.b16 %v460
    %v1937 = vunpack.c.l.b16 %v461
    %v1938 = vunpack.c.h.b16 %v461
    %v1939 = vunpack.c.l.b16 %v462
    %v1940 = vunpack.c.h.b16 %v462
    %v1941 = vunpack.c.l.b16 %v463
    %v1942 = vunpack.c.h.b16 %v463
    %v1943 = vunpack.c.l.b16 %v464
    %v1944 = vunpack.c.h.b16 %v464
    %v1945 = vunpack.c.l.b16 %v465
    %v1946 = vunpack.c.h.b16 %v465
    %v1947 = vunpack.c.l.b16 %v466
    %v1948 = vunpack.c.h.b16 %v466
    %v1949 = vunpack.c.l.b16 %v467
    %v1950 = vunpack.c.h.b16 %v467
    %v1951 = vunpack.c.l.b16 %v468
    %v1952 = vunpack.c.h.b16 %v468
    %v1953 = vunpack.c.l.b16 %v469
    %v1954 = vunpack.c.h.b16 %v469
    %v1955 = vunpack.c.l.b16 %v470
    %v1956 = vunpack.c.h.b16 %v470
    %v1957 = vunpack.c.l.b16 %v471
    %v1958 = vunpack.c.h.b16 %v471
    %v1959 = vunpack.c.l.b16 %v472
    %v1960 = vunpack.c.h.b16 %v472
    %v1961 = vunpack.c.l.b16 %v473
    %v1962 = vunpack.c.h.b16 %v473
    %v1963 = vunpack.c.l.b16 %v474
    %v1964 = vunpack.c.h.b16 %v474
    %v1965 = vunpack.c.l.b16 %v475
    %v1966 = vunpack.c.h.b16 %v475
    %v1967 = vunpack.c.l.b16 %v476
    %v1968 = vunpack.c.h.b16 %v476
    %v1969 = vunpack.c.l.b16 %v477
    %v1970 = vunpack.c.h.b16 %v477
    %v1971 = vunpack.c.l.b16 %v478
    %v1972 = vunpack.c.h.b16 %v478
    %v1973 = vunpack.c.l.b16 %v479
    %v1974 = vunpack.c.h.b16 %v479
    %v1975 = vunpack.c.l.b16 %v480
    %v1976 = vunpack.c.h.b16 %v480
    %v1977 = vunpack.c.l.b16 %v481
    %v1978 = vunpack.c.h.b16 %v481
    %v1979 = vunpack.c.l.b16 %v482
    %v1980 = vunpack.c.h.b16 %v482
    %v1981 = vunpack.c.l.b16 %v483
    %v1982 = vunpack.c.h.b16 %v483
    %v1983 = vunpack.c.l.b16 %v484
    %v1984 = vunpack.c.h.b16 %v484
    %v1985 = vunpack.c.l.b16 %v485
    %v1986 = vunpack.c.h.b16 %v485
    %v1987 = vunpack.c.l.b16 %v486
    %v1988 = vunpack.c.h.b16 %v486
    %v1989 = vunpack.c.l.b16 %v487
    %v1990 = vunpack.c.h.b16 %v487
    %v1991 = vunpack.c.l.b16 %v488
    %v1992 = vunpack.c.h.b16 %v488
    %v1993 = vunpack.c.l.b16 %v489
    %v1994 = vunpack.c.h.b16 %v489
    %v1995 = vunpack.c.l.b16 %v490
    %v1996 = vunpack.c.h.b16 %v490
    %v1997 = vunpack.c.l.b16 %v491
    %v1998 = vunpack.c.h.b16 %v491
    %v1999 = vunpack.c.l.b16 %v492
    %v2000 = vunpack.c.h.b16 %v492
    %v2001 = vunpack.c.l.b16 %v493
    %v2002 = vunpack.c.h.b16 %v493
    %v2003 = vunpack.c.l.b16 %v494
    %v2004 = vunpack.c.h.b16 %v494
    %v2005 = vunpack.c.l.b16 %v495
    %v2006 = vunpack.c.h.b16 %v495
    %v2007 = vunpack.c.l.b16 %v496
    %v2008 = vunpack.c.h.b16 %v496
    %v2009 = vunpack.c.l.b16 %v497
    %v2010 = vunpack.c.h.b16 %v497
    %v2011 = vunpack.c.l.b16 %v498
    %v2012 = vunpack.c.h.b16 %v498
    %v2013 = vunpack.c.l.b16 %v499
    %v2014 = vunpack.c.h.b16 %v499
    %v2015 = vunpack.c.l.b16 %v500
    %v2016 = vunpack.c.h.b16 %v500
    %v2017 = vunpack.c.l.b16 %v501
    %v2018 = vunpack.c.h.b16 %v501
    %v2019 = vunpack.c.l.b16 %v502
    %v2020 = vunpack.c.h.b16 %v502
    %v2021 = vunpack.c.l.b16 %v503
    %v2022 = vunpack.c.h.b16 %v503
    %v2023 = vunpack.c.l.b16 %v504
    %v2024 = vunpack.c.h.b16 %v504
    %v2025 = vunpack.c.l.b16 %v505
    %v2026 = vunpack.c.h.b16 %v505
    %v2027 = vunpack.c.l.b16 %v506
    %v2028 = vunpack.c.h.b16 %v506
    %v2029 = vunpack.c.l.b16 %v507
    %v2030 = vunpack.c.h.b16 %v507
    %v2031 = vunpack.c.l.b16 %v508
    %v2032 = vunpack.c.h.b16 %v508
    %v2033 = vunpack.c.l.b16 %v509
    %v2034 = vunpack.c.h.b16 %v509
    %v2035 = vunpack.c.l.b16 %v510
    %v2036 = vunpack.c.h.b16 %v510
    %v2037 = vunpack.c.l.b16 %v511
    %v2038 = vunpack.c.h.b16 %v511
    %v2039 = vunpack.c.l.b16 %v512
    %v2040 = vunpack.c.h.b16 %v512
    %v2041 = vunpack.c.l.b16 %v513
    %v2042 = vunpack.c.h.b16 %v513
    %v2043 = vunpack.c.l.b16 %v514
    %v2044 = vunpack.c.h.b16 %v514
    %v2045 = vunpack.c.l.b16 %v515
    %v2046 = vunpack.c.h.b16 %v515
    %v2047 = vunpack.c.l.b16 %v516
    %v2048 = vunpack.c.h.b16 %v516
    %v2049 = vunpack.c.l.b16 %v517
    %v2050 = vunpack.c.h.b16 %v517
    %v2051 = vunpack.c.l.b16 %v518
    %v2052 = vunpack.c.h.b16 %v518
    %v2053 = vunpack.c.l.b16 %v519
    %v2054 = vunpack.c.h.b16 %v519
    %v2055 = vunpack.c.l.b16 %v520
    %v2056 = vunpack.c.h.b16 %v520
    %v2057 = vunpack.c.l.b16 %v521
    %v2058 = vunpack.c.h.b16 %v521
    %v2059 = vunpack.c.l.b16 %v522
    %v2060 = vunpack.c.h.b16 %v522
    %v2061 = vunpack.c.l.b16 %v523
    %v2062 = vunpack.c.h.b16 %v523
    %v2063 = vunpack.c.l.b16 %v524
    %v2064 = vunpack.c.h.b16 %v524
    %v2065 = vunpack.c.l.b16 %v525
    %v2066 = vunpack.c.h.b16 %v525
    %v2067 = vunpack.c.l.b16 %v526
    %v2068 = vunpack.c.h.b16 %v526
    %v2069 = vunpack.c.l.b16 %v527
    %v2070 = vunpack.c.h.b16 %v527
    %v2071 = vunpack.c.l.b16 %v528
    %v2072 = vunpack.c.h.b16 %v528
    %v2073 = vunpack.c.l.b16 %v529
    %v2074 = vunpack.c.h.b16 %v529
    %v2075 = vunpack.c.l.b16 %v530
    %v2076 = vunpack.c.h.b16 %v530
    %v2077 = vunpack.c.l.b16 %v531
    %v2078 = vunpack.c.h.b16 %v531
    %v2079 = vunpack.c.l.b16 %v532
    %v2080 = vunpack.c.h.b16 %v532
    %v2081 = vunpack.c.l.b16 %v533
    %v2082 = vunpack.c.h.b16 %v533
    %v2083 = vunpack.c.l.b16 %v534
    %v2084 = vunpack.c.h.b16 %v534
    %v2085 = vunpack.c.l.b16 %v535
    %v2086 = vunpack.c.h.b16 %v535
    %v2087 = vunpack.c.l.b16 %v536
    %v2088 = vunpack.c.h.b16 %v536
    %v2089 = vunpack.c.l.b16 %v537
    %v2090 = vunpack.c.h.b16 %v537
    %v2091 = vunpack.c.l.b16 %v538
    %v2092 = vunpack.c.h.b16 %v538
    %v2093 = vpack.c.b16 %v1197, %v1189
    %v2094 = vpack.c.b16 %v1198, %v1190
    %v2095 = vpack.c.b16 %v1199, %v1191
    %v2096 = vpack.c.b16 %v1200, %v1192
    %v2097 = vpack.c.b16 %v1201, %v1193
    %v2098 = vpack.c.b16 %v1202, %v1194
    %v2099 = vpack.c.b16 %v1203, %v1195
    %v2100 = vpack.c.b16 %v1204, %v1196
    %v2101 = vpack.c.b16 %v1213, %v1205
    %v2102 = vpack.c.b16 %v1214, %v1206
    %v2103 = vpack.c.b16 %v1215, %v1207
    %v2104 = vpack.c.b16 %v1216, %v1208
    %v2105 = vpack.c.b16 %v1217, %v1209
    %v2106 = vpack.c.b16 %v1218, %v1210
    %v2107 = vpack.c.b16 %v1219, %v1211
    %v2108 = vpack.c.b16 %v1220, %v1212
    %v2109 = vpack.c.b16 %v1229, %v1221
    %v2110 = vpack.c.b16 %v1230, %v1222
    %v2111 = vpack.c.b16 %v1231, %v1223
    %v2112 = vpack.c.b16 %v1232, %v1224
    %v2113 = vpack.c.b16 %v1233, %v1225
    %v2114 = vpack.c.b16 %v1234, %v1226
    %v2115 = vpack.c.b16 %v1235, %v1227
    %v2116 = vpack.c.b16 %v1236, %v1228
    %v2117 = vpack.c.b16 %v1245, %v1237
    %v2118 = vpack.c.b16 %v1246, %v1238
    %v2119 = vpack.c.b16 %v1247, %v1239
    %v2120 = vpack.c.b16 %v1248, %v1240
    %v2121 = vpack.c.b16 %v1249, %v1241
    %v2122 = vpack.c.b16 %v1250, %v1242
    %v2123 = vpack.c.b16 %v1251, %v1243
    %v2124 = vpack.c.b16 %v1252, %v1244
    %v2125 = vpack.c.b16 %v1261, %v1253
    %v2126 = vpack.c.b16 %v1262, %v1254
    %v2127 = vpack.c.b16 %v1263, %v1255
    %v2128 = vpack.c.b16 %v1264, %v1256
    %v2129 = vpack.c.b16 %v1265, %v1257
    %v2130 = vpack.c.b16 %v1266, %v1258
    %v2131 = vpack.c.b16 %v1267, %v1259
    %v2132 = vpack.c.b16 %v1268, %v1260
    %v2133 = vpack.c.b16 %v1277, %v1269
    %v2134 = vpack.c.b16 %v1278, %v1270
    %v2135 = vpack.c.b16 %v1279, %v1271
    %v2136 = vpack.c.b16 %v1280, %v1272
    %v2137 = vpack.c.b16 %v1281, %v1273
    %v2138 = vpack.c.b16 %v1282, %v1274
    %v2139 = vpack.c.b16 %v1283, %v1275
    %v2140 = vpack.c.b16 %v1284, %v1276
    %v2141 = vpack.c.b16 %v1293, %v1285
    %v2142 = vpack.c.b16 %v1294, %v1286
    %v2143 = vpack.c.b16 %v1295, %v1287
    %v2144 = vpack.c.b16 %v1296, %v1288
    %v2145 = vpack.c.b16 %v1297, %v1289
    %v2146 = vpack.c.b16 %v1298, %v1290
    %v2147 = vpack.c.b16 %v1299, %v1291
    %v2148 = vpack.c.b16 %v1300, %v1292
    %v2149 = vpack.c.b16 %v1309, %v1301
    %v2150 = vpack.c.b16 %v1310, %v1302
    %v2151 = vpack.c.b16 %v1311, %v1303
    %v2152 = vpack.c.b16 %v1312, %v1304
    %v2153 = vpack.c.b16 %v1313, %v1305
    %v2154 = vpack.c.b16 %v1314, %v1306
    %v2155 = vpack.c.b16 %v1315, %v1307
    %v2156 = vpack.c.b16 %v1316, %v1308
    %v2157 = vpack.c.b16 %v1325, %v1317
    %v2158 = vpack.c.b16 %v1326, %v1318
    %v2159 = vpack.c.b16 %v1327, %v1319
    %v2160 = vpack.c.b16 %v1328, %v1320
    %v2161 = vpack.c.b16 %v1329, %v1321
    %v2162 = vpack.c.b16 %v1330, %v1322
    %v2163 = vpack.c.b16 %v1331, %v1323
    %v2164 = vpack.c.b16 %v1332, %v1324
    %v2165 = vpack.c.b16 %v1341, %v1333
    %v2166 = vpack.c.b16 %v1342, %v1334
    %v2167 = vpack.c.b16 %v1343, %v1335
    %v2168 = vpack.c.b16 %v1344, %v1336
    %v2169 = vpack.c.b16 %v1345, %v1337
    %v2170 = vpack.c.b16 %v1346, %v1338
    %v2171 = vpack.c.b16 %v1347, %v1339
    %v2172 = vpack.c.b16 %v1348, %v1340
    %v2173 = vpack.c.b16 %v1357, %v1349
    %v2174 = vpack.c.b16 %v1358, %v1350
    %v2175 = vpack.c.b16 %v1359, %v1351
    %v2176 = vpack.c.b16 %v1360, %v1352
    %v2177 = vpack.c.b16 %v1361, %v1353
    %v2178 = vpack.c.b16 %v1362, %v1354
    %v2179 = vpack.c.b16 %v1363, %v1355
    %v2180 = vpack.c.b16 %v1364, %v1356
    %v2181 = vpack.c.b16 %v1373, %v1365
    %v2182 = vpack.c.b16 %v1374, %v1366
    %v2183 = vpack.c.b16 %v1375, %v1367
    %v2184 = vpack.c.b16 %v1376, %v1368
    %v2185 = vpack.c.b16 %v1377, %v1369
    %v2186 = vpack.c.b16 %v1378, %v1370
    %v2187 = vpack.c.b16 %v1379, %v1371
    %v2188 = vpack.c.b16 %v1380, %v1372
    %v2189 = vpack.c.b16 %v1389, %v1381
    %v2190 = vpack.c.b16 %v1390, %v1382
    %v2191 = vpack.c.b16 %v1391, %v1383
    %v2192 = vpack.c.b16 %v1392, %v1384
    %v2193 = vpack.c.b16 %v1393, %v1385
    %v2194 = vpack.c.b16 %v1394, %v1386
    %v2195 = vpack.c.b16 %v1395, %v1387
    %v2196 = vpack.c.b16 %v1396, %v1388
    %v2197 = vpack.c.b16 %v1405, %v1397
    %v2198 = vpack.c.b16 %v1406, %v1398
    %v2199 = vpack.c.b16 %v1407, %v1399
    %v2200 = vpack.c.b16 %v1408, %v1400
    %v2201 = vpack.c.b16 %v1409, %v1401
    %v2202 = vpack.c.b16 %v1410, %v1402
    %v2203 = vpack.c.b16 %v1411, %v1403
    %v2204 = vpack.c.b16 %v1412, %v1404
    %v2205 = vpack.c.b16 %v1421, %v1413
    %v2206 = vpack.c.b16 %v1422, %v1414
    %v2207 = vpack.c.b16 %v1423, %v1415
    %v2208 = vpack.c.b16 %v1424, %v1416
    %v2209 = vpack.c.b16 %v1425, %v1417
    %v2210 = vpack.c.b16 %v1426, %v1418
    %v2211 = vpack.c.b16 %v1427, %v1419
    %v2212 = vpack.c.b16 %v1428, %v1420
    %v2213 = vpack.c.b16 %v1437, %v1429
    %v2214 = vpack.c.b16 %v1438, %v1430
    %v2215 = vpack.c.b16 %v1439, %v1431
    %v2216 = vpack.c.b16 %v1440, %v1432
    %v2217 = vpack.c.b16 %v1441, %v1433
    %v2218 = vpack.c.b16 %v1442, %v1434
    %v2219 = vpack.c.b16 %v1443, %v1435
    %v2220 = vpack.c.b16 %v1444, %v1436
    %v2221 = vpack.c.b16 %v1453, %v1445
    %v2222 = vpack.c.b16 %v1454, %v1446
    %v2223 = vpack.c.b16 %v1455, %v1447
    %v2224 = vpack.c.b16 %v1456, %v1448
    %v2225 = vpack.c.b16 %v1457, %v1449
    %v2226 = vpack.c.b16 %v1458, %v1450
    %v2227 = vpack.c.b16 %v1459, %v1451
    %v2228 = vpack.c.b16 %v1460, %v1452
    %v2229 = vpack.c.b16 %v1469, %v1461
    %v2230 = vpack.c.b16 %v1470, %v1462
    %v2231 = vpack.c.b16 %v1471, %v1463
    %v2232 = vpack.c.b16 %v1472, %v1464
    %v2233 = vpack.c.b16 %v1473, %v1465
    %v2234 = vpack.c.b16 %v1474, %v1466
    %v2235 = vpack.c.b16 %v1475, %v1467
    %v2236 = vpack.c.b16 %v1476, %v1468
    %v2237 = vpack.c.b16 %v1485, %v1477
    %v2238 = vpack.c.b16 %v1486, %v1478
    %v2239 = vpack.c.b16 %v1487, %v1479
    %v2240 = vpack.c.b16 %v1488, %v1480
    %v2241 = vpack.c.b16 %v1489, %v1481
    %v2242 = vpack.c.b16 %v1490, %v1482
    %v2243 = vpack.c.b16 %v1491, %v1483
    %v2244 = vpack.c.b16 %v1492, %v1484
    %v2245 = vpack.c.b16 %v1501, %v1493
    %v2246 = vpack.c.b16 %v1502, %v1494
    %v2247 = vpack.c.b16 %v1503, %v1495
    %v2248 = vpack.c.b16 %v1504, %v1496
    %v2249 = vpack.c.b16 %v1505, %v1497
    %v2250 = vpack.c.b16 %v1506, %v1498
    %v2251 = vpack.c.b16 %v1507, %v1499
    %v2252 = vpack.c.b16 %v1508, %v1500
    %v2253 = vpack.c.b16 %v1517, %v1509
    %v2254 = vpack.c.b16 %v1518, %v1510
    %v2255 = vpack.c.b16 %v1519, %v1511
    %v2256 = vpack.c.b16 %v1520, %v1512
    %v2257 = vpack.c.b16 %v1521, %v1513
    %v2258 = vpack.c.b16 %v1522, %v1514
    %v2259 = vpack.c.b16 %v1523, %v1515
    %v2260 = vpack.c.b16 %v1524, %v1516
    %v2261 = vpack.c.b16 %v1533, %v1525
    %v2262 = vpack.c.b16 %v1534, %v1526
    %v2263 = vpack.c.b16 %v1535, %v1527
    %v2264 = vpack.c.b16 %v1536, %v1528
    %v2265 = vpack.c.b16 %v1537, %v1529
    %v2266 = vpack.c.b16 %v1538, %v1530
    %v2267 = vpack.c.b16 %v1539, %v1531
    %v2268 = vpack.c.b16 %v1540, %v1532
    %v2269 = vpack.c.b16 %v1549, %v1541
    %v2270 = vpack.c.b16 %v1550, %v1542
    %v2271 = vpack.c.b16 %v1551, %v1543
    %v2272 = vpack.c.b16 %v1552, %v1544
    %v2273 = vpack.c.b16 %v1553, %v1545
    %v2274 = vpack.c.b16 %v1554, %v1546
    %v2275 = vpack.c.b16 %v1555, %v1547
    %v2276 = vpack.c.b16 %v1556, %v1548
    %v2277 = vpack.c.b16 %v1565, %v1557
    %v2278 = vpack.c.b16 %v1566, %v1558
    %v2279 = vpack.c.b16 %v1567, %v1559
    %v2280 = vpack.c.b16 %v1568, %v1560
    %v2281 = vpack.c.b16 %v1569, %v1561
    %v2282 = vpack.c.b16 %v1570, %v1562
    %v2283 = vpack.c.b16 %v1571, %v1563
    %v2284 = vpack.c.b16 %v1572, %v1564
    %v2285 = vpack.c.b16 %v1581, %v1573
    %v2286 = vpack.c.b16 %v1582, %v1574
    %v2287 = vpack.c.b16 %v1583, %v1575
    %v2288 = vpack.c.b16 %v1584, %v1576
    %v2289 = vpack.c.b16 %v1585, %v1577
    %v2290 = vpack.c.b16 %v1586, %v1578
    %v2291 = vpack.c.b16 %v1587, %v1579
    %v2292 = vpack.c.b16 %v1588, %v1580
    %v2293 = vpack.c.b16 %v1597, %v1589
    %v2294 = vpack.c.b16 %v1598, %v1590
    %v2295 = vpack.c.b16 %v1599, %v1591
    %v2296 = vpack.c.b16 %v1600, %v1592
    %v2297 = vpack.c.b16 %v1601, %v1593
    %v2298 = vpack.c.b16 %v1602, %v1594
    %v2299 = vpack.c.b16 %v1603, %v1595
    %v2300 = vpack.c.b16 %v1604, %v1596
    %v2301 = vpack.c.b16 %v1613, %v1605
    %v2302 = vpack.c.b16 %v1614, %v1606
    %v2303 = vpack.c.b16 %v1615, %v1607
    %v2304 = vpack.c.b16 %v1616, %v1608
    %v2305 = vpack.c.b16 %v1617, %v1609
    %v2306 = vpack.c.b16 %v1618, %v1610
    %v2307 = vpack.c.b16 %v1619, %v1611
    %v2308 = vpack.c.b16 %v1620, %v1612
    %v2309 = vpack.c.b16 %v1629, %v1621
    %v2310 = vpack.c.b16 %v1630, %v1622
    %v2311 = vpack.c.b16 %v1631, %v1623
    %v2312 = vpack.c.b16 %v1632, %v1624
    %v2313 = vpack.c.b16 %v1633, %v1625
    %v2314 = vpack.c.b16 %v1634, %v1626
    %v2315 = vpack.c.b16 %v1635, %v1627
    %v2316 = vpack.c.b16 %v1636, %v1628
    %v2317 = vpack.c.b16 %v1645, %v1637
    %v2318 = vpack.c.b16 %v1646, %v1638
    %v2319 = vpack.c.b16 %v1647, %v1639
    %v2320 = vpack.c.b16 %v1648, %v1640
    %v2321 = vpack.c.b16 %v1649, %v1641
    %v2322 = vpack.c.b16 %v1650, %v1642
    %v2323 = vpack.c.b16 %v1651, %v1643
    %v2324 = vpack.c.b16 %v1652, %v1644
    %v2325 = vpack.c.b16 %v1661, %v1653
    %v2326 = vpack.c.b16 %v1662, %v1654
    %v2327 = vpack.c.b16 %v1663, %v1655
    %v2328 = vpack.c.b16 %v1664, %v1656
    %v2329 = vpack.c.b16 %v1665, %v1657
    %v2330 = vpack.c.b16 %v1666, %v1658
    %v2331 = vpack.c.b16 %v1667, %v1659
    %v2332 = vpack.c.b16 %v1668, %v1660
    %v2333 = vpack.c.b16 %v1677, %v1669
    %v2334 = vpack.c.b16 %v1678, %v1670
    %v2335 = vpack.c.b16 %v1679, %v1671
    %v2336 = vpack.c.b16 %v1680, %v1672
    %v2337 = vpack.c.b16 %v1681, %v1673
    %v2338 = vpack.c.b16 %v1682, %v1674
    %v2339 = vpack.c.b16 %v1683, %v1675
    %v2340 = vpack.c.b16 %v1684, %v1676
    %v2341 = vpack.c.b16 %v1693, %v1685
    %v2342 = vpack.c.b16 %v1694, %v1686
    %v2343 = vpack.c.b16 %v1695, %v1687
    %v2344 = vpack.c.b16 %v1696, %v1688
    %v2345 = vpack.c.b16 %v1697, %v1689
    %v2346 = vpack.c.b16 %v1698, %v1690
    %v2347 = vpack.c.b16 %v1699, %v1691
    %v2348 = vpack.c.b16 %v1700, %v1692
    %v2349 = vpack.c.b16 %v1709, %v1701
    %v2350 = vpack.c.b16 %v1710, %v1702
    %v2351 = vpack.c.b16 %v1711, %v1703
    %v2352 = vpack.c.b16 %v1712, %v1704
    %v2353 = vpack.c.b16 %v1713, %v1705
    %v2354 = vpack.c.b16 %v1714, %v1706
    %v2355 = vpack.c.b16 %v1715, %v1707
    %v2356 = vpack.c.b16 %v1716, %v1708
    %v2357 = vpack.c.b16 %v1725, %v1717
    %v2358 = vpack.c.b16 %v1726, %v1718
    %v2359 = vpack.c.b16 %v1727, %v1719
    %v2360 = vpack.c.b16 %v1728, %v1720
    %v2361 = vpack.c.b16 %v1729, %v1721
    %v2362 = vpack.c.b16 %v1730, %v1722
    %v2363 = vpack.c.b16 %v1731, %v1723
    %v2364 = vpack.c.b16 %v1732, %v1724
    %v2365 = vpack.c.b16 %v1741, %v1733
    %v2366 = vpack.c.b16 %v1742, %v1734
    %v2367 = vpack.c.b16 %v1743, %v1735
    %v2368 = vpack.c.b16 %v1744, %v1736
    %v2369 = vpack.c.b16 %v1745, %v1737
    %v2370 = vpack.c.b16 %v1746, %v1738
    %v2371 = vpack.c.b16 %v1747, %v1739
    %v2372 = vpack.c.b16 %v1748, %v1740
    %v2373 = vpack.c.b16 %v1757, %v1749
    %v2374 = vpack.c.b16 %v1758, %v1750
    %v2375 = vpack.c.b16 %v1759, %v1751
    %v2376 = vpack.c.b16 %v1760, %v1752
    %v2377 = vpack.c.b16 %v1761, %v1753
    %v2378 = vpack.c.b16 %v1762, %v1754
    %v2379 = vpack.c.b16 %v1763, %v1755
    %v2380 = vpack.c.b16 %v1764, %v1756
    %v2381 = vpack.c.b16 %v1773, %v1765
    %v2382 = vpack.c.b16 %v1774, %v1766
    %v2383 = vpack.c.b16 %v1775, %v1767
    %v2384 = vpack.c.b16 %v1776, %v1768
    %v2385 = vpack.c.b16 %v1777, %v1769
    %v2386 = vpack.c.b16 %v1778, %v1770
    %v2387 = vpack.c.b16 %v1779, %v1771
    %v2388 = vpack.c.b16 %v1780, %v1772
    %v2389 = vpack.c.b16 %v1789, %v1781
    %v2390 = vpack.c.b16 %v1790, %v1782
    %v2391 = vpack.c.b16 %v1791, %v1783
    %v2392 = vpack.c.b16 %v1792, %v1784
    %v2393 = vpack.c.b16 %v1793, %v1785
    %v2394 = vpack.c.b16 %v1794, %v1786
    %v2395 = vpack.c.b16 %v1795, %v1787
    %v2396 = vpack.c.b16 %v1796, %v1788
    %v2397 = vpack.c.b16 %v1805, %v1797
    %v2398 = vpack.c.b16 %v1806, %v1798
    %v2399 = vpack.c.b16 %v1807, %v1799
    %v2400 = vpack.c.b16 %v1808, %v1800
    %v2401 = vpack.c.b16 %v1809, %v1801
    %v2402 = vpack.c.b16 %v1810, %v1802
    %v2403 = vpack.c.b16 %v1811, %v1803
    %v2404 = vpack.c.b16 %v1812, %v1804
    %v2405 = vpack.c.b16 %v1821, %v1813
    %v2406 = vpack.c.b16 %v1822, %v1814
    %v2407 = vpack.c.b16 %v1823, %v1815
    %v2408 = vpack.c.b16 %v1824, %v1816
    %v2409 = vpack.c.b16 %v1825, %v1817
    %v2410 = vpack.c.b16 %v1826, %v1818
    %v2411 = vpack.c.b16 %v1827, %v1819
    %v2412 = vpack.c.b16 %v1828, %v1820
    %v2413 = vpack.c.b16 %v1837, %v1829
    %v2414 = vpack.c.b16 %v1838, %v1830
    %v2415 = vpack.c.b16 %v1839, %v1831
    %v2416 = vpack.c.b16 %v1840, %v1832
    %v2417 = vpack.c.b16 %v1841, %v1833
    %v2418 = vpack.c.b16 %v1842, %v1834
    %v2419 = vpack.c.b16 %v1843, %v1835
    %v2420 = vpack.c.b16 %v1844, %v1836
    %v2421 = vpack.c.b16 %v1853, %v1845
    %v2422 = vpack.c.b16 %v1854, %v1846
    %v2423 = vpack.c.b16 %v1855, %v1847
    %v2424 = vpack.c.b16 %v1856, %v1848
    %v2425 = vpack.c.b16 %v1857, %v1849
    %v2426 = vpack.c.b16 %v1858, %v1850
    %v2427 = vpack.c.b16 %v1859, %v1851
    %v2428 = vpack.c.b16 %v1860, %v1852
    %v2429 = vpack.c.b16 %v1869, %v1861
    %v2430 = vpack.c.b16 %v1870, %v1862
    %v2431 = vpack.c.b16 %v1871, %v1863
    %v2432 = vpack.c.b16 %v1872, %v1864
    %v2433 = vpack.c.b16 %v1873, %v1865
    %v2434 = vpack.c.b16 %v1874, %v1866
    %v2435 = vpack.c.b16 %v1875, %v1867
    %v2436 = vpack.c.b16 %v1876, %v1868
    %v2437 = vpack.c.b16 %v1885, %v1877
    %v2438 = vpack.c.b16 %v1886, %v1878
    %v2439 = vpack.c.b16 %v1887, %v1879
    %v2440 = vpack.c.b16 %v1888, %v1880
    %v2441 = vpack.c.b16 %v1889, %v1881
    %v2442 = vpack.c.b16 %v1890, %v1882
    %v2443 = vpack.c.b16 %v1891, %v1883
    %v2444 = vpack.c.b16 %v1892, %v1884
    %v2445 = vpack.c.b16 %v1901, %v1893
    %v2446 = vpack.c.b16 %v1902, %v1894
    %v2447 = vpack.c.b16 %v1903, %v1895
    %v2448 = vpack.c.b16 %v1904, %v1896
    %v2449 = vpack.c.b16 %v1905, %v1897
    %v2450 = vpack.c.b16 %v1906, %v1898
    %v2451 = vpack.c.b16 %v1907, %v1899
    %v2452 = vpack.c.b16 %v1908, %v1900
    %v2453 = vpack.c.b16 %v1917, %v1909
    %v2454 = vpack.c.b16 %v1918, %v1910
    %v2455 = vpack.c.b16 %v1919, %v1911
    %v2456 = vpack.c.b16 %v1920, %v1912
    %v2457 = vpack.c.b16 %v1921, %v1913
    %v2458 = vpack.c.b16 %v1922, %v1914
    %v2459 = vpack.c.b16 %v1923, %v1915
    %v2460 = vpack.c.b16 %v1924, %v1916
    %v2461 = vpack.c.b16 %v1933, %v1925
    %v2462 = vpack.c.b16 %v1934, %v1926
    %v2463 = vpack.c.b16 %v1935, %v1927
    %v2464 = vpack.c.b16 %v1936, %v1928
    %v2465 = vpack.c.b16 %v1937, %v1929
    %v2466 = vpack.c.b16 %v1938, %v1930
    %v2467 = vpack.c.b16 %v1939, %v1931
    %v2468 = vpack.c.b16 %v1940, %v1932
    %v2469 = vpack.c.b16 %v1949, %v1941
    %v2470 = vpack.c.b16 %v1950, %v1942
    %v2471 = vpack.c.b16 %v1951, %v1943
    %v2472 = vpack.c.b16 %v1952, %v1944
    %v2473 = vpack.c.b16 %v1953, %v1945
    %v2474 = vpack.c.b16 %v1954, %v1946
    %v2475 = vpack.c.b16 %v1955, %v1947
    %v2476 = vpack.c.b16 %v1956, %v1948
    %v2477 = vpack.c.b16 %v1965, %v1957
    %v2478 = vpack.c.b16 %v1966, %v1958
    %v2479 = vpack.c.b16 %v1967, %v1959
    %v2480 = vpack.c.b16 %v1968, %v1960
    %v2481 = vpack.c.b16 %v1969, %v1961
    %v2482 = vpack.c.b16 %v1970, %v1962
    %v2483 = vpack.c.b16 %v1971, %v1963
    %v2484 = vpack.c.b16 %v1972, %v1964
    %v2485 = vpack.c.b16 %v1981, %v1973
    %v2486 = vpack.c.b16 %v1982, %v1974
    %v2487 = vpack.c.b16 %v1983, %v1975
    %v2488 = vpack.c.b16 %v1984, %v1976
    %v2489 = vpack.c.b16 %v1985, %v1977
    %v2490 = vpack.c.b16 %v1986, %v1978
    %v2491 = vpack.c.b16 %v1987, %v1979
    %v2492 = vpack.c.b16 %v1988, %v1980
    %v2493 = vpack.c.b16 %v1997, %v1989
    %v2494 = vpack.c.b16 %v1998, %v1990
    %v2495 = vpack.c.b16 %v1999, %v1991
    %v2496 = vpack.c.b16 %v2000, %v1992
    %v2497 = vpack.c.b16 %v2001, %v1993
    %v2498 = vpack.c.b16 %v2002, %v1994
    %v2499 = vpack.c.b16 %v2003, %v1995
    %v2500 = vpack.c.b16 %v2004, %v1996
    %v2501 = vpack.c.b16 %v2013, %v2005
    %v2502 = vpack.c.b16 %v2014, %v2006
    %v2503 = vpack.c.b16 %v2015, %v2007
    %v2504 = vpack.c.b16 %v2016, %v2008
    %v2505 = vpack.c.b16 %v2017, %v2009
    %v2506 = vpack.c.b16 %v2018, %v2010
    %v2507 = vpack.c.b16 %v2019, %v2011
    %v2508 = vpack.c.b16 %v2020, %v2012
    %v2509 = vpack.c.b16 %v2029, %v2021
    %v2510 = vpack.c.b16 %v2030, %v2022
    %v2511 = vpack.c.b16 %v2031, %v2023
    %v2512 = vpack.c.b16 %v2032, %v2024
    %v2513 = vpack.c.b16 %v2033, %v2025
    %v2514 = vpack.c.b16 %v2034, %v2026
    %v2515 = vpack.c.b16 %v2035, %v2027
    %v2516 = vpack.c.b16 %v2036, %v2028
    %v2517 = vpack.c.b16 %v2045, %v2037
    %v2518 = vpack.c.b16 %v2046, %v2038
    %v2519 = vpack.c.b16 %v2047, %v2039
    %v2520 = vpack.c.b16 %v2048, %v2040
    %v2521 = vpack.c.b16 %v2049, %v2041
    %v2522 = vpack.c.b16 %v2050, %v2042
    %v2523 = vpack.c.b16 %v2051, %v2043
    %v2524 = vpack.c.b16 %v2052, %v2044
    %v2525 = vpack.c.b16 %v2061, %v2053
    %v2526 = vpack.c.b16 %v2062, %v2054
    %v2527 = vpack.c.b16 %v2063, %v2055
    %v2528 = vpack.c.b16 %v2064, %v2056
    %v2529 = vpack.c.b16 %v2065, %v2057
    %v2530 = vpack.c.b16 %v2066, %v2058
    %v2531 = vpack.c.b16 %v2067, %v2059
    %v2532 = vpack.c.b16 %v2068, %v2060
    %v2533 = vpack.c.b16 %v2077, %v2069
    %v2534 = vpack.c.b16 %v2078, %v2070
    %v2535 = vpack.c.b16 %v2079, %v2071
    %v2536 = vpack.c.b16 %v2080, %v2072
    %v2537 = vpack.c.b16 %v2081, %v2073
    %v2538 = vpack.c.b16 %v2082, %v2074
    %v2539 = vpack.c.b16 %v2083, %v2075
    %v2540 = vpack.c.b16 %v2084, %v2076
    %v2541 = vpack.c.b16 %v2085, %v2085
    %v2542 = vpack.c.b16 %v2086, %v2086
    %v2543 = vpack.c.b16 %v2087, %v2087
    %v2544 = vpack.c.b16 %v2088, %v2088
    %v2545 = vpack.c.b16 %v2089, %v2089
    %v2546 = vpack.c.b16 %v2090, %v2090
    %v2547 = vpack.c.b16 %v2091, %v2091
    %v2548 = vpack.c.b16 %v2092, %v2092
    %vm2997 = vcmask 31744
    %v2999 = vsel %vm2997, %v684, 0
    %v3002 = vsel %vm2997, %v692, 0
    %v3005 = vsel %vm2997, %v700, 0
    %v3008 = vsel %vm2997, %v708, 0
    %vm3010 = vcmask 1041408
    %v3012 = vsel %vm3010, %v2541, 0
    %v3015 = vsel %vm3010, %v2542, 0
    %v3018 = vsel %vm3010, %v2543, 0
    %v3021 = vsel %vm3010, %v2544, 0
    %v3024 = vsel %vm3010, %v2545, 0
    %v3027 = vsel %vm3010, %v2546, 0
    %v3030 = vsel %vm3010, %v2547, 0
    %v3033 = vsel %vm3010, %v2548, 0
    %3035 = vmatprep.subr.bf16.mxu0 %v2094
    %3036 = vmatpush1.bf16.msra.mxu0 %v2093
    %3037 = vmatprep.subr.bf16.mxu0 %v2102
    %3038 = vmatpush1.bf16.msra.mxu0 %v2101
    %3039 = vmatprep.subr.bf16.mxu0 %v2110
    %3040 = vmatpush1.bf16.msra.mxu0 %v2109
    %3041 = vmatprep.subr.bf16.mxu0 %v2118
    %3042 = vmatpush1.bf16.msra.mxu0 %v2117
    %3043 = vmatprep.subr.bf16.mxu0 %v2126
    %3044 = vmatpush1.bf16.msra.mxu0 %v2125
    %3045 = vmatprep.subr.bf16.mxu0 %v2134
    %3046 = vmatpush1.bf16.msra.mxu0 %v2133
    %3047 = vmatprep.subr.bf16.mxu0 %v2142
    %3048 = vmatpush1.bf16.msra.mxu0 %v2141
    %3049 = vmatprep.subr.bf16.mxu0 %v2150
    %3050 = vmatpush1.bf16.msra.mxu0 %v2149
    %3051 = vmatprep.subr.bf16.mxu0 %v2158
    %3052 = vmatpush1.bf16.msra.mxu0 %v2157
    %3053 = vmatprep.subr.bf16.mxu0 %v2166
    %3054 = vmatpush1.bf16.msra.mxu0 %v2165
    %3055 = vmatprep.subr.bf16.mxu0 %v2174
    %3056 = vmatpush1.bf16.msra.mxu0 %v2173
    %3057 = vmatprep.subr.bf16.mxu0 %v2182
    %3058 = vmatpush1.bf16.msra.mxu0 %v2181
    %3059 = vmatprep.subr.bf16.mxu0 %v2190
    %3060 = vmatpush1.bf16.msra.mxu0 %v2189
    %3061 = vmatprep.subr.bf16.mxu0 %v2198
    %3062 = vmatpush1.bf16.msra.mxu0 %v2197
    %3063 = vmatprep.subr.bf16.mxu0 %v2206
    %3064 = vmatpush1.bf16.msra.mxu0 %v2205
    %3065 = vmatprep.subr.bf16.mxu0 %v2214
    %3066 = vmatpush1.bf16.msra.mxu0 %v2213
    %3067 = vmatprep.mubr.bf16.mxu0 %v678
    %3068 = vmatmul.mubr.bf16.gmra.mrb[0].mxu0 %v677
    %v3069 = vpop.f32.mrb[0].mxu0
    %v3070 = vadd.f32 %v544, %v3069
    %v3071 = vpop.f32.mrb[0].mxu0
    %v3072 = vadd.f32 %v548, %v3071
    %v3073 = vpop.f32.mrb[0].mxu0
    %v3074 = vadd.f32 %v544, %v3073
    %v3075 = vpop.f32.mrb[0].mxu0
    %v3076 = vadd.f32 %v548, %v3075
    %3077 = vmatprep.mubr.bf16.mxu0 %v686
    %3078 = vmatmul.mubr.bf16.gmra.mrb[0].mxu0 %v685
    %v3079 = vpop.f32.mrb[0].mxu0
    %v3080 = vadd.f32 %v544, %v3079
    %v3081 = vpop.f32.mrb[0].mxu0
    %v3082 = vadd.f32 %v548, %v3081
    %v3083 = vpop.f32.mrb[0].mxu0
    %v3084 = vadd.f32 %v544, %v3083
    %v3085 = vpop.f32.mrb[0].mxu0
    %v3086 = vadd.f32 %v548, %v3085
    %3087 = vmatprep.mubr.bf16.mxu0 %v694
    %3088 = vmatmul.mubr.bf16.gmra.mrb[0].mxu0 %v693
    %v3089 = vpop.f32.mrb[0].mxu0
    %v3090 = vadd.f32 %v544, %v3089
    %v3091 = vpop.f32.mrb[0].mxu0
    %v3092 = vadd.f32 %v548, %v3091
    %v3093 = vpop.f32.mrb[0].mxu0
    %v3094 = vadd.f32 %v544, %v3093
    %v3095 = vpop.f32.mrb[0].mxu0
    %v3096 = vadd.f32 %v548, %v3095
    %3097 = vmatprep.mubr.bf16.mxu0 %v702
    %3098 = vmatmul.mubr.bf16.gmra.mrb[0].mxu0 %v701
    %v3099 = vpop.f32.mrb[0].mxu0
    %v3100 = vadd.f32 %v544, %v3099
    %v3101 = vpop.f32.mrb[0].mxu0
    %v3102 = vadd.f32 %v548, %v3101
    %v3103 = vpop.f32.mrb[0].mxu0
    %v3104 = vadd.f32 %v544, %v3103
    %v3105 = vpop.f32.mrb[0].mxu0
    %v3106 = vadd.f32 %v548, %v3105
    %3107 = vdwg.mxu0
    %3108 = vmatprep.subr.bf16.mxu0 %v2222
    %3109 = vmatpush1.bf16.msra.mxu0 %v2221
    %3110 = vmatprep.subr.bf16.mxu0 %v2230
    %3111 = vmatpush1.bf16.msra.mxu0 %v2229
    %3112 = vmatprep.subr.bf16.mxu0 %v2238
    %3113 = vmatpush1.bf16.msra.mxu0 %v2237
    %3114 = vmatprep.subr.bf16.mxu0 %v2246
    %3115 = vmatpush1.bf16.msra.mxu0 %v2245
    %3116 = vmatprep.subr.bf16.mxu0 %v2254
    %3117 = vmatpush1.bf16.msra.mxu0 %v2253
    %3118 = vmatprep.subr.bf16.mxu0 %v2262
    %3119 = vmatpush1.bf16.msra.mxu0 %v2261
    %3120 = vmatprep.subr.bf16.mxu0 %v2270
    %3121 = vmatpush1.bf16.msra.mxu0 %v2269
    %3122 = vmatprep.subr.bf16.mxu0 %v2278
    %3123 = vmatpush1.bf16.msra.mxu0 %v2277
    %3124 = vmatprep.subr.bf16.mxu0 %v2286
    %3125 = vmatpush1.bf16.msra.mxu0 %v2285
    %3126 = vmatprep.subr.bf16.mxu0 %v2294
    %3127 = vmatpush1.bf16.msra.mxu0 %v2293
    %3128 = vmatprep.subr.bf16.mxu0 %v2302
    %3129 = vmatpush1.bf16.msra.mxu0 %v2301
    %3130 = vmatprep.subr.bf16.mxu0 %v2310
    %3131 = vmatpush1.bf16.msra.mxu0 %v2309
    %3132 = vmatprep.subr.bf16.mxu0 %v2318
    %3133 = vmatpush1.bf16.msra.mxu0 %v2317
    %3134 = vmatprep.subr.bf16.mxu0 %v2326
    %3135 = vmatpush1.bf16.msra.mxu0 %v2325
    %3136 = vmatprep.subr.bf16.mxu0 %v2334
    %3137 = vmatpush1.bf16.msra.mxu0 %v2333
    %3138 = vmatprep.subr.bf16.mxu0 %v2342
    %3139 = vmatpush1.bf16.msra.mxu0 %v2341
    %3140 = vmatprep.mubr.bf16.mxu0 %v680
    %3141 = vmatmul.mubr.bf16.gmra.mrb[0].mxu0 %v679
    %v3142 = vpop.f32.mrb[0].mxu0
    %v3143 = vadd.f32 %v3070, %v3142
    %v3144 = vpop.f32.mrb[0].mxu0
    %v3145 = vadd.f32 %v3072, %v3144
    %v3146 = vpop.f32.mrb[0].mxu0
    %v3147 = vadd.f32 %v3074, %v3146
    %v3148 = vpop.f32.mrb[0].mxu0
    %v3149 = vadd.f32 %v3076, %v3148
    %3150 = vmatprep.mubr.bf16.mxu0 %v688
    %3151 = vmatmul.mubr.bf16.gmra.mrb[0].mxu0 %v687
    %v3152 = vpop.f32.mrb[0].mxu0
    %v3153 = vadd.f32 %v3080, %v3152
    %v3154 = vpop.f32.mrb[0].mxu0
    %v3155 = vadd.f32 %v3082, %v3154
    %v3156 = vpop.f32.mrb[0].mxu0
    %v3157 = vadd.f32 %v3084, %v3156
    %v3158 = vpop.f32.mrb[0].mxu0
    %v3159 = vadd.f32 %v3086, %v3158
    %3160 = vmatprep.mubr.bf16.mxu0 %v696
    %3161 = vmatmul.mubr.bf16.gmra.mrb[0].mxu0 %v695
    %v3162 = vpop.f32.mrb[0].mxu0
    %v3163 = vadd.f32 %v3090, %v3162
    %v3164 = vpop.f32.mrb[0].mxu0
    %v3165 = vadd.f32 %v3092, %v3164
    %v3166 = vpop.f32.mrb[0].mxu0
    %v3167 = vadd.f32 %v3094, %v3166
    %v3168 = vpop.f32.mrb[0].mxu0
    %v3169 = vadd.f32 %v3096, %v3168
    %3170 = vmatprep.mubr.bf16.mxu0 %v704
    %3171 = vmatmul.mubr.bf16.gmra.mrb[0].mxu0 %v703
    %v3172 = vpop.f32.mrb[0].mxu0
    %v3173 = vadd.f32 %v3100, %v3172
    %v3174 = vpop.f32.mrb[0].mxu0
    %v3175 = vadd.f32 %v3102, %v3174
    %v3176 = vpop.f32.mrb[0].mxu0
    %v3177 = vadd.f32 %v3104, %v3176
    %v3178 = vpop.f32.mrb[0].mxu0
    %v3179 = vadd.f32 %v3106, %v3178
    %3180 = vdwg.mxu0
    %3181 = vmatprep.subr.bf16.mxu0 %v2350
    %3182 = vmatpush1.bf16.msra.mxu0 %v2349
    %3183 = vmatprep.subr.bf16.mxu0 %v2358
    %3184 = vmatpush1.bf16.msra.mxu0 %v2357
    %3185 = vmatprep.subr.bf16.mxu0 %v2366
    %3186 = vmatpush1.bf16.msra.mxu0 %v2365
    %3187 = vmatprep.subr.bf16.mxu0 %v2374
    %3188 = vmatpush1.bf16.msra.mxu0 %v2373
    %3189 = vmatprep.subr.bf16.mxu0 %v2382
    %3190 = vmatpush1.bf16.msra.mxu0 %v2381
    %3191 = vmatprep.subr.bf16.mxu0 %v2390
    %3192 = vmatpush1.bf16.msra.mxu0 %v2389
    %3193 = vmatprep.subr.bf16.mxu0 %v2398
    %3194 = vmatpush1.bf16.msra.mxu0 %v2397
    %3195 = vmatprep.subr.bf16.mxu0 %v2406
    %3196 = vmatpush1.bf16.msra.mxu0 %v2405
    %3197 = vmatprep.subr.bf16.mxu0 %v2414
    %3198 = vmatpush1.bf16.msra.mxu0 %v2413
    %3199 = vmatprep.subr.bf16.mxu0 %v2422
    %3200 = vmatpush1.bf16.msra.mxu0 %v2421
    %3201 = vmatprep.subr.bf16.mxu0 %v2430
    %3202 = vmatpush1.bf16.msra.mxu0 %v2429
    %3203 = vmatprep.subr.bf16.mxu0 %v2438
    %3204 = vmatpush1.bf16.msra.mxu0 %v2437
    %3205 = vmatprep.subr.bf16.mxu0 %v2446
    %3206 = vmatpush1.bf16.msra.mxu0 %v2445
    %3207 = vmatprep.subr.bf16.mxu0 %v2454
    %3208 = vmatpush1.bf16.msra.mxu0 %v2453
    %3209 = vmatprep.subr.bf16.mxu0 %v2462
    %3210 = vmatpush1.bf16.msra.mxu0 %v2461
    %3211 = vmatprep.subr.bf16.mxu0 %v2470
    %3212 = vmatpush1.bf16.msra.mxu0 %v2469
    %3213 = vmatprep.mubr.bf16.mxu0 %v682
    %3214 = vmatmul.mubr.bf16.gmra.mrb[0].mxu0 %v681
    %v3215 = vpop.f32.mrb[0].mxu0
    %v3216 = vadd.f32 %v3143, %v3215
    %v3217 = vpop.f32.mrb[0].mxu0
    %v3218 = vadd.f32 %v3145, %v3217
    %v3219 = vpop.f32.mrb[0].mxu0
    %v3220 = vadd.f32 %v3147, %v3219
    %v3221 = vpop.f32.mrb[0].mxu0
    %v3222 = vadd.f32 %v3149, %v3221
    %3223 = vmatprep.mubr.bf16.mxu0 %v690
    %3224 = vmatmul.mubr.bf16.gmra.mrb[0].mxu0 %v689
    %v3225 = vpop.f32.mrb[0].mxu0
    %v3226 = vadd.f32 %v3153, %v3225
    %v3227 = vpop.f32.mrb[0].mxu0
    %v3228 = vadd.f32 %v3155, %v3227
    %v3229 = vpop.f32.mrb[0].mxu0
    %v3230 = vadd.f32 %v3157, %v3229
    %v3231 = vpop.f32.mrb[0].mxu0
    %v3232 = vadd.f32 %v3159, %v3231
    %3233 = vmatprep.mubr.bf16.mxu0 %v698
    %3234 = vmatmul.mubr.bf16.gmra.mrb[0].mxu0 %v697
    %v3235 = vpop.f32.mrb[0].mxu0
    %v3236 = vadd.f32 %v3163, %v3235
    %v3237 = vpop.f32.mrb[0].mxu0
    %v3238 = vadd.f32 %v3165, %v3237
    %v3239 = vpop.f32.mrb[0].mxu0
    %v3240 = vadd.f32 %v3167, %v3239
    %v3241 = vpop.f32.mrb[0].mxu0
    %v3242 = vadd.f32 %v3169, %v3241
    %3243 = vmatprep.mubr.bf16.mxu0 %v706
    %3244 = vmatmul.mubr.bf16.gmra.mrb[0].mxu0 %v705
    %v3245 = vpop.f32.mrb[0].mxu0
    %v3246 = vadd.f32 %v3173, %v3245
    %v3247 = vpop.f32.mrb[0].mxu0
    %v3248 = vadd.f32 %v3175, %v3247
    %v3249 = vpop.f32.mrb[0].mxu0
    %v3250 = vadd.f32 %v3177, %v3249
    %v3251 = vpop.f32.mrb[0].mxu0
    %v3252 = vadd.f32 %v3179, %v3251
    %3253 = vdwg.mxu0
    %3254 = vmatprep.subr.bf16.mxu0 %v2478
    %3255 = vmatpush1.bf16.msra.mxu0 %v2477
    %3256 = vmatprep.subr.bf16.mxu0 %v2486
    %3257 = vmatpush1.bf16.msra.mxu0 %v2485
    %3258 = vmatprep.subr.bf16.mxu0 %v2494
    %3259 = vmatpush1.bf16.msra.mxu0 %v2493
    %3260 = vmatprep.subr.bf16.mxu0 %v2502
    %3261 = vmatpush1.bf16.msra.mxu0 %v2501
    %3262 = vmatprep.subr.bf16.mxu0 %v2510
    %3263 = vmatpush1.bf16.msra.mxu0 %v2509
    %3264 = vmatprep.subr.bf16.mxu0 %v2518
    %3265 = vmatpush1.bf16.msra.mxu0 %v2517
    %3266 = vmatprep.subr.bf16.mxu0 %v2526
    %3267 = vmatpush1.bf16.msra.mxu0 %v2525
    %3268 = vmatprep.subr.bf16.mxu0 %v2534
    %3269 = vmatpush1.bf16.msra.mxu0 %v2533
    %3270 = vmatprep.subr.bf16.mxu0 %v3015
    %3271 = vmatpush1.bf16.msra.mxu0 %v3012
    %3272 = vmatprep.subr.bf16.mxu0 0
    %3273 = vmatpush1.bf16.msra.mxu0 0
    %3274 = vmatprep.subr.bf16.mxu0 0
    %3275 = vmatpush1.bf16.msra.mxu0 0
    %3276 = vmatprep.subr.bf16.mxu0 0
    %3277 = vmatpush1.bf16.msra.mxu0 0
    %3278 = vmatprep.subr.bf16.mxu0 0
    %3279 = vmatpush1.bf16.msra.mxu0 0
    %3280 = vmatprep.subr.bf16.mxu0 0
    %3281 = vmatpush1.bf16.msra.mxu0 0
    %3282 = vmatprep.subr.bf16.mxu0 0
    %3283 = vmatpush1.bf16.msra.mxu0 0
    %3284 = vmatprep.subr.bf16.mxu0 0
    %3285 = vmatpush1.bf16.msra.mxu0 0
    %3286 = vmatprep.mubr.bf16.mxu0 %v2999
    %3287 = vmatmul.mubr.bf16.gmra.mrb[0].mxu0 %v683
    %v3288 = vpop.f32.mrb[0].mxu0
    %v3289 = vadd.f32 %v3216, %v3288
    %v3290 = vpop.f32.mrb[0].mxu0
    %v3291 = vadd.f32 %v3218, %v3290
    %v3292 = vpop.f32.mrb[0].mxu0
    %v3293 = vadd.f32 %v3220, %v3292
    %v3294 = vpop.f32.mrb[0].mxu0
    %v3295 = vadd.f32 %v3222, %v3294
    %3296 = vmatprep.mubr.bf16.mxu0 %v3002
    %3297 = vmatmul.mubr.bf16.gmra.mrb[0].mxu0 %v691
    %v3298 = vpop.f32.mrb[0].mxu0
    %v3299 = vadd.f32 %v3226, %v3298
    %v3300 = vpop.f32.mrb[0].mxu0
    %v3301 = vadd.f32 %v3228, %v3300
    %v3302 = vpop.f32.mrb[0].mxu0
    %v3303 = vadd.f32 %v3230, %v3302
    %v3304 = vpop.f32.mrb[0].mxu0
    %v3305 = vadd.f32 %v3232, %v3304
    %3306 = vmatprep.mubr.bf16.mxu0 %v3005
    %3307 = vmatmul.mubr.bf16.gmra.mrb[0].mxu0 %v699
    %v3308 = vpop.f32.mrb[0].mxu0
    %v3309 = vadd.f32 %v3236, %v3308
    %v3310 = vpop.f32.mrb[0].mxu0
    %v3311 = vadd.f32 %v3238, %v3310
    %v3312 = vpop.f32.mrb[0].mxu0
    %v3313 = vadd.f32 %v3240, %v3312
    %v3314 = vpop.f32.mrb[0].mxu0
    %v3315 = vadd.f32 %v3242, %v3314
    %3316 = vmatprep.mubr.bf16.mxu0 %v3008
    %3317 = vmatmul.mubr.bf16.gmra.mrb[0].mxu0 %v707
    %v3318 = vpop.f32.mrb[0].mxu0
    %v3319 = vadd.f32 %v3246, %v3318
    %v3320 = vpop.f32.mrb[0].mxu0
    %v3321 = vadd.f32 %v3248, %v3320
    %v3322 = vpop.f32.mrb[0].mxu0
    %v3323 = vadd.f32 %v3250, %v3322
    %v3324 = vpop.f32.mrb[0].mxu0
    %v3325 = vadd.f32 %v3252, %v3324
    %3326 = vdwg.mxu0
    %3327 = vmatprep.subr.bf16.mxu0 %v2096
    %3328 = vmatpush1.bf16.msra.mxu0 %v2095
    %3329 = vmatprep.subr.bf16.mxu0 %v2104
    %3330 = vmatpush1.bf16.msra.mxu0 %v2103
    %3331 = vmatprep.subr.bf16.mxu0 %v2112
    %3332 = vmatpush1.bf16.msra.mxu0 %v2111
    %3333 = vmatprep.subr.bf16.mxu0 %v2120
    %3334 = vmatpush1.bf16.msra.mxu0 %v2119
    %3335 = vmatprep.subr.bf16.mxu0 %v2128
    %3336 = vmatpush1.bf16.msra.mxu0 %v2127
    %3337 = vmatprep.subr.bf16.mxu0 %v2136
    %3338 = vmatpush1.bf16.msra.mxu0 %v2135
    %3339 = vmatprep.subr.bf16.mxu0 %v2144
    %3340 = vmatpush1.bf16.msra.mxu0 %v2143
    %3341 = vmatprep.subr.bf16.mxu0 %v2152
    %3342 = vmatpush1.bf16.msra.mxu0 %v2151
    %3343 = vmatprep.subr.bf16.mxu0 %v2160
    %3344 = vmatpush1.bf16.msra.mxu0 %v2159
    %3345 = vmatprep.subr.bf16.mxu0 %v2168
    %3346 = vmatpush1.bf16.msra.mxu0 %v2167
    %3347 = vmatprep.subr.bf16.mxu0 %v2176
    %3348 = vmatpush1.bf16.msra.mxu0 %v2175
    %3349 = vmatprep.subr.bf16.mxu0 %v2184
    %3350 = vmatpush1.bf16.msra.mxu0 %v2183
    %3351 = vmatprep.subr.bf16.mxu0 %v2192
    %3352 = vmatpush1.bf16.msra.mxu0 %v2191
    %3353 = vmatprep.subr.bf16.mxu0 %v2200
    %3354 = vmatpush1.bf16.msra.mxu0 %v2199
    %3355 = vmatprep.subr.bf16.mxu0 %v2208
    %3356 = vmatpush1.bf16.msra.mxu0 %v2207
    %3357 = vmatprep.subr.bf16.mxu0 %v2216
    %3358 = vmatpush1.bf16.msra.mxu0 %v2215
    %3359 = vmatprep.mubr.bf16.mxu0 %v678
    %3360 = vmatmul.mubr.bf16.gmra.mrb[0].mxu0 %v677
    %v3361 = vpop.f32.mrb[0].mxu0
    %v3362 = vadd.f32 %v552, %v3361
    %v3363 = vpop.f32.mrb[0].mxu0
    %v3364 = vadd.f32 %v556, %v3363
    %v3365 = vpop.f32.mrb[0].mxu0
    %v3366 = vadd.f32 %v552, %v3365
    %v3367 = vpop.f32.mrb[0].mxu0
    %v3368 = vadd.f32 %v556, %v3367
    %3369 = vmatprep.mubr.bf16.mxu0 %v686
    %3370 = vmatmul.mubr.bf16.gmra.mrb[0].mxu0 %v685
    %v3371 = vpop.f32.mrb[0].mxu0
    %v3372 = vadd.f32 %v552, %v3371
    %v3373 = vpop.f32.mrb[0].mxu0
    %v3374 = vadd.f32 %v556, %v3373
    %v3375 = vpop.f32.mrb[0].mxu0
    %v3376 = vadd.f32 %v552, %v3375
    %v3377 = vpop.f32.mrb[0].mxu0
    %v3378 = vadd.f32 %v556, %v3377
    %3379 = vmatprep.mubr.bf16.mxu0 %v694
    %3380 = vmatmul.mubr.bf16.gmra.mrb[0].mxu0 %v693
    %v3381 = vpop.f32.mrb[0].mxu0
    %v3382 = vadd.f32 %v552, %v3381
    %v3383 = vpop.f32.mrb[0].mxu0
    %v3384 = vadd.f32 %v556, %v3383
    %v3385 = vpop.f32.mrb[0].mxu0
    %v3386 = vadd.f32 %v552, %v3385
    %v3387 = vpop.f32.mrb[0].mxu0
    %v3388 = vadd.f32 %v556, %v3387
    %3389 = vmatprep.mubr.bf16.mxu0 %v702
    %3390 = vmatmul.mubr.bf16.gmra.mrb[0].mxu0 %v701
    %v3391 = vpop.f32.mrb[0].mxu0
    %v3392 = vadd.f32 %v552, %v3391
    %v3393 = vpop.f32.mrb[0].mxu0
    %v3394 = vadd.f32 %v556, %v3393
    %v3395 = vpop.f32.mrb[0].mxu0
    %v3396 = vadd.f32 %v552, %v3395
    %v3397 = vpop.f32.mrb[0].mxu0
    %v3398 = vadd.f32 %v556, %v3397
    %3399 = vdwg.mxu0
    %3400 = vmatprep.subr.bf16.mxu0 %v2224
    %3401 = vmatpush1.bf16.msra.mxu0 %v2223
    %3402 = vmatprep.subr.bf16.mxu0 %v2232
    %3403 = vmatpush1.bf16.msra.mxu0 %v2231
    %3404 = vmatprep.subr.bf16.mxu0 %v2240
    %3405 = vmatpush1.bf16.msra.mxu0 %v2239
    %3406 = vmatprep.subr.bf16.mxu0 %v2248
    %3407 = vmatpush1.bf16.msra.mxu0 %v2247
    %3408 = vmatprep.subr.bf16.mxu0 %v2256
    %3409 = vmatpush1.bf16.msra.mxu0 %v2255
    %3410 = vmatprep.subr.bf16.mxu0 %v2264
    %3411 = vmatpush1.bf16.msra.mxu0 %v2263
    %3412 = vmatprep.subr.bf16.mxu0 %v2272
    %3413 = vmatpush1.bf16.msra.mxu0 %v2271
    %3414 = vmatprep.subr.bf16.mxu0 %v2280
    %3415 = vmatpush1.bf16.msra.mxu0 %v2279
    %3416 = vmatprep.subr.bf16.mxu0 %v2288
    %3417 = vmatpush1.bf16.msra.mxu0 %v2287
    %3418 = vmatprep.subr.bf16.mxu0 %v2296
    %3419 = vmatpush1.bf16.msra.mxu0 %v2295
    %3420 = vmatprep.subr.bf16.mxu0 %v2304
    %3421 = vmatpush1.bf16.msra.mxu0 %v2303
    %3422 = vmatprep.subr.bf16.mxu0 %v2312
    %3423 = vmatpush1.bf16.msra.mxu0 %v2311
    %3424 = vmatprep.subr.bf16.mxu0 %v2320
    %3425 = vmatpush1.bf16.msra.mxu0 %v2319
    %3426 = vmatprep.subr.bf16.mxu0 %v2328
    %3427 = vmatpush1.bf16.msra.mxu0 %v2327
    %3428 = vmatprep.subr.bf16.mxu0 %v2336
    %3429 = vmatpush1.bf16.msra.mxu0 %v2335
    %3430 = vmatprep.subr.bf16.mxu0 %v2344
    %3431 = vmatpush1.bf16.msra.mxu0 %v2343
    %3432 = vmatprep.mubr.bf16.mxu0 %v680
    %3433 = vmatmul.mubr.bf16.gmra.mrb[0].mxu0 %v679
    %v3434 = vpop.f32.mrb[0].mxu0
    %v3435 = vadd.f32 %v3362, %v3434
    %v3436 = vpop.f32.mrb[0].mxu0
    %v3437 = vadd.f32 %v3364, %v3436
    %v3438 = vpop.f32.mrb[0].mxu0
    %v3439 = vadd.f32 %v3366, %v3438
    %v3440 = vpop.f32.mrb[0].mxu0
    %v3441 = vadd.f32 %v3368, %v3440
    %3442 = vmatprep.mubr.bf16.mxu0 %v688
    %3443 = vmatmul.mubr.bf16.gmra.mrb[0].mxu0 %v687
    %v3444 = vpop.f32.mrb[0].mxu0
    %v3445 = vadd.f32 %v3372, %v3444
    %v3446 = vpop.f32.mrb[0].mxu0
    %v3447 = vadd.f32 %v3374, %v3446
    %v3448 = vpop.f32.mrb[0].mxu0
    %v3449 = vadd.f32 %v3376, %v3448
    %v3450 = vpop.f32.mrb[0].mxu0
    %v3451 = vadd.f32 %v3378, %v3450
    %3452 = vmatprep.mubr.bf16.mxu0 %v696
    %3453 = vmatmul.mubr.bf16.gmra.mrb[0].mxu0 %v695
    %v3454 = vpop.f32.mrb[0].mxu0
    %v3455 = vadd.f32 %v3382, %v3454
    %v3456 = vpop.f32.mrb[0].mxu0
    %v3457 = vadd.f32 %v3384, %v3456
    %v3458 = vpop.f32.mrb[0].mxu0
    %v3459 = vadd.f32 %v3386, %v3458
    %v3460 = vpop.f32.mrb[0].mxu0
    %v3461 = vadd.f32 %v3388, %v3460
    %3462 = vmatprep.mubr.bf16.mxu0 %v704
    %3463 = vmatmul.mubr.bf16.gmra.mrb[0].mxu0 %v703
    %v3464 = vpop.f32.mrb[0].mxu0
    %v3465 = vadd.f32 %v3392, %v3464
    %v3466 = vpop.f32.mrb[0].mxu0
    %v3467 = vadd.f32 %v3394, %v3466
    %v3468 = vpop.f32.mrb[0].mxu0
    %v3469 = vadd.f32 %v3396, %v3468
    %v3470 = vpop.f32.mrb[0].mxu0
    %v3471 = vadd.f32 %v3398, %v3470
    %3472 = vdwg.mxu0
    %3473 = vmatprep.subr.bf16.mxu0 %v2352
    %3474 = vmatpush1.bf16.msra.mxu0 %v2351
    %3475 = vmatprep.subr.bf16.mxu0 %v2360
    %3476 = vmatpush1.bf16.msra.mxu0 %v2359
    %3477 = vmatprep.subr.bf16.mxu0 %v2368
    %3478 = vmatpush1.bf16.msra.mxu0 %v2367
    %3479 = vmatprep.subr.bf16.mxu0 %v2376
    %3480 = vmatpush1.bf16.msra.mxu0 %v2375
    %3481 = vmatprep.subr.bf16.mxu0 %v2384
    %3482 = vmatpush1.bf16.msra.mxu0 %v2383
    %3483 = vmatprep.subr.bf16.mxu0 %v2392
    %3484 = vmatpush1.bf16.msra.mxu0 %v2391
    %3485 = vmatprep.subr.bf16.mxu0 %v2400
    %3486 = vmatpush1.bf16.msra.mxu0 %v2399
    %3487 = vmatprep.subr.bf16.mxu0 %v2408
    %3488 = vmatpush1.bf16.msra.mxu0 %v2407
    %3489 = vmatprep.subr.bf16.mxu0 %v2416
    %3490 = vmatpush1.bf16.msra.mxu0 %v2415
    %3491 = vmatprep.subr.bf16.mxu0 %v2424
    %3492 = vmatpush1.bf16.msra.mxu0 %v2423
    %3493 = vmatprep.subr.bf16.mxu0 %v2432
    %3494 = vmatpush1.bf16.msra.mxu0 %v2431
    %3495 = vmatprep.subr.bf16.mxu0 %v2440
    %3496 = vmatpush1.bf16.msra.mxu0 %v2439
    %3497 = vmatprep.subr.bf16.mxu0 %v2448
    %3498 = vmatpush1.bf16.msra.mxu0 %v2447
    %3499 = vmatprep.subr.bf16.mxu0 %v2456
    %3500 = vmatpush1.bf16.msra.mxu0 %v2455
    %3501 = vmatprep.subr.bf16.mxu0 %v2464
    %3502 = vmatpush1.bf16.msra.mxu0 %v2463
    %3503 = vmatprep.subr.bf16.mxu0 %v2472
    %3504 = vmatpush1.bf16.msra.mxu0 %v2471
    %3505 = vmatprep.mubr.bf16.mxu0 %v682
    %3506 = vmatmul.mubr.bf16.gmra.mrb[0].mxu0 %v681
    %v3507 = vpop.f32.mrb[0].mxu0
    %v3508 = vadd.f32 %v3435, %v3507
    %v3509 = vpop.f32.mrb[0].mxu0
    %v3510 = vadd.f32 %v3437, %v3509
    %v3511 = vpop.f32.mrb[0].mxu0
    %v3512 = vadd.f32 %v3439, %v3511
    %v3513 = vpop.f32.mrb[0].mxu0
    %v3514 = vadd.f32 %v3441, %v3513
    %3515 = vmatprep.mubr.bf16.mxu0 %v690
    %3516 = vmatmul.mubr.bf16.gmra.mrb[0].mxu0 %v689
    %v3517 = vpop.f32.mrb[0].mxu0
    %v3518 = vadd.f32 %v3445, %v3517
    %v3519 = vpop.f32.mrb[0].mxu0
    %v3520 = vadd.f32 %v3447, %v3519
    %v3521 = vpop.f32.mrb[0].mxu0
    %v3522 = vadd.f32 %v3449, %v3521
    %v3523 = vpop.f32.mrb[0].mxu0
    %v3524 = vadd.f32 %v3451, %v3523
    %3525 = vmatprep.mubr.bf16.mxu0 %v698
    %3526 = vmatmul.mubr.bf16.gmra.mrb[0].mxu0 %v697
    %v3527 = vpop.f32.mrb[0].mxu0
    %v3528 = vadd.f32 %v3455, %v3527
    %v3529 = vpop.f32.mrb[0].mxu0
    %v3530 = vadd.f32 %v3457, %v3529
    %v3531 = vpop.f32.mrb[0].mxu0
    %v3532 = vadd.f32 %v3459, %v3531
    %v3533 = vpop.f32.mrb[0].mxu0
    %v3534 = vadd.f32 %v3461, %v3533
    %3535 = vmatprep.mubr.bf16.mxu0 %v706
    %3536 = vmatmul.mubr.bf16.gmra.mrb[0].mxu0 %v705
    %v3537 = vpop.f32.mrb[0].mxu0
    %v3538 = vadd.f32 %v3465, %v3537
    %v3539 = vpop.f32.mrb[0].mxu0
    %v3540 = vadd.f32 %v3467, %v3539
    %v3541 = vpop.f32.mrb[0].mxu0
    %v3542 = vadd.f32 %v3469, %v3541
    %v3543 = vpop.f32.mrb[0].mxu0
    %v3544 = vadd.f32 %v3471, %v3543
    %3545 = vdwg.mxu0
    %3546 = vmatprep.subr.bf16.mxu0 %v2480
    %3547 = vmatpush1.bf16.msra.mxu0 %v2479
    %3548 = vmatprep.subr.bf16.mxu0 %v2488
    %3549 = vmatpush1.bf16.msra.mxu0 %v2487
    %3550 = vmatprep.subr.bf16.mxu0 %v2496
    %3551 = vmatpush1.bf16.msra.mxu0 %v2495
    %3552 = vmatprep.subr.bf16.mxu0 %v2504
    %3553 = vmatpush1.bf16.msra.mxu0 %v2503
    %3554 = vmatprep.subr.bf16.mxu0 %v2512
    %3555 = vmatpush1.bf16.msra.mxu0 %v2511
    %3556 = vmatprep.subr.bf16.mxu0 %v2520
    %3557 = vmatpush1.bf16.msra.mxu0 %v2519
    %3558 = vmatprep.subr.bf16.mxu0 %v2528
    %3559 = vmatpush1.bf16.msra.mxu0 %v2527
    %3560 = vmatprep.subr.bf16.mxu0 %v2536
    %3561 = vmatpush1.bf16.msra.mxu0 %v2535
    %3562 = vmatprep.subr.bf16.mxu0 %v3021
    %3563 = vmatpush1.bf16.msra.mxu0 %v3018
    %3564 = vmatprep.subr.bf16.mxu0 0
    %3565 = vmatpush1.bf16.msra.mxu0 0
    %3566 = vmatprep.subr.bf16.mxu0 0
    %3567 = vmatpush1.bf16.msra.mxu0 0
    %3568 = vmatprep.subr.bf16.mxu0 0
    %3569 = vmatpush1.bf16.msra.mxu0 0
    %3570 = vmatprep.subr.bf16.mxu0 0
    %3571 = vmatpush1.bf16.msra.mxu0 0
    %3572 = vmatprep.subr.bf16.mxu0 0
    %3573 = vmatpush1.bf16.msra.mxu0 0
    %3574 = vmatprep.subr.bf16.mxu0 0
    %3575 = vmatpush1.bf16.msra.mxu0 0
    %3576 = vmatprep.subr.bf16.mxu0 0
    %3577 = vmatpush1.bf16.msra.mxu0 0
    %3578 = vmatprep.mubr.bf16.mxu0 %v2999
    %3579 = vmatmul.mubr.bf16.gmra.mrb[0].mxu0 %v683
    %v3580 = vpop.f32.mrb[0].mxu0
    %v3581 = vadd.f32 %v3508, %v3580
    %v3582 = vpop.f32.mrb[0].mxu0
    %v3583 = vadd.f32 %v3510, %v3582
    %v3584 = vpop.f32.mrb[0].mxu0
    %v3585 = vadd.f32 %v3512, %v3584
    %v3586 = vpop.f32.mrb[0].mxu0
    %v3587 = vadd.f32 %v3514, %v3586
    %3588 = vmatprep.mubr.bf16.mxu0 %v3002
    %3589 = vmatmul.mubr.bf16.gmra.mrb[0].mxu0 %v691
    %v3590 = vpop.f32.mrb[0].mxu0
    %v3591 = vadd.f32 %v3518, %v3590
    %v3592 = vpop.f32.mrb[0].mxu0
    %v3593 = vadd.f32 %v3520, %v3592
    %v3594 = vpop.f32.mrb[0].mxu0
    %v3595 = vadd.f32 %v3522, %v3594
    %v3596 = vpop.f32.mrb[0].mxu0
    %v3597 = vadd.f32 %v3524, %v3596
    %3598 = vmatprep.mubr.bf16.mxu0 %v3005
    %3599 = vmatmul.mubr.bf16.gmra.mrb[0].mxu0 %v699
    %v3600 = vpop.f32.mrb[0].mxu0
    %v3601 = vadd.f32 %v3528, %v3600
    %v3602 = vpop.f32.mrb[0].mxu0
    %v3603 = vadd.f32 %v3530, %v3602
    %v3604 = vpop.f32.mrb[0].mxu0
    %v3605 = vadd.f32 %v3532, %v3604
    %v3606 = vpop.f32.mrb[0].mxu0
    %v3607 = vadd.f32 %v3534, %v3606
    %3608 = vmatprep.mubr.bf16.mxu0 %v3008
    %3609 = vmatmul.mubr.bf16.gmra.mrb[0].mxu0 %v707
    %v3610 = vpop.f32.mrb[0].mxu0
    %v3611 = vadd.f32 %v3538, %v3610
    %v3612 = vpop.f32.mrb[0].mxu0
    %v3613 = vadd.f32 %v3540, %v3612
    %v3614 = vpop.f32.mrb[0].mxu0
    %v3615 = vadd.f32 %v3542, %v3614
    %v3616 = vpop.f32.mrb[0].mxu0
    %v3617 = vadd.f32 %v3544, %v3616
    %3618 = vdwg.mxu0
    %3619 = vmatprep.subr.bf16.mxu0 %v2098
    %3620 = vmatpush1.bf16.msra.mxu0 %v2097
    %3621 = vmatprep.subr.bf16.mxu0 %v2106
    %3622 = vmatpush1.bf16.msra.mxu0 %v2105
    %3623 = vmatprep.subr.bf16.mxu0 %v2114
    %3624 = vmatpush1.bf16.msra.mxu0 %v2113
    %3625 = vmatprep.subr.bf16.mxu0 %v2122
    %3626 = vmatpush1.bf16.msra.mxu0 %v2121
    %3627 = vmatprep.subr.bf16.mxu0 %v2130
    %3628 = vmatpush1.bf16.msra.mxu0 %v2129
    %3629 = vmatprep.subr.bf16.mxu0 %v2138
    %3630 = vmatpush1.bf16.msra.mxu0 %v2137
    %3631 = vmatprep.subr.bf16.mxu0 %v2146
    %3632 = vmatpush1.bf16.msra.mxu0 %v2145
    %3633 = vmatprep.subr.bf16.mxu0 %v2154
    %3634 = vmatpush1.bf16.msra.mxu0 %v2153
    %3635 = vmatprep.subr.bf16.mxu0 %v2162
    %3636 = vmatpush1.bf16.msra.mxu0 %v2161
    %3637 = vmatprep.subr.bf16.mxu0 %v2170
    %3638 = vmatpush1.bf16.msra.mxu0 %v2169
    %3639 = vmatprep.subr.bf16.mxu0 %v2178
    %3640 = vmatpush1.bf16.msra.mxu0 %v2177
    %3641 = vmatprep.subr.bf16.mxu0 %v2186
    %3642 = vmatpush1.bf16.msra.mxu0 %v2185
    %3643 = vmatprep.subr.bf16.mxu0 %v2194
    %3644 = vmatpush1.bf16.msra.mxu0 %v2193
    %3645 = vmatprep.subr.bf16.mxu0 %v2202
    %3646 = vmatpush1.bf16.msra.mxu0 %v2201
    %3647 = vmatprep.subr.bf16.mxu0 %v2210
    %3648 = vmatpush1.bf16.msra.mxu0 %v2209
    %3649 = vmatprep.subr.bf16.mxu0 %v2218
    %3650 = vmatpush1.bf16.msra.mxu0 %v2217
    %3651 = vmatprep.mubr.bf16.mxu0 %v678
    %3652 = vmatmul.mubr.bf16.gmra.mrb[0].mxu0 %v677
    %v3653 = vpop.f32.mrb[0].mxu0
    %v3654 = vadd.f32 %v560, %v3653
    %v3655 = vpop.f32.mrb[0].mxu0
    %v3656 = vadd.f32 %v564, %v3655
    %v3657 = vpop.f32.mrb[0].mxu0
    %v3658 = vadd.f32 %v560, %v3657
    %v3659 = vpop.f32.mrb[0].mxu0
    %v3660 = vadd.f32 %v564, %v3659
    %3661 = vmatprep.mubr.bf16.mxu0 %v686
    %3662 = vmatmul.mubr.bf16.gmra.mrb[0].mxu0 %v685
    %v3663 = vpop.f32.mrb[0].mxu0
    %v3664 = vadd.f32 %v560, %v3663
    %v3665 = vpop.f32.mrb[0].mxu0
    %v3666 = vadd.f32 %v564, %v3665
    %v3667 = vpop.f32.mrb[0].mxu0
    %v3668 = vadd.f32 %v560, %v3667
    %v3669 = vpop.f32.mrb[0].mxu0
    %v3670 = vadd.f32 %v564, %v3669
    %3671 = vmatprep.mubr.bf16.mxu0 %v694
    %3672 = vmatmul.mubr.bf16.gmra.mrb[0].mxu0 %v693
    %v3673 = vpop.f32.mrb[0].mxu0
    %v3674 = vadd.f32 %v560, %v3673
    %v3675 = vpop.f32.mrb[0].mxu0
    %v3676 = vadd.f32 %v564, %v3675
    %v3677 = vpop.f32.mrb[0].mxu0
    %v3678 = vadd.f32 %v560, %v3677
    %v3679 = vpop.f32.mrb[0].mxu0
    %v3680 = vadd.f32 %v564, %v3679
    %3681 = vmatprep.mubr.bf16.mxu0 %v702
    %3682 = vmatmul.mubr.bf16.gmra.mrb[0].mxu0 %v701
    %v3683 = vpop.f32.mrb[0].mxu0
    %v3684 = vadd.f32 %v560, %v3683
    %v3685 = vpop.f32.mrb[0].mxu0
    %v3686 = vadd.f32 %v564, %v3685
    %v3687 = vpop.f32.mrb[0].mxu0
    %v3688 = vadd.f32 %v560, %v3687
    %v3689 = vpop.f32.mrb[0].mxu0
    %v3690 = vadd.f32 %v564, %v3689
    %3691 = vdwg.mxu0
    %3692 = vmatprep.subr.bf16.mxu0 %v2226
    %3693 = vmatpush1.bf16.msra.mxu0 %v2225
    %3694 = vmatprep.subr.bf16.mxu0 %v2234
    %3695 = vmatpush1.bf16.msra.mxu0 %v2233
    %3696 = vmatprep.subr.bf16.mxu0 %v2242
    %3697 = vmatpush1.bf16.msra.mxu0 %v2241
    %3698 = vmatprep.subr.bf16.mxu0 %v2250
    %3699 = vmatpush1.bf16.msra.mxu0 %v2249
    %3700 = vmatprep.subr.bf16.mxu0 %v2258
    %3701 = vmatpush1.bf16.msra.mxu0 %v2257
    %3702 = vmatprep.subr.bf16.mxu0 %v2266
    %3703 = vmatpush1.bf16.msra.mxu0 %v2265
    %3704 = vmatprep.subr.bf16.mxu0 %v2274
    %3705 = vmatpush1.bf16.msra.mxu0 %v2273
    %3706 = vmatprep.subr.bf16.mxu0 %v2282
    %3707 = vmatpush1.bf16.msra.mxu0 %v2281
    %3708 = vmatprep.subr.bf16.mxu0 %v2290
    %3709 = vmatpush1.bf16.msra.mxu0 %v2289
    %3710 = vmatprep.subr.bf16.mxu0 %v2298
    %3711 = vmatpush1.bf16.msra.mxu0 %v2297
    %3712 = vmatprep.subr.bf16.mxu0 %v2306
    %3713 = vmatpush1.bf16.msra.mxu0 %v2305
    %3714 = vmatprep.subr.bf16.mxu0 %v2314
    %3715 = vmatpush1.bf16.msra.mxu0 %v2313
    %3716 = vmatprep.subr.bf16.mxu0 %v2322
    %3717 = vmatpush1.bf16.msra.mxu0 %v2321
    %3718 = vmatprep.subr.bf16.mxu0 %v2330
    %3719 = vmatpush1.bf16.msra.mxu0 %v2329
    %3720 = vmatprep.subr.bf16.mxu0 %v2338
    %3721 = vmatpush1.bf16.msra.mxu0 %v2337
    %3722 = vmatprep.subr.bf16.mxu0 %v2346
    %3723 = vmatpush1.bf16.msra.mxu0 %v2345
    %3724 = vmatprep.mubr.bf16.mxu0 %v680
    %3725 = vmatmul.mubr.bf16.gmra.mrb[0].mxu0 %v679
    %v3726 = vpop.f32.mrb[0].mxu0
    %v3727 = vadd.f32 %v3654, %v3726
    %v3728 = vpop.f32.mrb[0].mxu0
    %v3729 = vadd.f32 %v3656, %v3728
    %v3730 = vpop.f32.mrb[0].mxu0
    %v3731 = vadd.f32 %v3658, %v3730
    %v3732 = vpop.f32.mrb[0].mxu0
    %v3733 = vadd.f32 %v3660, %v3732
    %3734 = vmatprep.mubr.bf16.mxu0 %v688
    %3735 = vmatmul.mubr.bf16.gmra.mrb[0].mxu0 %v687
    %v3736 = vpop.f32.mrb[0].mxu0
    %v3737 = vadd.f32 %v3664, %v3736
    %v3738 = vpop.f32.mrb[0].mxu0
    %v3739 = vadd.f32 %v3666, %v3738
    %v3740 = vpop.f32.mrb[0].mxu0
    %v3741 = vadd.f32 %v3668, %v3740
    %v3742 = vpop.f32.mrb[0].mxu0
    %v3743 = vadd.f32 %v3670, %v3742
    %3744 = vmatprep.mubr.bf16.mxu0 %v696
    %3745 = vmatmul.mubr.bf16.gmra.mrb[0].mxu0 %v695
    %v3746 = vpop.f32.mrb[0].mxu0
    %v3747 = vadd.f32 %v3674, %v3746
    %v3748 = vpop.f32.mrb[0].mxu0
    %v3749 = vadd.f32 %v3676, %v3748
    %v3750 = vpop.f32.mrb[0].mxu0
    %v3751 = vadd.f32 %v3678, %v3750
    %v3752 = vpop.f32.mrb[0].mxu0
    %v3753 = vadd.f32 %v3680, %v3752
    %3754 = vmatprep.mubr.bf16.mxu0 %v704
    %3755 = vmatmul.mubr.bf16.gmra.mrb[0].mxu0 %v703
    %v3756 = vpop.f32.mrb[0].mxu0
    %v3757 = vadd.f32 %v3684, %v3756
    %v3758 = vpop.f32.mrb[0].mxu0
    %v3759 = vadd.f32 %v3686, %v3758
    %v3760 = vpop.f32.mrb[0].mxu0
    %v3761 = vadd.f32 %v3688, %v3760
    %v3762 = vpop.f32.mrb[0].mxu0
    %v3763 = vadd.f32 %v3690, %v3762
    %3764 = vdwg.mxu0
    %3765 = vmatprep.subr.bf16.mxu0 %v2354
    %3766 = vmatpush1.bf16.msra.mxu0 %v2353
    %3767 = vmatprep.subr.bf16.mxu0 %v2362
    %3768 = vmatpush1.bf16.msra.mxu0 %v2361
    %3769 = vmatprep.subr.bf16.mxu0 %v2370
    %3770 = vmatpush1.bf16.msra.mxu0 %v2369
    %3771 = vmatprep.subr.bf16.mxu0 %v2378
    %3772 = vmatpush1.bf16.msra.mxu0 %v2377
    %3773 = vmatprep.subr.bf16.mxu0 %v2386
    %3774 = vmatpush1.bf16.msra.mxu0 %v2385
    %3775 = vmatprep.subr.bf16.mxu0 %v2394
    %3776 = vmatpush1.bf16.msra.mxu0 %v2393
    %3777 = vmatprep.subr.bf16.mxu0 %v2402
    %3778 = vmatpush1.bf16.msra.mxu0 %v2401
    %3779 = vmatprep.subr.bf16.mxu0 %v2410
    %3780 = vmatpush1.bf16.msra.mxu0 %v2409
    %3781 = vmatprep.subr.bf16.mxu0 %v2418
    %3782 = vmatpush1.bf16.msra.mxu0 %v2417
    %3783 = vmatprep.subr.bf16.mxu0 %v2426
    %3784 = vmatpush1.bf16.msra.mxu0 %v2425
    %3785 = vmatprep.subr.bf16.mxu0 %v2434
    %3786 = vmatpush1.bf16.msra.mxu0 %v2433
    %3787 = vmatprep.subr.bf16.mxu0 %v2442
    %3788 = vmatpush1.bf16.msra.mxu0 %v2441
    %3789 = vmatprep.subr.bf16.mxu0 %v2450
    %3790 = vmatpush1.bf16.msra.mxu0 %v2449
    %3791 = vmatprep.subr.bf16.mxu0 %v2458
    %3792 = vmatpush1.bf16.msra.mxu0 %v2457
    %3793 = vmatprep.subr.bf16.mxu0 %v2466
    %3794 = vmatpush1.bf16.msra.mxu0 %v2465
    %3795 = vmatprep.subr.bf16.mxu0 %v2474
    %3796 = vmatpush1.bf16.msra.mxu0 %v2473
    %3797 = vmatprep.mubr.bf16.mxu0 %v682
    %3798 = vmatmul.mubr.bf16.gmra.mrb[0].mxu0 %v681
    %v3799 = vpop.f32.mrb[0].mxu0
    %v3800 = vadd.f32 %v3727, %v3799
    %v3801 = vpop.f32.mrb[0].mxu0
    %v3802 = vadd.f32 %v3729, %v3801
    %v3803 = vpop.f32.mrb[0].mxu0
    %v3804 = vadd.f32 %v3731, %v3803
    %v3805 = vpop.f32.mrb[0].mxu0
    %v3806 = vadd.f32 %v3733, %v3805
    %3807 = vmatprep.mubr.bf16.mxu0 %v690
    %3808 = vmatmul.mubr.bf16.gmra.mrb[0].mxu0 %v689
    %v3809 = vpop.f32.mrb[0].mxu0
    %v3810 = vadd.f32 %v3737, %v3809
    %v3811 = vpop.f32.mrb[0].mxu0
    %v3812 = vadd.f32 %v3739, %v3811
    %v3813 = vpop.f32.mrb[0].mxu0
    %v3814 = vadd.f32 %v3741, %v3813
    %v3815 = vpop.f32.mrb[0].mxu0
    %v3816 = vadd.f32 %v3743, %v3815
    %3817 = vmatprep.mubr.bf16.mxu0 %v698
    %3818 = vmatmul.mubr.bf16.gmra.mrb[0].mxu0 %v697
    %v3819 = vpop.f32.mrb[0].mxu0
    %v3820 = vadd.f32 %v3747, %v3819
    %v3821 = vpop.f32.mrb[0].mxu0
    %v3822 = vadd.f32 %v3749, %v3821
    %v3823 = vpop.f32.mrb[0].mxu0
    %v3824 = vadd.f32 %v3751, %v3823
    %v3825 = vpop.f32.mrb[0].mxu0
    %v3826 = vadd.f32 %v3753, %v3825
    %3827 = vmatprep.mubr.bf16.mxu0 %v706
    %3828 = vmatmul.mubr.bf16.gmra.mrb[0].mxu0 %v705
    %v3829 = vpop.f32.mrb[0].mxu0
    %v3830 = vadd.f32 %v3757, %v3829
    %v3831 = vpop.f32.mrb[0].mxu0
    %v3832 = vadd.f32 %v3759, %v3831
    %v3833 = vpop.f32.mrb[0].mxu0
    %v3834 = vadd.f32 %v3761, %v3833
    %v3835 = vpop.f32.mrb[0].mxu0
    %v3836 = vadd.f32 %v3763, %v3835
    %3837 = vdwg.mxu0
    %3838 = vmatprep.subr.bf16.mxu0 %v2482
    %3839 = vmatpush1.bf16.msra.mxu0 %v2481
    %3840 = vmatprep.subr.bf16.mxu0 %v2490
    %3841 = vmatpush1.bf16.msra.mxu0 %v2489
    %3842 = vmatprep.subr.bf16.mxu0 %v2498
    %3843 = vmatpush1.bf16.msra.mxu0 %v2497
    %3844 = vmatprep.subr.bf16.mxu0 %v2506
    %3845 = vmatpush1.bf16.msra.mxu0 %v2505
    %3846 = vmatprep.subr.bf16.mxu0 %v2514
    %3847 = vmatpush1.bf16.msra.mxu0 %v2513
    %3848 = vmatprep.subr.bf16.mxu0 %v2522
    %3849 = vmatpush1.bf16.msra.mxu0 %v2521
    %3850 = vmatprep.subr.bf16.mxu0 %v2530
    %3851 = vmatpush1.bf16.msra.mxu0 %v2529
    %3852 = vmatprep.subr.bf16.mxu0 %v2538
    %3853 = vmatpush1.bf16.msra.mxu0 %v2537
    %3854 = vmatprep.subr.bf16.mxu0 %v3027
    %3855 = vmatpush1.bf16.msra.mxu0 %v3024
    %3856 = vmatprep.subr.bf16.mxu0 0
    %3857 = vmatpush1.bf16.msra.mxu0 0
    %3858 = vmatprep.subr.bf16.mxu0 0
    %3859 = vmatpush1.bf16.msra.mxu0 0
    %3860 = vmatprep.subr.bf16.mxu0 0
    %3861 = vmatpush1.bf16.msra.mxu0 0
    %3862 = vmatprep.subr.bf16.mxu0 0
    %3863 = vmatpush1.bf16.msra.mxu0 0
    %3864 = vmatprep.subr.bf16.mxu0 0
    %3865 = vmatpush1.bf16.msra.mxu0 0
    %3866 = vmatprep.subr.bf16.mxu0 0
    %3867 = vmatpush1.bf16.msra.mxu0 0
    %3868 = vmatprep.subr.bf16.mxu0 0
    %3869 = vmatpush1.bf16.msra.mxu0 0
    %3870 = vmatprep.mubr.bf16.mxu0 %v2999
    %3871 = vmatmul.mubr.bf16.gmra.mrb[0].mxu0 %v683
    %v3872 = vpop.f32.mrb[0].mxu0
    %v3873 = vadd.f32 %v3800, %v3872
    %v3874 = vpop.f32.mrb[0].mxu0
    %v3875 = vadd.f32 %v3802, %v3874
    %v3876 = vpop.f32.mrb[0].mxu0
    %v3877 = vadd.f32 %v3804, %v3876
    %v3878 = vpop.f32.mrb[0].mxu0
    %v3879 = vadd.f32 %v3806, %v3878
    %3880 = vmatprep.mubr.bf16.mxu0 %v3002
    %3881 = vmatmul.mubr.bf16.gmra.mrb[0].mxu0 %v691
    %v3882 = vpop.f32.mrb[0].mxu0
    %v3883 = vadd.f32 %v3810, %v3882
    %v3884 = vpop.f32.mrb[0].mxu0
    %v3885 = vadd.f32 %v3812, %v3884
    %v3886 = vpop.f32.mrb[0].mxu0
    %v3887 = vadd.f32 %v3814, %v3886
    %v3888 = vpop.f32.mrb[0].mxu0
    %v3889 = vadd.f32 %v3816, %v3888
    %3890 = vmatprep.mubr.bf16.mxu0 %v3005
    %3891 = vmatmul.mubr.bf16.gmra.mrb[0].mxu0 %v699
    %v3892 = vpop.f32.mrb[0].mxu0
    %v3893 = vadd.f32 %v3820, %v3892
    %v3894 = vpop.f32.mrb[0].mxu0
    %v3895 = vadd.f32 %v3822, %v3894
    %v3896 = vpop.f32.mrb[0].mxu0
    %v3897 = vadd.f32 %v3824, %v3896
    %v3898 = vpop.f32.mrb[0].mxu0
    %v3899 = vadd.f32 %v3826, %v3898
    %3900 = vmatprep.mubr.bf16.mxu0 %v3008
    %3901 = vmatmul.mubr.bf16.gmra.mrb[0].mxu0 %v707
    %v3902 = vpop.f32.mrb[0].mxu0
    %v3903 = vadd.f32 %v3830, %v3902
    %v3904 = vpop.f32.mrb[0].mxu0
    %v3905 = vadd.f32 %v3832, %v3904
    %v3906 = vpop.f32.mrb[0].mxu0
    %v3907 = vadd.f32 %v3834, %v3906
    %v3908 = vpop.f32.mrb[0].mxu0
    %v3909 = vadd.f32 %v3836, %v3908
    %3910 = vdwg.mxu0
    %3911 = vmatprep.subr.bf16.mxu0 %v2100
    %3912 = vmatpush1.bf16.msra.mxu0 %v2099
    %3913 = vmatprep.subr.bf16.mxu0 %v2108
    %3914 = vmatpush1.bf16.msra.mxu0 %v2107
    %3915 = vmatprep.subr.bf16.mxu0 %v2116
    %3916 = vmatpush1.bf16.msra.mxu0 %v2115
    %3917 = vmatprep.subr.bf16.mxu0 %v2124
    %3918 = vmatpush1.bf16.msra.mxu0 %v2123
    %3919 = vmatprep.subr.bf16.mxu0 %v2132
    %3920 = vmatpush1.bf16.msra.mxu0 %v2131
    %3921 = vmatprep.subr.bf16.mxu0 %v2140
    %3922 = vmatpush1.bf16.msra.mxu0 %v2139
    %3923 = vmatprep.subr.bf16.mxu0 %v2148
    %3924 = vmatpush1.bf16.msra.mxu0 %v2147
    %3925 = vmatprep.subr.bf16.mxu0 %v2156
    %3926 = vmatpush1.bf16.msra.mxu0 %v2155
    %3927 = vmatprep.subr.bf16.mxu0 %v2164
    %3928 = vmatpush1.bf16.msra.mxu0 %v2163
    %3929 = vmatprep.subr.bf16.mxu0 %v2172
    %3930 = vmatpush1.bf16.msra.mxu0 %v2171
    %3931 = vmatprep.subr.bf16.mxu0 %v2180
    %3932 = vmatpush1.bf16.msra.mxu0 %v2179
    %3933 = vmatprep.subr.bf16.mxu0 %v2188
    %3934 = vmatpush1.bf16.msra.mxu0 %v2187
    %3935 = vmatprep.subr.bf16.mxu0 %v2196
    %3936 = vmatpush1.bf16.msra.mxu0 %v2195
    %3937 = vmatprep.subr.bf16.mxu0 %v2204
    %3938 = vmatpush1.bf16.msra.mxu0 %v2203
    %3939 = vmatprep.subr.bf16.mxu0 %v2212
    %3940 = vmatpush1.bf16.msra.mxu0 %v2211
    %3941 = vmatprep.subr.bf16.mxu0 %v2220
    %3942 = vmatpush1.bf16.msra.mxu0 %v2219
    %3943 = vmatprep.mubr.bf16.mxu0 %v678
    %3944 = vmatmul.mubr.bf16.gmra.mrb[0].mxu0 %v677
    %v3945 = vpop.f32.mrb[0].mxu0
    %v3946 = vadd.f32 %v568, %v3945
    %v3947 = vpop.f32.mrb[0].mxu0
    %v3948 = vadd.f32 %v572, %v3947
    %v3949 = vpop.f32.mrb[0].mxu0
    %v3950 = vadd.f32 %v568, %v3949
    %v3951 = vpop.f32.mrb[0].mxu0
    %v3952 = vadd.f32 %v572, %v3951
    %3953 = vmatprep.mubr.bf16.mxu0 %v686
    %3954 = vmatmul.mubr.bf16.gmra.mrb[0].mxu0 %v685
    %v3955 = vpop.f32.mrb[0].mxu0
    %v3956 = vadd.f32 %v568, %v3955
    %v3957 = vpop.f32.mrb[0].mxu0
    %v3958 = vadd.f32 %v572, %v3957
    %v3959 = vpop.f32.mrb[0].mxu0
    %v3960 = vadd.f32 %v568, %v3959
    %v3961 = vpop.f32.mrb[0].mxu0
    %v3962 = vadd.f32 %v572, %v3961
    %3963 = vmatprep.mubr.bf16.mxu0 %v694
    %3964 = vmatmul.mubr.bf16.gmra.mrb[0].mxu0 %v693
    %v3965 = vpop.f32.mrb[0].mxu0
    %v3966 = vadd.f32 %v568, %v3965
    %v3967 = vpop.f32.mrb[0].mxu0
    %v3968 = vadd.f32 %v572, %v3967
    %v3969 = vpop.f32.mrb[0].mxu0
    %v3970 = vadd.f32 %v568, %v3969
    %v3971 = vpop.f32.mrb[0].mxu0
    %v3972 = vadd.f32 %v572, %v3971
    %3973 = vmatprep.mubr.bf16.mxu0 %v702
    %3974 = vmatmul.mubr.bf16.gmra.mrb[0].mxu0 %v701
    %v3975 = vpop.f32.mrb[0].mxu0
    %v3976 = vadd.f32 %v568, %v3975
    %v3977 = vpop.f32.mrb[0].mxu0
    %v3978 = vadd.f32 %v572, %v3977
    %v3979 = vpop.f32.mrb[0].mxu0
    %v3980 = vadd.f32 %v568, %v3979
    %v3981 = vpop.f32.mrb[0].mxu0
    %v3982 = vadd.f32 %v572, %v3981
    %3983 = vdwg.mxu0
    %3984 = vmatprep.subr.bf16.mxu0 %v2228
    %3985 = vmatpush1.bf16.msra.mxu0 %v2227
    %3986 = vmatprep.subr.bf16.mxu0 %v2236
    %3987 = vmatpush1.bf16.msra.mxu0 %v2235
    %3988 = vmatprep.subr.bf16.mxu0 %v2244
    %3989 = vmatpush1.bf16.msra.mxu0 %v2243
    %3990 = vmatprep.subr.bf16.mxu0 %v2252
    %3991 = vmatpush1.bf16.msra.mxu0 %v2251
    %3992 = vmatprep.subr.bf16.mxu0 %v2260
    %3993 = vmatpush1.bf16.msra.mxu0 %v2259
    %3994 = vmatprep.subr.bf16.mxu0 %v2268
    %3995 = vmatpush1.bf16.msra.mxu0 %v2267
    %3996 = vmatprep.subr.bf16.mxu0 %v2276
    %3997 = vmatpush1.bf16.msra.mxu0 %v2275
    %3998 = vmatprep.subr.bf16.mxu0 %v2284
    %3999 = vmatpush1.bf16.msra.mxu0 %v2283
    %4000 = vmatprep.subr.bf16.mxu0 %v2292
    %4001 = vmatpush1.bf16.msra.mxu0 %v2291
    %4002 = vmatprep.subr.bf16.mxu0 %v2300
    %4003 = vmatpush1.bf16.msra.mxu0 %v2299
    %4004 = vmatprep.subr.bf16.mxu0 %v2308
    %4005 = vmatpush1.bf16.msra.mxu0 %v2307
    %4006 = vmatprep.subr.bf16.mxu0 %v2316
    %4007 = vmatpush1.bf16.msra.mxu0 %v2315
    %4008 = vmatprep.subr.bf16.mxu0 %v2324
    %4009 = vmatpush1.bf16.msra.mxu0 %v2323
    %4010 = vmatprep.subr.bf16.mxu0 %v2332
    %4011 = vmatpush1.bf16.msra.mxu0 %v2331
    %4012 = vmatprep.subr.bf16.mxu0 %v2340
    %4013 = vmatpush1.bf16.msra.mxu0 %v2339
    %4014 = vmatprep.subr.bf16.mxu0 %v2348
    %4015 = vmatpush1.bf16.msra.mxu0 %v2347
    %4016 = vmatprep.mubr.bf16.mxu0 %v680
    %4017 = vmatmul.mubr.bf16.gmra.mrb[0].mxu0 %v679
    %v4018 = vpop.f32.mrb[0].mxu0
    %v4019 = vadd.f32 %v3946, %v4018
    %v4020 = vpop.f32.mrb[0].mxu0
    %v4021 = vadd.f32 %v3948, %v4020
    %v4022 = vpop.f32.mrb[0].mxu0
    %v4023 = vadd.f32 %v3950, %v4022
    %v4024 = vpop.f32.mrb[0].mxu0
    %v4025 = vadd.f32 %v3952, %v4024
    %4026 = vmatprep.mubr.bf16.mxu0 %v688
    %4027 = vmatmul.mubr.bf16.gmra.mrb[0].mxu0 %v687
    %v4028 = vpop.f32.mrb[0].mxu0
    %v4029 = vadd.f32 %v3956, %v4028
    %v4030 = vpop.f32.mrb[0].mxu0
    %v4031 = vadd.f32 %v3958, %v4030
    %v4032 = vpop.f32.mrb[0].mxu0
    %v4033 = vadd.f32 %v3960, %v4032
    %v4034 = vpop.f32.mrb[0].mxu0
    %v4035 = vadd.f32 %v3962, %v4034
    %4036 = vmatprep.mubr.bf16.mxu0 %v696
    %4037 = vmatmul.mubr.bf16.gmra.mrb[0].mxu0 %v695
    %v4038 = vpop.f32.mrb[0].mxu0
    %v4039 = vadd.f32 %v3966, %v4038
    %v4040 = vpop.f32.mrb[0].mxu0
    %v4041 = vadd.f32 %v3968, %v4040
    %v4042 = vpop.f32.mrb[0].mxu0
    %v4043 = vadd.f32 %v3970, %v4042
    %v4044 = vpop.f32.mrb[0].mxu0
    %v4045 = vadd.f32 %v3972, %v4044
    %4046 = vmatprep.mubr.bf16.mxu0 %v704
    %4047 = vmatmul.mubr.bf16.gmra.mrb[0].mxu0 %v703
    %v4048 = vpop.f32.mrb[0].mxu0
    %v4049 = vadd.f32 %v3976, %v4048
    %v4050 = vpop.f32.mrb[0].mxu0
    %v4051 = vadd.f32 %v3978, %v4050
    %v4052 = vpop.f32.mrb[0].mxu0
    %v4053 = vadd.f32 %v3980, %v4052
    %v4054 = vpop.f32.mrb[0].mxu0
    %v4055 = vadd.f32 %v3982, %v4054
    %4056 = vdwg.mxu0
    %4057 = vmatprep.subr.bf16.mxu0 %v2356
    %4058 = vmatpush1.bf16.msra.mxu0 %v2355
    %4059 = vmatprep.subr.bf16.mxu0 %v2364
    %4060 = vmatpush1.bf16.msra.mxu0 %v2363
    %4061 = vmatprep.subr.bf16.mxu0 %v2372
    %4062 = vmatpush1.bf16.msra.mxu0 %v2371
    %4063 = vmatprep.subr.bf16.mxu0 %v2380
    %4064 = vmatpush1.bf16.msra.mxu0 %v2379
    %4065 = vmatprep.subr.bf16.mxu0 %v2388
    %4066 = vmatpush1.bf16.msra.mxu0 %v2387
    %4067 = vmatprep.subr.bf16.mxu0 %v2396
    %4068 = vmatpush1.bf16.msra.mxu0 %v2395
    %4069 = vmatprep.subr.bf16.mxu0 %v2404
    %4070 = vmatpush1.bf16.msra.mxu0 %v2403
    %4071 = vmatprep.subr.bf16.mxu0 %v2412
    %4072 = vmatpush1.bf16.msra.mxu0 %v2411
    %4073 = vmatprep.subr.bf16.mxu0 %v2420
    %4074 = vmatpush1.bf16.msra.mxu0 %v2419
    %4075 = vmatprep.subr.bf16.mxu0 %v2428
    %4076 = vmatpush1.bf16.msra.mxu0 %v2427
    %4077 = vmatprep.subr.bf16.mxu0 %v2436
    %4078 = vmatpush1.bf16.msra.mxu0 %v2435
    %4079 = vmatprep.subr.bf16.mxu0 %v2444
    %4080 = vmatpush1.bf16.msra.mxu0 %v2443
    %4081 = vmatprep.subr.bf16.mxu0 %v2452
    %4082 = vmatpush1.bf16.msra.mxu0 %v2451
    %4083 = vmatprep.subr.bf16.mxu0 %v2460
    %4084 = vmatpush1.bf16.msra.mxu0 %v2459
    %4085 = vmatprep.subr.bf16.mxu0 %v2468
    %4086 = vmatpush1.bf16.msra.mxu0 %v2467
    %4087 = vmatprep.subr.bf16.mxu0 %v2476
    %4088 = vmatpush1.bf16.msra.mxu0 %v2475
    %4089 = vmatprep.mubr.bf16.mxu0 %v682
    %4090 = vmatmul.mubr.bf16.gmra.mrb[0].mxu0 %v681
    %v4091 = vpop.f32.mrb[0].mxu0
    %v4092 = vadd.f32 %v4019, %v4091
    %v4093 = vpop.f32.mrb[0].mxu0
    %v4094 = vadd.f32 %v4021, %v4093
    %v4095 = vpop.f32.mrb[0].mxu0
    %v4096 = vadd.f32 %v4023, %v4095
    %v4097 = vpop.f32.mrb[0].mxu0
    %v4098 = vadd.f32 %v4025, %v4097
    %4099 = vmatprep.mubr.bf16.mxu0 %v690
    %4100 = vmatmul.mubr.bf16.gmra.mrb[0].mxu0 %v689
    %v4101 = vpop.f32.mrb[0].mxu0
    %v4102 = vadd.f32 %v4029, %v4101
    %v4103 = vpop.f32.mrb[0].mxu0
    %v4104 = vadd.f32 %v4031, %v4103
    %v4105 = vpop.f32.mrb[0].mxu0
    %v4106 = vadd.f32 %v4033, %v4105
    %v4107 = vpop.f32.mrb[0].mxu0
    %v4108 = vadd.f32 %v4035, %v4107
    %4109 = vmatprep.mubr.bf16.mxu0 %v698
    %4110 = vmatmul.mubr.bf16.gmra.mrb[0].mxu0 %v697
    %v4111 = vpop.f32.mrb[0].mxu0
    %v4112 = vadd.f32 %v4039, %v4111
    %v4113 = vpop.f32.mrb[0].mxu0
    %v4114 = vadd.f32 %v4041, %v4113
    %v4115 = vpop.f32.mrb[0].mxu0
    %v4116 = vadd.f32 %v4043, %v4115
    %v4117 = vpop.f32.mrb[0].mxu0
    %v4118 = vadd.f32 %v4045, %v4117
    %4119 = vmatprep.mubr.bf16.mxu0 %v706
    %4120 = vmatmul.mubr.bf16.gmra.mrb[0].mxu0 %v705
    %v4121 = vpop.f32.mrb[0].mxu0
    %v4122 = vadd.f32 %v4049, %v4121
    %v4123 = vpop.f32.mrb[0].mxu0
    %v4124 = vadd.f32 %v4051, %v4123
    %v4125 = vpop.f32.mrb[0].mxu0
    %v4126 = vadd.f32 %v4053, %v4125
    %v4127 = vpop.f32.mrb[0].mxu0
    %v4128 = vadd.f32 %v4055, %v4127
    %4129 = vdwg.mxu0
    %4130 = vmatprep.subr.bf16.mxu0 %v2484
    %4131 = vmatpush1.bf16.msra.mxu0 %v2483
    %4132 = vmatprep.subr.bf16.mxu0 %v2492
    %4133 = vmatpush1.bf16.msra.mxu0 %v2491
    %4134 = vmatprep.subr.bf16.mxu0 %v2500
    %4135 = vmatpush1.bf16.msra.mxu0 %v2499
    %4136 = vmatprep.subr.bf16.mxu0 %v2508
    %4137 = vmatpush1.bf16.msra.mxu0 %v2507
    %4138 = vmatprep.subr.bf16.mxu0 %v2516
    %4139 = vmatpush1.bf16.msra.mxu0 %v2515
    %4140 = vmatprep.subr.bf16.mxu0 %v2524
    %4141 = vmatpush1.bf16.msra.mxu0 %v2523
    %4142 = vmatprep.subr.bf16.mxu0 %v2532
    %4143 = vmatpush1.bf16.msra.mxu0 %v2531
    %4144 = vmatprep.subr.bf16.mxu0 %v2540
    %4145 = vmatpush1.bf16.msra.mxu0 %v2539
    %4146 = vmatprep.subr.bf16.mxu0 %v3033
    %4147 = vmatpush1.bf16.msra.mxu0 %v3030
    %4148 = vmatprep.subr.bf16.mxu0 0
    %4149 = vmatpush1.bf16.msra.mxu0 0
    %4150 = vmatprep.subr.bf16.mxu0 0
    %4151 = vmatpush1.bf16.msra.mxu0 0
    %4152 = vmatprep.subr.bf16.mxu0 0
    %4153 = vmatpush1.bf16.msra.mxu0 0
    %4154 = vmatprep.subr.bf16.mxu0 0
    %4155 = vmatpush1.bf16.msra.mxu0 0
    %4156 = vmatprep.subr.bf16.mxu0 0
    %4157 = vmatpush1.bf16.msra.mxu0 0
    %4158 = vmatprep.subr.bf16.mxu0 0
    %4159 = vmatpush1.bf16.msra.mxu0 0
    %4160 = vmatprep.subr.bf16.mxu0 0
    %4161 = vmatpush1.bf16.msra.mxu0 0
    %4162 = vmatprep.mubr.bf16.mxu0 %v2999
    %4163 = vmatmul.mubr.bf16.gmra.mrb[0].mxu0 %v683
    %v4164 = vpop.f32.mrb[0].mxu0
    %v4165 = vadd.f32 %v4092, %v4164
    %v4166 = vpop.f32.mrb[0].mxu0
    %v4167 = vadd.f32 %v4094, %v4166
    %v4168 = vpop.f32.mrb[0].mxu0
    %v4169 = vadd.f32 %v4096, %v4168
    %v4170 = vpop.f32.mrb[0].mxu0
    %v4171 = vadd.f32 %v4098, %v4170
    %4172 = vmatprep.mubr.bf16.mxu0 %v3002
    %4173 = vmatmul.mubr.bf16.gmra.mrb[0].mxu0 %v691
    %v4174 = vpop.f32.mrb[0].mxu0
    %v4175 = vadd.f32 %v4102, %v4174
    %v4176 = vpop.f32.mrb[0].mxu0
    %v4177 = vadd.f32 %v4104, %v4176
    %v4178 = vpop.f32.mrb[0].mxu0
    %v4179 = vadd.f32 %v4106, %v4178
    %v4180 = vpop.f32.mrb[0].mxu0
    %v4181 = vadd.f32 %v4108, %v4180
    %4182 = vmatprep.mubr.bf16.mxu0 %v3005
    %4183 = vmatmul.mubr.bf16.gmra.mrb[0].mxu0 %v699
    %v4184 = vpop.f32.mrb[0].mxu0
    %v4185 = vadd.f32 %v4112, %v4184
    %v4186 = vpop.f32.mrb[0].mxu0
    %v4187 = vadd.f32 %v4114, %v4186
    %v4188 = vpop.f32.mrb[0].mxu0
    %v4189 = vadd.f32 %v4116, %v4188
    %v4190 = vpop.f32.mrb[0].mxu0
    %v4191 = vadd.f32 %v4118, %v4190
    %4192 = vmatprep.mubr.bf16.mxu0 %v3008
    %4193 = vmatmul.mubr.bf16.gmra.mrb[0].mxu0 %v707
    %v4194 = vpop.f32.mrb[0].mxu0
    %v4195 = vadd.f32 %v4122, %v4194
    %v4196 = vpop.f32.mrb[0].mxu0
    %v4197 = vadd.f32 %v4124, %v4196
    %v4198 = vpop.f32.mrb[0].mxu0
    %v4199 = vadd.f32 %v4126, %v4198
    %v4200 = vpop.f32.mrb[0].mxu0
    %v4201 = vadd.f32 %v4128, %v4200
    %4202 = vdwg.mxu0
    %v4203 = vpack.c.bf16 %v3293, %v3289
    %v4204 = vpack.c.bf16 %v3295, %v3291
    %v4205 = vpack.c.bf16 %v3585, %v3581
    %v4206 = vpack.c.bf16 %v3587, %v3583
    %v4207 = vpack.c.bf16 %v3877, %v3873
    %v4208 = vpack.c.bf16 %v3879, %v3875
    %v4209 = vpack.c.bf16 %v4169, %v4165
    %v4210 = vpack.c.bf16 %v4171, %v4167
    %v4211 = vpack.c.bf16 %v3303, %v3299
    %v4212 = vpack.c.bf16 %v3305, %v3301
    %v4213 = vpack.c.bf16 %v3595, %v3591
    %v4214 = vpack.c.bf16 %v3597, %v3593
    %v4215 = vpack.c.bf16 %v3887, %v3883
    %v4216 = vpack.c.bf16 %v3889, %v3885
    %v4217 = vpack.c.bf16 %v4179, %v4175
    %v4218 = vpack.c.bf16 %v4181, %v4177
    %v4219 = vpack.c.bf16 %v3313, %v3309
    %v4220 = vpack.c.bf16 %v3315, %v3311
    %v4221 = vpack.c.bf16 %v3605, %v3601
    %v4222 = vpack.c.bf16 %v3607, %v3603
    %v4223 = vpack.c.bf16 %v3897, %v3893
    %v4224 = vpack.c.bf16 %v3899, %v3895
    %v4225 = vpack.c.bf16 %v4189, %v4185
    %v4226 = vpack.c.bf16 %v4191, %v4187
    %v4227 = vpack.c.bf16 %v3323, %v3319
    %v4228 = vpack.c.bf16 %v3325, %v3321
    %v4229 = vpack.c.bf16 %v3615, %v3611
    %v4230 = vpack.c.bf16 %v3617, %v3613
    %v4231 = vpack.c.bf16 %v3907, %v3903
    %v4232 = vpack.c.bf16 %v3909, %v3905
    %v4233 = vpack.c.bf16 %v4199, %v4195
    %v4234 = vpack.c.bf16 %v4201, %v4197
    %v4267 = vunpack.c.l.b16 %v4203
    %v4268 = vunpack.c.l.b16 %v4204
    %v4269 = vunpack.c.l.b16 %v4205
    %v4270 = vunpack.c.l.b16 %v4206
    %v4271 = vunpack.c.l.b16 %v4207
    %v4272 = vunpack.c.l.b16 %v4208
    %v4273 = vunpack.c.l.b16 %v4209
    %v4274 = vunpack.c.l.b16 %v4210
    %v4275 = vunpack.c.h.b16 %v4203
    %v4276 = vunpack.c.h.b16 %v4204
    %v4277 = vunpack.c.h.b16 %v4205
    %v4278 = vunpack.c.h.b16 %v4206
    %v4279 = vunpack.c.h.b16 %v4207
    %v4280 = vunpack.c.h.b16 %v4208
    %v4281 = vunpack.c.h.b16 %v4209
    %v4282 = vunpack.c.h.b16 %v4210
    %v4283 = vunpack.c.l.b16 %v4211
    %v4284 = vunpack.c.l.b16 %v4212
    %v4285 = vunpack.c.l.b16 %v4213
    %v4286 = vunpack.c.l.b16 %v4214
    %v4287 = vunpack.c.l.b16 %v4215
    %v4288 = vunpack.c.l.b16 %v4216
    %v4289 = vunpack.c.l.b16 %v4217
    %v4290 = vunpack.c.l.b16 %v4218
    %v4291 = vunpack.c.h.b16 %v4211
    %v4292 = vunpack.c.h.b16 %v4212
    %v4293 = vunpack.c.h.b16 %v4213
    %v4294 = vunpack.c.h.b16 %v4214
    %v4295 = vunpack.c.h.b16 %v4215
    %v4296 = vunpack.c.h.b16 %v4216
    %v4297 = vunpack.c.h.b16 %v4217
    %v4298 = vunpack.c.h.b16 %v4218
    %v4299 = vunpack.c.l.b16 %v4219
    %v4300 = vunpack.c.l.b16 %v4220
    %v4301 = vunpack.c.l.b16 %v4221
    %v4302 = vunpack.c.l.b16 %v4222
    %v4303 = vunpack.c.l.b16 %v4223
    %v4304 = vunpack.c.l.b16 %v4224
    %v4305 = vunpack.c.l.b16 %v4225
    %v4306 = vunpack.c.l.b16 %v4226
    %v4307 = vunpack.c.h.b16 %v4219
    %v4308 = vunpack.c.h.b16 %v4220
    %v4309 = vunpack.c.h.b16 %v4221
    %v4310 = vunpack.c.h.b16 %v4222
    %v4311 = vunpack.c.h.b16 %v4223
    %v4312 = vunpack.c.h.b16 %v4224
    %v4313 = vunpack.c.h.b16 %v4225
    %v4314 = vunpack.c.h.b16 %v4226
    %v4315 = vunpack.c.l.b16 %v4227
    %v4316 = vunpack.c.l.b16 %v4228
    %v4317 = vunpack.c.l.b16 %v4229
    %v4318 = vunpack.c.l.b16 %v4230
    %v4319 = vunpack.c.l.b16 %v4231
    %v4320 = vunpack.c.l.b16 %v4232
    %v4321 = vunpack.c.l.b16 %v4233
    %v4322 = vunpack.c.l.b16 %v4234
    %v4323 = vunpack.c.h.b16 %v4227
    %v4324 = vunpack.c.h.b16 %v4228
    %v4325 = vunpack.c.h.b16 %v4229
    %v4326 = vunpack.c.h.b16 %v4230
    %v4327 = vunpack.c.h.b16 %v4231
    %v4328 = vunpack.c.h.b16 %v4232
    %v4329 = vunpack.c.h.b16 %v4233
    %v4330 = vunpack.c.h.b16 %v4234
    %v4331 = vpack.c.b16 %v4268, %v4267
    %v4332 = vpack.c.b16 %v4270, %v4269
    %v4333 = vpack.c.b16 %v4272, %v4271
    %v4334 = vpack.c.b16 %v4274, %v4273
    %v4335 = vpack.c.b16 %v4276, %v4275
    %v4336 = vpack.c.b16 %v4278, %v4277
    %v4337 = vpack.c.b16 %v4280, %v4279
    %v4338 = vpack.c.b16 %v4282, %v4281
    %v4339 = vpack.c.b16 %v4284, %v4283
    %v4340 = vpack.c.b16 %v4286, %v4285
    %v4341 = vpack.c.b16 %v4288, %v4287
    %v4342 = vpack.c.b16 %v4290, %v4289
    %v4343 = vpack.c.b16 %v4292, %v4291
    %v4344 = vpack.c.b16 %v4294, %v4293
    %v4345 = vpack.c.b16 %v4296, %v4295
    %v4346 = vpack.c.b16 %v4298, %v4297
    %v4347 = vpack.c.b16 %v4300, %v4299
    %v4348 = vpack.c.b16 %v4302, %v4301
    %v4349 = vpack.c.b16 %v4304, %v4303
    %v4350 = vpack.c.b16 %v4306, %v4305
    %v4351 = vpack.c.b16 %v4308, %v4307
    %v4352 = vpack.c.b16 %v4310, %v4309
    %v4353 = vpack.c.b16 %v4312, %v4311
    %v4354 = vpack.c.b16 %v4314, %v4313
    %v4355 = vpack.c.b16 %v4316, %v4315
    %v4356 = vpack.c.b16 %v4318, %v4317
    %v4357 = vpack.c.b16 %v4320, %v4319
    %v4358 = vpack.c.b16 %v4322, %v4321
    %v4359 = vpack.c.b16 %v4324, %v4323
    %v4360 = vpack.c.b16 %v4326, %v4325
    %v4361 = vpack.c.b16 %v4328, %v4327
    %v4362 = vpack.c.b16 %v4330, %v4329
    %4395 = vst [vmem:[#allocation8] sm:$0xff] %v4331
    %4396 = vst [vmem:[#allocation8 + $0x8] sm:$0xff] %v4332
    %4397 = vst [vmem:[#allocation8 + $0x10] sm:$0xff] %v4333
    %4398 = vst [vmem:[#allocation8 + $0x18] sm:$0xff] %v4334
    %4399 = vst [vmem:[#allocation8 + $0x20] sm:$0xff] %v4335
    %4400 = vst [vmem:[#allocation8 + $0x28] sm:$0xff] %v4336
    %4401 = vst [vmem:[#allocation8 + $0x30] sm:$0xff] %v4337
    %4402 = vst [vmem:[#allocation8 + $0x38] sm:$0xff] %v4338
    %4403 = vst [vmem:[#allocation8 + $0x40] sm:$0xff] %v4339
    %4404 = vst [vmem:[#allocation8 + $0x48] sm:$0xff] %v4340
    %4405 = vst [vmem:[#allocation8 + $0x50] sm:$0xff] %v4341
    %4406 = vst [vmem:[#allocation8 + $0x58] sm:$0xff] %v4342
    %4407 = vst [vmem:[#allocation8 + $0x60] sm:$0xff] %v4343
    %4408 = vst [vmem:[#allocation8 + $0x68] sm:$0xff] %v4344
    %4409 = vst [vmem:[#allocation8 + $0x70] sm:$0xff] %v4345
    %4410 = vst [vmem:[#allocation8 + $0x78] sm:$0xff] %v4346
    %4411 = vst [vmem:[#allocation8 + $0x80] sm:$0xff] %v4347
    %4412 = vst [vmem:[#allocation8 + $0x88] sm:$0xff] %v4348
    %4413 = vst [vmem:[#allocation8 + $0x90] sm:$0xff] %v4349
    %4414 = vst [vmem:[#allocation8 + $0x98] sm:$0xff] %v4350
    %4415 = vst [vmem:[#allocation8 + $0xa0] sm:$0xff] %v4351
    %4416 = vst [vmem:[#allocation8 + $0xa8] sm:$0xff] %v4352
    %4417 = vst [vmem:[#allocation8 + $0xb0] sm:$0xff] %v4353
    %4418 = vst [vmem:[#allocation8 + $0xb8] sm:$0xff] %v4354
    %4419 = vst [vmem:[#allocation8 + $0xc0] sm:$0xff] %v4355
    %4420 = vst [vmem:[#allocation8 + $0xc8] sm:$0xff] %v4356
    %4421 = vst [vmem:[#allocation8 + $0xd0] sm:$0xff] %v4357
    %4422 = vst [vmem:[#allocation8 + $0xd8] sm:$0xff] %v4358
    %4423 = vst [vmem:[#allocation8 + $0xe0] sm:$0xff] %v4359
    %4424 = vst [vmem:[#allocation8 + $0xe8] sm:$0xff] %v4360
    %4425 = vst [vmem:[#allocation8 + $0xf0] sm:$0xff] %v4361
    %4426 = vst [vmem:[#allocation8 + $0xf8] sm:$0xff] %v4362
    // Predicated region
    $region26: #{tpu_custom_call.1} parent=1 // pred_check
      _
    $region27: #{tpu_custom_call.1} parent=1 // pred_check_branch
      %4428 = sbr.rel (0) target = $region29
    $region28: #{tpu_custom_call.1} parent=1 // pred_region
      %s4430 = ssub.s32 4096, 4096
      %4431 = vsyncadd [#allocation4], %s4430
      %s4432 = sshll.u32 [#allocation8], 4
      %s4433 = int_to_ptr.vmem [resolvable:$true] %s4432
      %4438 = dma.vmem_to_hbm [thread:$0]  %s4433, 4096, %s3, [#allocation4], 512, 512, 32
    $region29: #{tpu_custom_call.1} parent=1 // pred_fallthru
      _
    // Predicated region
    $region30: #{tpu_custom_call.1} parent=1 // pred_check
      _
    $region31: #{tpu_custom_call.1} parent=1 // pred_check_branch
      %4440 = sbr.rel (0) target = $region33
    $region32: #{tpu_custom_call.1} parent=1 // pred_region
      %4441 = dma.done [#allocation4], 4096
    $region33: #{tpu_custom_call.1} parent=1 // pred_fallthru
      _
    %4442 = vsyncpa [#allocation3], 1
    %4443 = vsyncpa [#allocation6], 1
    %4444 = vsyncpa [#allocation4], 1

</llo_original>
